<compile_context>
chip_gen: v5e
topology: v5e:2x2
jax: 0.10.0
libtpu: 0.0.40
codegen_flags: <defaults>
</compile_context>

<pallas_src>
import functools
import math

import numpy as np
import jax
import jax.numpy as jnp
from jax import lax
from jax.experimental import pallas as pl
from jax.experimental.pallas import tpu as pltpu

LEAKY_SLOPE = 0.2


# ---------------------------------------------------------------------------
# Pallas kernels: tiled matmul, bf16 inputs -> f32 MXU accumulate.
# ---------------------------------------------------------------------------
def _matmul_kernel(x_ref, w_ref, o_ref):
    o_ref[...] = jnp.dot(x_ref[...], w_ref[...],
                         preferred_element_type=jnp.float32).astype(o_ref.dtype)


def _matmul_bias_act_kernel(x_ref, w_ref, b_ref, o_ref, *, act):
    acc = jnp.dot(x_ref[...], w_ref[...], preferred_element_type=jnp.float32)
    acc = acc + b_ref[...]                      # bias in f32
    if act:
        acc = jnp.where(acc >= 0, acc, LEAKY_SLOPE * acc)
    o_ref[...] = acc.astype(o_ref.dtype)


# Keep double-buffered blocks under v5e's 16 MiB default scoped-VMEM limit
# (also well under v6e/v7x defaults), no compiler-param overrides needed.
_VMEM_BUDGET = 12 * 1024 * 1024


def _pick_tiles(M, K, N, *, tn_max=2048, tm_max=2048):
    """Pick (tm, tn) so 2x-buffered X/W/out blocks stay under _VMEM_BUDGET."""
    tn = N if N <= tn_max else tn_max           # N is always a multiple of 128 here
    if M <= 8:
        return M, tn                            # tiny-M layers: full-M block
    tm = min(tm_max, M)
    tm = max(8, (tm // 8) * 8)

    def fits(t):
        per = t * K * 2 + K * tn * 2 + t * tn * 4   # X(bf16) + W(bf16) + out(f32)
        return 2 * per <= _VMEM_BUDGET              # double-buffered

    while tm > 8 and not fits(tm):
        tm = max(8, (tm // 2 // 8) * 8)
    return tm, tn


def pallas_matmul(x, w, b=None, act=False, *, out_dtype=jnp.float32):
    """x: (M, K), w: (K, N), optional bias b: (N,).  Returns (M, N) out_dtype.

    bf16 inputs, f32 MXU accumulation.  Grid = (N_tiles, M_tiles), M innermost
    so the weight block is resident across M tiles; both axes "parallel".
    """
    M, K = x.shape
    K2, N = w.shape
    assert K == K2
    x = x.astype(jnp.bfloat16)
    w = w.astype(jnp.bfloat16)

    tm, tn = _pick_tiles(M, K, N)
    grid = (pl.cdiv(N, tn), pl.cdiv(M, tm))     # (n, m) with m innermost

    in_specs = [
        pl.BlockSpec((tm, K), lambda n, m: (m, 0)),    # X streams over m
        pl.BlockSpec((K, tn), lambda n, m: (0, n)),    # W resident across m
    ]
    args = [x, w]
    if b is not None:
        in_specs.append(pl.BlockSpec((1, tn), lambda n, m: (0, n)))
        args.append(b.reshape(1, N).astype(jnp.float32))
        kernel = functools.partial(_matmul_bias_act_kernel, act=act)
    else:
        kernel = _matmul_kernel

    return pl.pallas_call(
        kernel,
        out_shape=jax.ShapeDtypeStruct((M, N), out_dtype),
        grid=grid,
        in_specs=in_specs,
        out_specs=pl.BlockSpec((tm, tn), lambda n, m: (m, n)),
        compiler_params=pltpu.CompilerParams(
            dimension_semantics=("parallel", "parallel")),
    )(*args)


# ---------------------------------------------------------------------------
# Stride-2 overlap-add / parity interleave for ConvTranspose3d(k=4, s=2, p=1).
# For output index o = 2*q + p along an axis, the (input shift, kernel tap)
# pairs contributing are:
#   p=0: (q+0, k=1), (q-1, k=3)      p=1: (q+0, k=2), (q+1, k=0)
# Each element of y is read exactly once across all parities; XLA fuses the
# pad + tap-slice sums, leaving one interleave copy for the output.
# ---------------------------------------------------------------------------
_TAPS = {0: ((0, 1), (-1, 3)), 1: ((0, 2), (1, 0))}


def _overlap_add_stride2(y, d, h, w):
    """y: (B, D, H, W, 4, 4, 4, C) f32 -> (B, 2D, 2H, 2W, C) f32."""
    b, c = y.shape[0], y.shape[-1]
    yp = jnp.pad(y, ((0, 0), (1, 1), (1, 1), (1, 1),
                     (0, 0), (0, 0), (0, 0), (0, 0)))
    parity_out = []
    for pd in (0, 1):
        for ph in (0, 1):
            for pw in (0, 1):
                acc = jnp.zeros((b, d, h, w, c), jnp.float32)
                for (sd, kd) in _TAPS[pd]:
                    for (sh, kh) in _TAPS[ph]:
                        for (sw, kw) in _TAPS[pw]:
                            acc = acc + yp[:, 1 + sd:1 + sd + d,
                                           1 + sh:1 + sh + h,
                                           1 + sw:1 + sw + w,
                                           kd, kh, kw, :]
                parity_out.append(acc)
    out = jnp.stack(parity_out).reshape(2, 2, 2, b, d, h, w, c)
    out = out.transpose(3, 4, 0, 5, 1, 6, 2, 7)     # b, d, pd, h, ph, w, pw, c
    return out.reshape(b, 2 * d, 2 * h, 2 * w, c)


def conv_transpose3d(x, w, b, act, out_dtype=jnp.float32):
    """x: (B, D, H, W, Cin) channels-last; w: (Cin, Cout, 4, 4, 4) (PyTorch);
    b: (Cout,).  Returns (B, 2D, 2H, 2W, Cout) channels-last, out_dtype."""
    n, d, h, wd, cin = x.shape
    cout = w.shape[1]
    # Single matmul: (M, Cin) @ (Cin, 4*4*4*Cout) — no im2col duplication.
    wr = jnp.transpose(w, (0, 2, 3, 4, 1)).reshape(cin, 64 * cout)
    y = pallas_matmul(x.reshape(n * d * h * wd, cin), wr,
                      out_dtype=jnp.float32)                       # (M, 64*Cout)
    y = y.reshape(n, d, h, wd, 4, 4, 4, cout)
    out = _overlap_add_stride2(y, d, h, wd)                        # (B,2D,2H,2W,C)
    out = out + b.reshape(1, 1, 1, 1, cout).astype(jnp.float32)
    if act:
        out = jnp.where(out >= 0, out, LEAKY_SLOPE * out)
    return out.astype(out_dtype)


# ---------------------------------------------------------------------------
# Full ConvTemplate forward.
# ---------------------------------------------------------------------------
def conv_template_forward(params, encoding):
    w1, b1 = params["linear"]                       # w1: (hidden, E), PyTorch layout
    hidden = w1.shape[0]
    # Linear + bias + LeakyReLU fused in-kernel; stored bf16 (next matmul would
    # cast to bf16 anyway -> bit-identical result, half the HBM traffic).
    x = pallas_matmul(encoding, jnp.transpose(w1), b=b1, act=True,
                      out_dtype=jnp.bfloat16)       # (B, hidden)
    x = x.reshape(-1, 1, 1, 1, hidden)              # channels-last, spatial 1x1x1
    convs = params["convs"]
    for i, (w, b) in enumerate(convs):
        last = (i == len(convs) - 1)
        x = conv_transpose3d(x, w, b, act=not last,
                             out_dtype=jnp.float32 if last else jnp.bfloat16)
    return jnp.transpose(x, (0, 4, 1, 2, 3))        # NCDHW, like the PyTorch module


# ---------------------------------------------------------------------------
# Parameter construction (deterministic, mirrors the module's channel plan).
# ---------------------------------------------------------------------------
def conv_channel_plan(base_channels, out_channels, template_res):
    plan = []
    in_c, out_c = base_channels, base_channels // 2
    for _ in range(int(math.log2(template_res)) - 1):
        plan.append((in_c, out_c))
        if in_c == out_c:
            out_c = in_c // 2
        else:
            in_c = out_c
    plan.append((in_c, out_channels))
    return plan


def init_params(key, encoding_size, base_channels, out_channels, template_res):
    k_lin, k_conv = jax.random.split(key)
    w1 = jax.random.normal(k_lin, (base_channels, encoding_size),
                           jnp.float32) * (1.0 / math.sqrt(encoding_size))
    b1 = jnp.zeros((base_channels,), jnp.float32)
    convs = []
    for (cin, cout) in conv_channel_plan(base_channels, out_channels,
                                         template_res):
        kw, kb, k_conv = jax.random.split(k_conv, 3)
        std = 1.0 / math.sqrt(cin * 8.0)
        w = jax.random.normal(kw, (cin, cout, 4, 4, 4), jnp.float32) * std
        b = jax.random.normal(kb, (cout,), jnp.float32) * 0.01
        convs.append((w, b))
    return {"linear": (w1, b1), "convs": convs}


# ---------------------------------------------------------------------------
# Pure-JAX f32 reference (ConvTranspose3d == lhs-dilated conv w/ flipped kernel).
# ---------------------------------------------------------------------------
def reference_forward(params, encoding):
    w1, b1 = params["linear"]
    x = encoding @ w1.T + b1
    x = jnp.where(x >= 0, x, LEAKY_SLOPE * x)
    x = x.reshape(-1, w1.shape[0], 1, 1, 1)
    convs = params["convs"]
    for i, (w, b) in enumerate(convs):
        wf = jnp.flip(w, axis=(2, 3, 4)).transpose(1, 0, 2, 3, 4)  # OIDHW
        x = lax.conv_general_dilated(
            x, wf, window_strides=(1, 1, 1), padding=[(2, 2)] * 3,
            lhs_dilation=(2, 2, 2),
            dimension_numbers=("NCDHW", "OIDHW", "NCDHW"),
            precision=lax.Precision.HIGHEST)
        x = x + b.reshape(1, -1, 1, 1, 1)
        if i != len(convs) - 1:
            x = jnp.where(x >= 0, x, LEAKY_SLOPE * x)
    return x


if __name__ == "__main__":
    # Small, module-consistent configuration (64 stands in for the 1024-wide
    # hidden; template_res=16 gives the same channel-halving schedule).
    ENCODING_SIZE = 32
    BASE_CHANNELS = 64
    OUT_CHANNELS = 4
    TEMPLATE_RES = 16
    BATCH = 2

    key = jax.random.PRNGKey(0)
    k_params, k_in = jax.random.split(key)
    params = init_params(k_params, ENCODING_SIZE, BASE_CHANNELS, OUT_CHANNELS,
                         TEMPLATE_RES)
    encoding = jax.random.normal(k_in, (BATCH, ENCODING_SIZE), jnp.float32)

    out = jax.jit(conv_template_forward)(params, encoding)
    out = jax.block_until_ready(out)
    assert out.shape == (BATCH, OUT_CHANNELS, TEMPLATE_RES, TEMPLATE_RES,
                         TEMPLATE_RES), out.shape

    # Tolerance accounts for bf16 matmul inputs (f32 MXU accumulation) vs the
    # all-f32 reference, compounded over 5 matmul layers.
    ref = reference_forward(params, encoding)
    np.testing.assert_allclose(np.asarray(out), np.asarray(ref),
                               rtol=5e-2, atol=5e-2)
    print("KERNEL_OK")
</pallas_src>

<mosaic_0001>
module attributes {stable_mosaic.version = 11 : i64} {
  func.func @_matmul_bias_act_kernel(%arg0: i32, %arg1: i32, %arg2: memref<2x32xbf16, #tpu.memory_space<vmem>>, %arg3: memref<32x64xbf16, #tpu.memory_space<vmem>>, %arg4: memref<1x64xf32, #tpu.memory_space<vmem>>, %arg5: memref<2x64xbf16, #tpu.memory_space<vmem>>) attributes {dimension_semantics = [#tpu.dimension_semantics<parallel>, #tpu.dimension_semantics<parallel>], iteration_bounds = array<i64: 1, 1>, scalar_prefetch = 0 : i64, scratch_operands = 0 : i64, tpu.core_type = #tpu.core_type<tc>, window_params = [{transform_indices = @transform_0, window_bounds = array<i64: 2, 32>}, {transform_indices = @transform_1, window_bounds = array<i64: 32, 64>}, {transform_indices = @transform_2, window_bounds = array<i64: 1, 64>}, {transform_indices = @transform_3, window_bounds = array<i64: 2, 64>}]} {
    %c0 = arith.constant 0 : index
    %c0_0 = arith.constant 0 : index
    %0 = vector.load %arg2[%c0, %c0_0] : memref<2x32xbf16, #tpu.memory_space<vmem>>, vector<2x32xbf16>
    %c0_1 = arith.constant 0 : index
    %c0_2 = arith.constant 0 : index
    %1 = vector.load %arg3[%c0_1, %c0_2] : memref<32x64xbf16, #tpu.memory_space<vmem>>, vector<32x64xbf16>
    %cst = arith.constant dense<0.000000e+00> : vector<2x64xf32>
    %2 = tpu.matmul %0, %1, %cst {dimension_numbers = #tpu.dot_dimension_numbers<[1], [0], [0], [1], [0, 0, 1, 1], [], []>} : vector<2x32xbf16>, vector<32x64xbf16>, vector<2x64xf32> -> vector<2x64xf32>
    %c0_3 = arith.constant 0 : index
    %c0_4 = arith.constant 0 : index
    %3 = vector.load %arg4[%c0_3, %c0_4] : memref<1x64xf32, #tpu.memory_space<vmem>>, vector<1x64xf32>
    %4 = vector.broadcast %3 : vector<1x64xf32> to vector<2x64xf32>
    %5 = arith.addf %2, %4 : vector<2x64xf32>
    %cst_5 = arith.constant 0.000000e+00 : f32
    %6 = vector.broadcast %cst_5 : f32 to vector<2x64xf32>
    %7 = arith.cmpf oge, %5, %6 : vector<2x64xf32>
    %cst_6 = arith.constant 2.000000e-01 : f32
    %8 = vector.broadcast %cst_6 : f32 to vector<2x64xf32>
    %9 = arith.mulf %8, %5 : vector<2x64xf32>
    %10 = arith.select %7, %5, %9 : vector<2x64xi1>, vector<2x64xf32>
    %11 = arith.truncf %10 : vector<2x64xf32> to vector<2x64xbf16>
    %c0_7 = arith.constant 0 : index
    %c0_8 = arith.constant 0 : index
    %12 = vector.load %arg5[%c0_7, %c0_8] : memref<2x64xbf16, #tpu.memory_space<vmem>>, vector<2x64xbf16>
    tpu.vector_store %arg5[%c0_7, %c0_8], %11 {strides = array<i32>} : memref<2x64xbf16, #tpu.memory_space<vmem>>, vector<2x64xbf16>,
    return
  }
  func.func @transform_0(%arg0: i32, %arg1: i32) -> (i32, i32) {
    %c0_i32 = arith.constant 0 : i32
    %c0_i32_0 = arith.constant 0 : i32
    return %arg1, %c0_i32 : i32, i32
  }
  func.func @transform_1(%arg0: i32, %arg1: i32) -> (i32, i32) {
    %c0_i32 = arith.constant 0 : i32
    %c0_i32_0 = arith.constant 0 : i32
    return %c0_i32, %arg0 : i32, i32
  }
  func.func @transform_2(%arg0: i32, %arg1: i32) -> (i32, i32) {
    %c0_i32 = arith.constant 0 : i32
    %c0_i32_0 = arith.constant 0 : i32
    return %c0_i32, %arg0 : i32, i32
  }
  func.func @transform_3(%arg0: i32, %arg1: i32) -> (i32, i32) {
    %c0_i32 = arith.constant 0 : i32
    return %arg1, %arg0 : i32, i32
  }
}

module attributes {stable_mosaic.version = 11 : i64} {
  func.func @_matmul_kernel(%arg0: i32, %arg1: i32, %arg2: memref<2x64xbf16, #tpu.memory_space<vmem>>, %arg3: memref<64x2048xbf16, #tpu.memory_space<vmem>>, %arg4: memref<2x2048xf32, #tpu.memory_space<vmem>>) attributes {dimension_semantics = [#tpu.dimension_semantics<parallel>, #tpu.dimension_semantics<parallel>], iteration_bounds = array<i64: 1, 1>, scalar_prefetch = 0 : i64, scratch_operands = 0 : i64, tpu.core_type = #tpu.core_type<tc>, window_params = [{transform_indices = @transform_0, window_bounds = array<i64: 2, 64>}, {transform_indices = @transform_1, window_bounds = array<i64: 64, 2048>}, {transform_indices = @transform_2, window_bounds = array<i64: 2, 2048>}]} {
    %c0 = arith.constant 0 : index
    %c0_0 = arith.constant 0 : index
    %0 = vector.load %arg2[%c0, %c0_0] : memref<2x64xbf16, #tpu.memory_space<vmem>>, vector<2x64xbf16>
    %c0_1 = arith.constant 0 : index
    %c0_2 = arith.constant 0 : index
    %1 = vector.load %arg3[%c0_1, %c0_2] : memref<64x2048xbf16, #tpu.memory_space<vmem>>, vector<64x2048xbf16>
    %cst = arith.constant dense<0.000000e+00> : vector<2x2048xf32>
    %2 = tpu.matmul %0, %1, %cst {dimension_numbers = #tpu.dot_dimension_numbers<[1], [0], [0], [1], [0, 0, 1, 1], [], []>} : vector<2x64xbf16>, vector<64x2048xbf16>, vector<2x2048xf32> -> vector<2x2048xf32>
    %c0_3 = arith.constant 0 : index
    %c0_4 = arith.constant 0 : index
    %3 = vector.load %arg4[%c0_3, %c0_4] : memref<2x2048xf32, #tpu.memory_space<vmem>>, vector<2x2048xf32>
    tpu.vector_store %arg4[%c0_3, %c0_4], %2 {strides = array<i32>} : memref<2x2048xf32, #tpu.memory_space<vmem>>, vector<2x2048xf32>,
    return
  }
  func.func @transform_0(%arg0: i32, %arg1: i32) -> (i32, i32) {
    %c0_i32 = arith.constant 0 : i32
    %c0_i32_0 = arith.constant 0 : i32
    return %arg1, %c0_i32 : i32, i32
  }
  func.func @transform_1(%arg0: i32, %arg1: i32) -> (i32, i32) {
    %c0_i32 = arith.constant 0 : i32
    %c0_i32_0 = arith.constant 0 : i32
    return %c0_i32, %arg0 : i32, i32
  }
  func.func @transform_2(%arg0: i32, %arg1: i32) -> (i32, i32) {
    %c0_i32 = arith.constant 0 : i32
    return %arg1, %arg0 : i32, i32
  }
}

module attributes {stable_mosaic.version = 11 : i64} {
  func.func @_matmul_kernel(%arg0: i32, %arg1: i32, %arg2: memref<16x32xbf16, #tpu.memory_space<vmem>>, %arg3: memref<32x2048xbf16, #tpu.memory_space<vmem>>, %arg4: memref<16x2048xf32, #tpu.memory_space<vmem>>) attributes {dimension_semantics = [#tpu.dimension_semantics<parallel>, #tpu.dimension_semantics<parallel>], iteration_bounds = array<i64: 1, 1>, scalar_prefetch = 0 : i64, scratch_operands = 0 : i64, tpu.core_type = #tpu.core_type<tc>, window_params = [{transform_indices = @transform_0, window_bounds = array<i64: 16, 32>}, {transform_indices = @transform_1, window_bounds = array<i64: 32, 2048>}, {transform_indices = @transform_2, window_bounds = array<i64: 16, 2048>}]} {
    %c0 = arith.constant 0 : index
    %c0_0 = arith.constant 0 : index
    %0 = vector.load %arg2[%c0, %c0_0] : memref<16x32xbf16, #tpu.memory_space<vmem>>, vector<16x32xbf16>
    %c0_1 = arith.constant 0 : index
    %c0_2 = arith.constant 0 : index
    %1 = vector.load %arg3[%c0_1, %c0_2] : memref<32x2048xbf16, #tpu.memory_space<vmem>>, vector<32x2048xbf16>
    %cst = arith.constant dense<0.000000e+00> : vector<16x2048xf32>
    %2 = tpu.matmul %0, %1, %cst {dimension_numbers = #tpu.dot_dimension_numbers<[1], [0], [0], [1], [0, 0, 1, 1], [], []>} : vector<16x32xbf16>, vector<32x2048xbf16>, vector<16x2048xf32> -> vector<16x2048xf32>
    %c0_3 = arith.constant 0 : index
    %c0_4 = arith.constant 0 : index
    %3 = vector.load %arg4[%c0_3, %c0_4] : memref<16x2048xf32, #tpu.memory_space<vmem>>, vector<16x2048xf32>
    tpu.vector_store %arg4[%c0_3, %c0_4], %2 {strides = array<i32>} : memref<16x2048xf32, #tpu.memory_space<vmem>>, vector<16x2048xf32>,
    return
  }
  func.func @transform_0(%arg0: i32, %arg1: i32) -> (i32, i32) {
    %c0_i32 = arith.constant 0 : i32
    %c0_i32_0 = arith.constant 0 : i32
    return %arg1, %c0_i32 : i32, i32
  }
  func.func @transform_1(%arg0: i32, %arg1: i32) -> (i32, i32) {
    %c0_i32 = arith.constant 0 : i32
    %c0_i32_0 = arith.constant 0 : i32
    return %c0_i32, %arg0 : i32, i32
  }
  func.func @transform_2(%arg0: i32, %arg1: i32) -> (i32, i32) {
    %c0_i32 = arith.constant 0 : i32
    return %arg1, %arg0 : i32, i32
  }
}

module attributes {stable_mosaic.version = 11 : i64} {
  func.func @_matmul_kernel(%arg0: i32, %arg1: i32, %arg2: memref<128x32xbf16, #tpu.memory_space<vmem>>, %arg3: memref<32x1024xbf16, #tpu.memory_space<vmem>>, %arg4: memref<128x1024xf32, #tpu.memory_space<vmem>>) attributes {dimension_semantics = [#tpu.dimension_semantics<parallel>, #tpu.dimension_semantics<parallel>], iteration_bounds = array<i64: 1, 1>, scalar_prefetch = 0 : i64, scratch_operands = 0 : i64, tpu.core_type = #tpu.core_type<tc>, window_params = [{transform_indices = @transform_0, window_bounds = array<i64: 128, 32>}, {transform_indices = @transform_1, window_bounds = array<i64: 32, 1024>}, {transform_indices = @transform_2, window_bounds = array<i64: 128, 1024>}]} {
    %c0 = arith.constant 0 : index
    %c0_0 = arith.constant 0 : index
    %0 = vector.load %arg2[%c0, %c0_0] : memref<128x32xbf16, #tpu.memory_space<vmem>>, vector<128x32xbf16>
    %c0_1 = arith.constant 0 : index
    %c0_2 = arith.constant 0 : index
    %1 = vector.load %arg3[%c0_1, %c0_2] : memref<32x1024xbf16, #tpu.memory_space<vmem>>, vector<32x1024xbf16>
    %cst = arith.constant dense<0.000000e+00> : vector<128x1024xf32>
    %2 = tpu.matmul %0, %1, %cst {dimension_numbers = #tpu.dot_dimension_numbers<[1], [0], [0], [1], [0, 0, 1, 1], [], []>} : vector<128x32xbf16>, vector<32x1024xbf16>, vector<128x1024xf32> -> vector<128x1024xf32>
    %c0_3 = arith.constant 0 : index
    %c0_4 = arith.constant 0 : index
    %3 = vector.load %arg4[%c0_3, %c0_4] : memref<128x1024xf32, #tpu.memory_space<vmem>>, vector<128x1024xf32>
    tpu.vector_store %arg4[%c0_3, %c0_4], %2 {strides = array<i32>} : memref<128x1024xf32, #tpu.memory_space<vmem>>, vector<128x1024xf32>,
    return
  }
  func.func @transform_0(%arg0: i32, %arg1: i32) -> (i32, i32) {
    %c0_i32 = arith.constant 0 : i32
    %c0_i32_0 = arith.constant 0 : i32
    return %arg1, %c0_i32 : i32, i32
  }
  func.func @transform_1(%arg0: i32, %arg1: i32) -> (i32, i32) {
    %c0_i32 = arith.constant 0 : i32
    %c0_i32_0 = arith.constant 0 : i32
    return %c0_i32, %arg0 : i32, i32
  }
  func.func @transform_2(%arg0: i32, %arg1: i32) -> (i32, i32) {
    %c0_i32 = arith.constant 0 : i32
    return %arg1, %arg0 : i32, i32
  }
}

module attributes {stable_mosaic.version = 11 : i64} {
  func.func @_matmul_kernel(%arg0: i32, %arg1: i32, %arg2: memref<1024x16xbf16, #tpu.memory_space<vmem>>, %arg3: memref<16x256xbf16, #tpu.memory_space<vmem>>, %arg4: memref<1024x256xf32, #tpu.memory_space<vmem>>) attributes {dimension_semantics = [#tpu.dimension_semantics<parallel>, #tpu.dimension_semantics<parallel>], iteration_bounds = array<i64: 1, 1>, scalar_prefetch = 0 : i64, scratch_operands = 0 : i64, tpu.core_type = #tpu.core_type<tc>, window_params = [{transform_indices = @transform_0, window_bounds = array<i64: 1024, 16>}, {transform_indices = @transform_1, window_bounds = array<i64: 16, 256>}, {transform_indices = @transform_2, window_bounds = array<i64: 1024, 256>}]} {
    %c0 = arith.constant 0 : index
    %c0_0 = arith.constant 0 : index
    %0 = vector.load %arg2[%c0, %c0_0] : memref<1024x16xbf16, #tpu.memory_space<vmem>>, vector<1024x16xbf16>
    %c0_1 = arith.constant 0 : index
    %c0_2 = arith.constant 0 : index
    %1 = vector.load %arg3[%c0_1, %c0_2] : memref<16x256xbf16, #tpu.memory_space<vmem>>, vector<16x256xbf16>
    %cst = arith.constant dense<0.000000e+00> : vector<1024x256xf32>
    %2 = tpu.matmul %0, %1, %cst {dimension_numbers = #tpu.dot_dimension_numbers<[1], [0], [0], [1], [0, 0, 1, 1], [], []>} : vector<1024x16xbf16>, vector<16x256xbf16>, vector<1024x256xf32> -> vector<1024x256xf32>
    %c0_3 = arith.constant 0 : index
    %c0_4 = arith.constant 0 : index
    %3 = vector.load %arg4[%c0_3, %c0_4] : memref<1024x256xf32, #tpu.memory_space<vmem>>, vector<1024x256xf32>
    tpu.vector_store %arg4[%c0_3, %c0_4], %2 {strides = array<i32>} : memref<1024x256xf32, #tpu.memory_space<vmem>>, vector<1024x256xf32>,
    return
  }
  func.func @transform_0(%arg0: i32, %arg1: i32) -> (i32, i32) {
    %c0_i32 = arith.constant 0 : i32
    %c0_i32_0 = arith.constant 0 : i32
    return %arg1, %c0_i32 : i32, i32
  }
  func.func @transform_1(%arg0: i32, %arg1: i32) -> (i32, i32) {
    %c0_i32 = arith.constant 0 : i32
    %c0_i32_0 = arith.constant 0 : i32
    return %c0_i32, %arg0 : i32, i32
  }
  func.func @transform_2(%arg0: i32, %arg1: i32) -> (i32, i32) {
    %c0_i32 = arith.constant 0 : i32
    return %arg1, %arg0 : i32, i32
  }
}

</mosaic_0001>

<llo_original>
// kernel: conv_template_forward.5
$region0: #{conv_template_forward.5}
  #allocation0 [shape = 'u32[]', space=smem, size = 0x4, offset = 0x4, fixed_abs, tag = 'smem constant byte address 0x4 - core index']
  #allocation1 [shape = 'u32[72,128]{1,0:T(1,128)}', space=vmem, size = 0x9000, scoped, tag = 'internal scratch']
  %s0 = inlined_call_operand.vmem [shape: bf16[2,32], index: 0, kind: input, shape index: {}]
  %s1 = inlined_call_operand.vmem [shape: bf16[32,64], index: 1, kind: input, shape index: {}]
  %s2 = inlined_call_operand.hbm [shape: f32[1,64], index: 2, kind: input, shape index: {}]
  %s3 = inlined_call_operand.vmem [shape: bf16[2,64], index: 3, kind: output, shape index: {}]
  %s4 = sld [smem:[#allocation0]]
  $region26: #{conv_template_forward.5} parent=0
    _
  %s6 = ssub.s32 1, %s4
  %s7 = scalar_select 0, %s6, %s4
  $region1: #{conv_template_forward.5} parent=0
    #allocation2 [shape = 'u8[512]{0}', space=vmem, size = 0x400, scoped, tag = 'input window, operand 2, single buffered']
    #allocation3 [shape = 's32[1]{0}', space=sflag, size = 0x4, scoped, tag = 'scoped memory for conv_template_forward.5']
    %8 = vsyncpa [#allocation3], 0
    // Predicated region
    $region2: #{conv_template_forward.5} parent=1 // pred_check
      _
    $region3: #{conv_template_forward.5} parent=1 // pred_check_branch
      %10 = sbr.rel (0) target = $region5
    $region4: #{conv_template_forward.5} parent=1 // pred_region
      _
    $region5: #{conv_template_forward.5} parent=1 // pred_fallthru
      _
    // Predicated region
    $region6: #{conv_template_forward.5} parent=1 // pred_check
      _
    $region7: #{conv_template_forward.5} parent=1 // pred_check_branch
      %12 = sbr.rel (0) target = $region9
    $region8: #{conv_template_forward.5} parent=1 // pred_region
      _
    $region9: #{conv_template_forward.5} parent=1 // pred_fallthru
      _
    // Predicated region
    $region10: #{conv_template_forward.5} parent=1 // pred_check
      _
    $region11: #{conv_template_forward.5} parent=1 // pred_check_branch
      %14 = sbr.rel (0) target = $region13
    $region12: #{conv_template_forward.5} parent=1 // pred_region
      %16 = vsyncadd [#allocation3], 0
      %s18 = sshll.u32 %s2, 4
      %s19 = int_to_ptr.hbm [resolvable:$true] %s18
      %s20 = sshll.u32 [#allocation2], 4
      %s21 = int_to_ptr.vmem [resolvable:$true] %s20
      %23 = dma.hbm_to_vmem [thread:$0]  %s19, 16, %s21, [#allocation3]
    $region13: #{conv_template_forward.5} parent=1 // pred_fallthru
      _
    // Predicated region
    $region14: #{conv_template_forward.5} parent=1 // pred_check
      _
    $region15: #{conv_template_forward.5} parent=1 // pred_check_branch
      %25 = sbr.rel (0) target = $region17
    $region16: #{conv_template_forward.5} parent=1 // pred_region
      %27 = dma.done [#allocation3], 16
    $region17: #{conv_template_forward.5} parent=1 // pred_fallthru
      _
    %v29 = vld [vmem:[%s0] sm:$0x1]
    %v30 = vld [vmem:[%s1] sm:$0xf]
    %v31 = vld [vmem:[%s1 + $0x4] sm:$0xf]
    %v32 = vld [vmem:[%s1 + $0x8] sm:$0xf]
    %v33 = vld [vmem:[%s1 + $0xc] sm:$0xf]
    %v34 = vld [vmem:[#allocation2] sm:$0x1]
    %v36 = vperm.slane %v34, 0
    %v42 = vunpack.c.l.b16 %v30
    %v43 = vunpack.c.l.b16 %v31
    %v44 = vunpack.c.l.b16 %v32
    %v45 = vunpack.c.l.b16 %v33
    %v46 = vpack.c.b16 %v43, %v42
    %v47 = vpack.c.b16 %v45, %v44
    %vm50 = vcmask 261120
    %v52 = vsel %vm50, %v29, 0
    %54 = vmatpush.bf16.msra.mxu0 0
    %55 = vmatpush.bf16.msra.mxu0 0
    %56 = vmatpush.bf16.msra.mxu0 0
    %57 = vmatpush.bf16.msra.mxu0 0
    %58 = vmatpush.bf16.msra.mxu0 0
    %59 = vmatpush.bf16.msra.mxu0 0
    %60 = vmatpush.bf16.msra.mxu0 %v47
    %61 = vmatpush.bf16.msra.mxu0 %v46
    %62 = vmatmul.bf16.gmra.mxu0 %v52
    %v63 = vpop.f32.mrf.mxu0
    %v64 = vadd.f32 %v36, %v63
    %v65 = vpop.f32.mrf.mxu0
    %66 = vdwg.mxu0
    %vm67 = vcmp.ge.f32.partialorder %v64, 0.0
    %v68 = vmul.f32 %v64, 0.2
    %v69 = vsel %vm67, %v64, %v68
    %v70 = vpack.c.bf16 %v69, %v69
    %vm71 = vcmask 516096
    %72 = vst.msk [vmem:[%s3] sm:$0x1] %vm71, %v70
    // Predicated region
    $region18: #{conv_template_forward.5} parent=1 // pred_check
      _
    $region19: #{conv_template_forward.5} parent=1 // pred_check_branch
      %74 = sbr.rel (0) target = $region21
    $region20: #{conv_template_forward.5} parent=1 // pred_region
      _
    $region21: #{conv_template_forward.5} parent=1 // pred_fallthru
      _
    // Predicated region
    $region22: #{conv_template_forward.5} parent=1 // pred_check
      _
    $region23: #{conv_template_forward.5} parent=1 // pred_check_branch
      %76 = sbr.rel (0) target = $region25
    $region24: #{conv_template_forward.5} parent=1 // pred_region
      _
    $region25: #{conv_template_forward.5} parent=1 // pred_fallthru
      _
    %77 = vsyncpa [#allocation3], 1

// kernel: conv_template_forward.6
$region0: #{conv_template_forward.6}
  #allocation0 [shape = 'u32[]', space=smem, size = 0x4, offset = 0x4, fixed_abs, tag = 'smem constant byte address 0x4 - core index']
  #allocation1 [shape = 'u32[72,128]{1,0:T(1,128)}', space=vmem, size = 0x9000, scoped, tag = 'internal scratch']
  %s0 = inlined_call_operand.vmem [shape: bf16[2,64], index: 0, kind: input, shape index: {}]
  %s1 = inlined_call_operand.vmem [shape: bf16[64,2048], index: 1, kind: input, shape index: {}]
  %s2 = inlined_call_operand.vmem [shape: f32[2,2048], index: 2, kind: output, shape index: {}]
  %s3 = sld [smem:[#allocation0]]
  $region18: #{conv_template_forward.6} parent=0
    _
  %s5 = ssub.s32 1, %s3
  %s6 = scalar_select 0, %s5, %s3
  // Predicated region
  $region2: #{conv_template_forward.6} parent=0 // pred_check
    _
  $region3: #{conv_template_forward.6} parent=0 // pred_check_branch
    %8 = sbr.rel (0) target = $region5
  $region4: #{conv_template_forward.6} parent=0 // pred_region
    _
  $region5: #{conv_template_forward.6} parent=0 // pred_fallthru
    _
  // Predicated region
  $region6: #{conv_template_forward.6} parent=0 // pred_check
    _
  $region7: #{conv_template_forward.6} parent=0 // pred_check_branch
    %10 = sbr.rel (0) target = $region9
  $region8: #{conv_template_forward.6} parent=0 // pred_region
    _
  $region9: #{conv_template_forward.6} parent=0 // pred_fallthru
    _
  %v12 = vld [vmem:[%s0] sm:$0x1]
  %v13 = vld [vmem:[%s1] sm:$0xff]
  %v14 = vld [vmem:[%s1 + $0x8] sm:$0xff]
  %v15 = vld [vmem:[%s1 + $0x10] sm:$0xff]
  %v16 = vld [vmem:[%s1 + $0x18] sm:$0xff]
  %v17 = vld [vmem:[%s1 + $0x20] sm:$0xff]
  %v18 = vld [vmem:[%s1 + $0x28] sm:$0xff]
  %v19 = vld [vmem:[%s1 + $0x30] sm:$0xff]
  %v20 = vld [vmem:[%s1 + $0x38] sm:$0xff]
  %v21 = vld [vmem:[%s1 + $0x40] sm:$0xff]
  %v22 = vld [vmem:[%s1 + $0x48] sm:$0xff]
  %v23 = vld [vmem:[%s1 + $0x50] sm:$0xff]
  %v24 = vld [vmem:[%s1 + $0x58] sm:$0xff]
  %v25 = vld [vmem:[%s1 + $0x60] sm:$0xff]
  %v26 = vld [vmem:[%s1 + $0x68] sm:$0xff]
  %v27 = vld [vmem:[%s1 + $0x70] sm:$0xff]
  %v28 = vld [vmem:[%s1 + $0x78] sm:$0xff]
  %v29 = vld [vmem:[%s1 + $0x80] sm:$0xff]
  %v30 = vld [vmem:[%s1 + $0x88] sm:$0xff]
  %v31 = vld [vmem:[%s1 + $0x90] sm:$0xff]
  %v32 = vld [vmem:[%s1 + $0x98] sm:$0xff]
  %v33 = vld [vmem:[%s1 + $0xa0] sm:$0xff]
  %v34 = vld [vmem:[%s1 + $0xa8] sm:$0xff]
  %v35 = vld [vmem:[%s1 + $0xb0] sm:$0xff]
  %v36 = vld [vmem:[%s1 + $0xb8] sm:$0xff]
  %v37 = vld [vmem:[%s1 + $0xc0] sm:$0xff]
  %v38 = vld [vmem:[%s1 + $0xc8] sm:$0xff]
  %v39 = vld [vmem:[%s1 + $0xd0] sm:$0xff]
  %v40 = vld [vmem:[%s1 + $0xd8] sm:$0xff]
  %v41 = vld [vmem:[%s1 + $0xe0] sm:$0xff]
  %v42 = vld [vmem:[%s1 + $0xe8] sm:$0xff]
  %v43 = vld [vmem:[%s1 + $0xf0] sm:$0xff]
  %v44 = vld [vmem:[%s1 + $0xf8] sm:$0xff]
  %v45 = vld [vmem:[%s1 + $0x100] sm:$0xff]
  %v46 = vld [vmem:[%s1 + $0x108] sm:$0xff]
  %v47 = vld [vmem:[%s1 + $0x110] sm:$0xff]
  %v48 = vld [vmem:[%s1 + $0x118] sm:$0xff]
  %v49 = vld [vmem:[%s1 + $0x120] sm:$0xff]
  %v50 = vld [vmem:[%s1 + $0x128] sm:$0xff]
  %v51 = vld [vmem:[%s1 + $0x130] sm:$0xff]
  %v52 = vld [vmem:[%s1 + $0x138] sm:$0xff]
  %v53 = vld [vmem:[%s1 + $0x140] sm:$0xff]
  %v54 = vld [vmem:[%s1 + $0x148] sm:$0xff]
  %v55 = vld [vmem:[%s1 + $0x150] sm:$0xff]
  %v56 = vld [vmem:[%s1 + $0x158] sm:$0xff]
  %v57 = vld [vmem:[%s1 + $0x160] sm:$0xff]
  %v58 = vld [vmem:[%s1 + $0x168] sm:$0xff]
  %v59 = vld [vmem:[%s1 + $0x170] sm:$0xff]
  %v60 = vld [vmem:[%s1 + $0x178] sm:$0xff]
  %v61 = vld [vmem:[%s1 + $0x180] sm:$0xff]
  %v62 = vld [vmem:[%s1 + $0x188] sm:$0xff]
  %v63 = vld [vmem:[%s1 + $0x190] sm:$0xff]
  %v64 = vld [vmem:[%s1 + $0x198] sm:$0xff]
  %v65 = vld [vmem:[%s1 + $0x1a0] sm:$0xff]
  %v66 = vld [vmem:[%s1 + $0x1a8] sm:$0xff]
  %v67 = vld [vmem:[%s1 + $0x1b0] sm:$0xff]
  %v68 = vld [vmem:[%s1 + $0x1b8] sm:$0xff]
  %v69 = vld [vmem:[%s1 + $0x1c0] sm:$0xff]
  %v70 = vld [vmem:[%s1 + $0x1c8] sm:$0xff]
  %v71 = vld [vmem:[%s1 + $0x1d0] sm:$0xff]
  %v72 = vld [vmem:[%s1 + $0x1d8] sm:$0xff]
  %v73 = vld [vmem:[%s1 + $0x1e0] sm:$0xff]
  %v74 = vld [vmem:[%s1 + $0x1e8] sm:$0xff]
  %v75 = vld [vmem:[%s1 + $0x1f0] sm:$0xff]
  %v76 = vld [vmem:[%s1 + $0x1f8] sm:$0xff]
  %v141 = vunpack.c.l.b16 %v13
  %v142 = vunpack.c.h.b16 %v13
  %v143 = vunpack.c.l.b16 %v14
  %v144 = vunpack.c.h.b16 %v14
  %v145 = vunpack.c.l.b16 %v15
  %v146 = vunpack.c.h.b16 %v15
  %v147 = vunpack.c.l.b16 %v16
  %v148 = vunpack.c.h.b16 %v16
  %v149 = vunpack.c.l.b16 %v17
  %v150 = vunpack.c.h.b16 %v17
  %v151 = vunpack.c.l.b16 %v18
  %v152 = vunpack.c.h.b16 %v18
  %v153 = vunpack.c.l.b16 %v19
  %v154 = vunpack.c.h.b16 %v19
  %v155 = vunpack.c.l.b16 %v20
  %v156 = vunpack.c.h.b16 %v20
  %v157 = vunpack.c.l.b16 %v21
  %v158 = vunpack.c.h.b16 %v21
  %v159 = vunpack.c.l.b16 %v22
  %v160 = vunpack.c.h.b16 %v22
  %v161 = vunpack.c.l.b16 %v23
  %v162 = vunpack.c.h.b16 %v23
  %v163 = vunpack.c.l.b16 %v24
  %v164 = vunpack.c.h.b16 %v24
  %v165 = vunpack.c.l.b16 %v25
  %v166 = vunpack.c.h.b16 %v25
  %v167 = vunpack.c.l.b16 %v26
  %v168 = vunpack.c.h.b16 %v26
  %v169 = vunpack.c.l.b16 %v27
  %v170 = vunpack.c.h.b16 %v27
  %v171 = vunpack.c.l.b16 %v28
  %v172 = vunpack.c.h.b16 %v28
  %v173 = vunpack.c.l.b16 %v29
  %v174 = vunpack.c.h.b16 %v29
  %v175 = vunpack.c.l.b16 %v30
  %v176 = vunpack.c.h.b16 %v30
  %v177 = vunpack.c.l.b16 %v31
  %v178 = vunpack.c.h.b16 %v31
  %v179 = vunpack.c.l.b16 %v32
  %v180 = vunpack.c.h.b16 %v32
  %v181 = vunpack.c.l.b16 %v33
  %v182 = vunpack.c.h.b16 %v33
  %v183 = vunpack.c.l.b16 %v34
  %v184 = vunpack.c.h.b16 %v34
  %v185 = vunpack.c.l.b16 %v35
  %v186 = vunpack.c.h.b16 %v35
  %v187 = vunpack.c.l.b16 %v36
  %v188 = vunpack.c.h.b16 %v36
  %v189 = vunpack.c.l.b16 %v37
  %v190 = vunpack.c.h.b16 %v37
  %v191 = vunpack.c.l.b16 %v38
  %v192 = vunpack.c.h.b16 %v38
  %v193 = vunpack.c.l.b16 %v39
  %v194 = vunpack.c.h.b16 %v39
  %v195 = vunpack.c.l.b16 %v40
  %v196 = vunpack.c.h.b16 %v40
  %v197 = vunpack.c.l.b16 %v41
  %v198 = vunpack.c.h.b16 %v41
  %v199 = vunpack.c.l.b16 %v42
  %v200 = vunpack.c.h.b16 %v42
  %v201 = vunpack.c.l.b16 %v43
  %v202 = vunpack.c.h.b16 %v43
  %v203 = vunpack.c.l.b16 %v44
  %v204 = vunpack.c.h.b16 %v44
  %v205 = vunpack.c.l.b16 %v45
  %v206 = vunpack.c.h.b16 %v45
  %v207 = vunpack.c.l.b16 %v46
  %v208 = vunpack.c.h.b16 %v46
  %v209 = vunpack.c.l.b16 %v47
  %v210 = vunpack.c.h.b16 %v47
  %v211 = vunpack.c.l.b16 %v48
  %v212 = vunpack.c.h.b16 %v48
  %v213 = vunpack.c.l.b16 %v49
  %v214 = vunpack.c.h.b16 %v49
  %v215 = vunpack.c.l.b16 %v50
  %v216 = vunpack.c.h.b16 %v50
  %v217 = vunpack.c.l.b16 %v51
  %v218 = vunpack.c.h.b16 %v51
  %v219 = vunpack.c.l.b16 %v52
  %v220 = vunpack.c.h.b16 %v52
  %v221 = vunpack.c.l.b16 %v53
  %v222 = vunpack.c.h.b16 %v53
  %v223 = vunpack.c.l.b16 %v54
  %v224 = vunpack.c.h.b16 %v54
  %v225 = vunpack.c.l.b16 %v55
  %v226 = vunpack.c.h.b16 %v55
  %v227 = vunpack.c.l.b16 %v56
  %v228 = vunpack.c.h.b16 %v56
  %v229 = vunpack.c.l.b16 %v57
  %v230 = vunpack.c.h.b16 %v57
  %v231 = vunpack.c.l.b16 %v58
  %v232 = vunpack.c.h.b16 %v58
  %v233 = vunpack.c.l.b16 %v59
  %v234 = vunpack.c.h.b16 %v59
  %v235 = vunpack.c.l.b16 %v60
  %v236 = vunpack.c.h.b16 %v60
  %v237 = vunpack.c.l.b16 %v61
  %v238 = vunpack.c.h.b16 %v61
  %v239 = vunpack.c.l.b16 %v62
  %v240 = vunpack.c.h.b16 %v62
  %v241 = vunpack.c.l.b16 %v63
  %v242 = vunpack.c.h.b16 %v63
  %v243 = vunpack.c.l.b16 %v64
  %v244 = vunpack.c.h.b16 %v64
  %v245 = vunpack.c.l.b16 %v65
  %v246 = vunpack.c.h.b16 %v65
  %v247 = vunpack.c.l.b16 %v66
  %v248 = vunpack.c.h.b16 %v66
  %v249 = vunpack.c.l.b16 %v67
  %v250 = vunpack.c.h.b16 %v67
  %v251 = vunpack.c.l.b16 %v68
  %v252 = vunpack.c.h.b16 %v68
  %v253 = vunpack.c.l.b16 %v69
  %v254 = vunpack.c.h.b16 %v69
  %v255 = vunpack.c.l.b16 %v70
  %v256 = vunpack.c.h.b16 %v70
  %v257 = vunpack.c.l.b16 %v71
  %v258 = vunpack.c.h.b16 %v71
  %v259 = vunpack.c.l.b16 %v72
  %v260 = vunpack.c.h.b16 %v72
  %v261 = vunpack.c.l.b16 %v73
  %v262 = vunpack.c.h.b16 %v73
  %v263 = vunpack.c.l.b16 %v74
  %v264 = vunpack.c.h.b16 %v74
  %v265 = vunpack.c.l.b16 %v75
  %v266 = vunpack.c.h.b16 %v75
  %v267 = vunpack.c.l.b16 %v76
  %v268 = vunpack.c.h.b16 %v76
  %v269 = vpack.c.b16 %v157, %v141
  %v270 = vpack.c.b16 %v158, %v142
  %v271 = vpack.c.b16 %v159, %v143
  %v272 = vpack.c.b16 %v160, %v144
  %v273 = vpack.c.b16 %v161, %v145
  %v274 = vpack.c.b16 %v162, %v146
  %v275 = vpack.c.b16 %v163, %v147
  %v276 = vpack.c.b16 %v164, %v148
  %v277 = vpack.c.b16 %v165, %v149
  %v278 = vpack.c.b16 %v166, %v150
  %v279 = vpack.c.b16 %v167, %v151
  %v280 = vpack.c.b16 %v168, %v152
  %v281 = vpack.c.b16 %v169, %v153
  %v282 = vpack.c.b16 %v170, %v154
  %v283 = vpack.c.b16 %v171, %v155
  %v284 = vpack.c.b16 %v172, %v156
  %v285 = vpack.c.b16 %v189, %v173
  %v286 = vpack.c.b16 %v190, %v174
  %v287 = vpack.c.b16 %v191, %v175
  %v288 = vpack.c.b16 %v192, %v176
  %v289 = vpack.c.b16 %v193, %v177
  %v290 = vpack.c.b16 %v194, %v178
  %v291 = vpack.c.b16 %v195, %v179
  %v292 = vpack.c.b16 %v196, %v180
  %v293 = vpack.c.b16 %v197, %v181
  %v294 = vpack.c.b16 %v198, %v182
  %v295 = vpack.c.b16 %v199, %v183
  %v296 = vpack.c.b16 %v200, %v184
  %v297 = vpack.c.b16 %v201, %v185
  %v298 = vpack.c.b16 %v202, %v186
  %v299 = vpack.c.b16 %v203, %v187
  %v300 = vpack.c.b16 %v204, %v188
  %v301 = vpack.c.b16 %v221, %v205
  %v302 = vpack.c.b16 %v222, %v206
  %v303 = vpack.c.b16 %v223, %v207
  %v304 = vpack.c.b16 %v224, %v208
  %v305 = vpack.c.b16 %v225, %v209
  %v306 = vpack.c.b16 %v226, %v210
  %v307 = vpack.c.b16 %v227, %v211
  %v308 = vpack.c.b16 %v228, %v212
  %v309 = vpack.c.b16 %v229, %v213
  %v310 = vpack.c.b16 %v230, %v214
  %v311 = vpack.c.b16 %v231, %v215
  %v312 = vpack.c.b16 %v232, %v216
  %v313 = vpack.c.b16 %v233, %v217
  %v314 = vpack.c.b16 %v234, %v218
  %v315 = vpack.c.b16 %v235, %v219
  %v316 = vpack.c.b16 %v236, %v220
  %v317 = vpack.c.b16 %v253, %v237
  %v318 = vpack.c.b16 %v254, %v238
  %v319 = vpack.c.b16 %v255, %v239
  %v320 = vpack.c.b16 %v256, %v240
  %v321 = vpack.c.b16 %v257, %v241
  %v322 = vpack.c.b16 %v258, %v242
  %v323 = vpack.c.b16 %v259, %v243
  %v324 = vpack.c.b16 %v260, %v244
  %v325 = vpack.c.b16 %v261, %v245
  %v326 = vpack.c.b16 %v262, %v246
  %v327 = vpack.c.b16 %v263, %v247
  %v328 = vpack.c.b16 %v264, %v248
  %v329 = vpack.c.b16 %v265, %v249
  %v330 = vpack.c.b16 %v266, %v250
  %v331 = vpack.c.b16 %v267, %v251
  %v332 = vpack.c.b16 %v268, %v252
  %vm397 = vcmask 523264
  %v399 = vsel %vm397, %v12, 0
  %401 = vmatpush.bf16.msra.mxu0 0
  %402 = vmatpush.bf16.msra.mxu0 0
  %403 = vmatpush.bf16.msra.mxu0 0
  %404 = vmatpush.bf16.msra.mxu0 0
  %405 = vmatpush.bf16.msra.mxu0 %v317
  %406 = vmatpush.bf16.msra.mxu0 %v301
  %407 = vmatpush.bf16.msra.mxu0 %v285
  %408 = vmatpush.bf16.msra.mxu0 %v269
  %409 = vmatmul.bf16.gmra.mxu0 %v399
  %v410 = vpop.f32.mrf.mxu0
  %v411 = vadd.f32 0.0, %v410
  %v412 = vpop.f32.mrf.mxu0
  %413 = vdwg.mxu0
  %414 = vmatpush.bf16.msra.mxu0 0
  %415 = vmatpush.bf16.msra.mxu0 0
  %416 = vmatpush.bf16.msra.mxu0 0
  %417 = vmatpush.bf16.msra.mxu0 0
  %418 = vmatpush.bf16.msra.mxu0 %v318
  %419 = vmatpush.bf16.msra.mxu0 %v302
  %420 = vmatpush.bf16.msra.mxu0 %v286
  %421 = vmatpush.bf16.msra.mxu0 %v270
  %422 = vmatmul.bf16.gmra.mxu0 %v399
  %v423 = vpop.f32.mrf.mxu0
  %v424 = vadd.f32 0.0, %v423
  %v425 = vpop.f32.mrf.mxu0
  %426 = vdwg.mxu0
  %427 = vmatpush.bf16.msra.mxu0 0
  %428 = vmatpush.bf16.msra.mxu0 0
  %429 = vmatpush.bf16.msra.mxu0 0
  %430 = vmatpush.bf16.msra.mxu0 0
  %431 = vmatpush.bf16.msra.mxu0 %v319
  %432 = vmatpush.bf16.msra.mxu0 %v303
  %433 = vmatpush.bf16.msra.mxu0 %v287
  %434 = vmatpush.bf16.msra.mxu0 %v271
  %435 = vmatmul.bf16.gmra.mxu0 %v399
  %v436 = vpop.f32.mrf.mxu0
  %v437 = vadd.f32 0.0, %v436
  %v438 = vpop.f32.mrf.mxu0
  %439 = vdwg.mxu0
  %440 = vmatpush.bf16.msra.mxu0 0
  %441 = vmatpush.bf16.msra.mxu0 0
  %442 = vmatpush.bf16.msra.mxu0 0
  %443 = vmatpush.bf16.msra.mxu0 0
  %444 = vmatpush.bf16.msra.mxu0 %v320
  %445 = vmatpush.bf16.msra.mxu0 %v304
  %446 = vmatpush.bf16.msra.mxu0 %v288
  %447 = vmatpush.bf16.msra.mxu0 %v272
  %448 = vmatmul.bf16.gmra.mxu0 %v399
  %v449 = vpop.f32.mrf.mxu0
  %v450 = vadd.f32 0.0, %v449
  %v451 = vpop.f32.mrf.mxu0
  %452 = vdwg.mxu0
  %453 = vmatpush.bf16.msra.mxu0 0
  %454 = vmatpush.bf16.msra.mxu0 0
  %455 = vmatpush.bf16.msra.mxu0 0
  %456 = vmatpush.bf16.msra.mxu0 0
  %457 = vmatpush.bf16.msra.mxu0 %v321
  %458 = vmatpush.bf16.msra.mxu0 %v305
  %459 = vmatpush.bf16.msra.mxu0 %v289
  %460 = vmatpush.bf16.msra.mxu0 %v273
  %461 = vmatmul.bf16.gmra.mxu0 %v399
  %v462 = vpop.f32.mrf.mxu0
  %v463 = vadd.f32 0.0, %v462
  %v464 = vpop.f32.mrf.mxu0
  %465 = vdwg.mxu0
  %466 = vmatpush.bf16.msra.mxu0 0
  %467 = vmatpush.bf16.msra.mxu0 0
  %468 = vmatpush.bf16.msra.mxu0 0
  %469 = vmatpush.bf16.msra.mxu0 0
  %470 = vmatpush.bf16.msra.mxu0 %v322
  %471 = vmatpush.bf16.msra.mxu0 %v306
  %472 = vmatpush.bf16.msra.mxu0 %v290
  %473 = vmatpush.bf16.msra.mxu0 %v274
  %474 = vmatmul.bf16.gmra.mxu0 %v399
  %v475 = vpop.f32.mrf.mxu0
  %v476 = vadd.f32 0.0, %v475
  %v477 = vpop.f32.mrf.mxu0
  %478 = vdwg.mxu0
  %479 = vmatpush.bf16.msra.mxu0 0
  %480 = vmatpush.bf16.msra.mxu0 0
  %481 = vmatpush.bf16.msra.mxu0 0
  %482 = vmatpush.bf16.msra.mxu0 0
  %483 = vmatpush.bf16.msra.mxu0 %v323
  %484 = vmatpush.bf16.msra.mxu0 %v307
  %485 = vmatpush.bf16.msra.mxu0 %v291
  %486 = vmatpush.bf16.msra.mxu0 %v275
  %487 = vmatmul.bf16.gmra.mxu0 %v399
  %v488 = vpop.f32.mrf.mxu0
  %v489 = vadd.f32 0.0, %v488
  %v490 = vpop.f32.mrf.mxu0
  %491 = vdwg.mxu0
  %492 = vmatpush.bf16.msra.mxu0 0
  %493 = vmatpush.bf16.msra.mxu0 0
  %494 = vmatpush.bf16.msra.mxu0 0
  %495 = vmatpush.bf16.msra.mxu0 0
  %496 = vmatpush.bf16.msra.mxu0 %v324
  %497 = vmatpush.bf16.msra.mxu0 %v308
  %498 = vmatpush.bf16.msra.mxu0 %v292
  %499 = vmatpush.bf16.msra.mxu0 %v276
  %500 = vmatmul.bf16.gmra.mxu0 %v399
  %v501 = vpop.f32.mrf.mxu0
  %v502 = vadd.f32 0.0, %v501
  %v503 = vpop.f32.mrf.mxu0
  %504 = vdwg.mxu0
  %505 = vmatpush.bf16.msra.mxu0 0
  %506 = vmatpush.bf16.msra.mxu0 0
  %507 = vmatpush.bf16.msra.mxu0 0
  %508 = vmatpush.bf16.msra.mxu0 0
  %509 = vmatpush.bf16.msra.mxu0 %v325
  %510 = vmatpush.bf16.msra.mxu0 %v309
  %511 = vmatpush.bf16.msra.mxu0 %v293
  %512 = vmatpush.bf16.msra.mxu0 %v277
  %513 = vmatmul.bf16.gmra.mxu0 %v399
  %v514 = vpop.f32.mrf.mxu0
  %v515 = vadd.f32 0.0, %v514
  %v516 = vpop.f32.mrf.mxu0
  %517 = vdwg.mxu0
  %518 = vmatpush.bf16.msra.mxu0 0
  %519 = vmatpush.bf16.msra.mxu0 0
  %520 = vmatpush.bf16.msra.mxu0 0
  %521 = vmatpush.bf16.msra.mxu0 0
  %522 = vmatpush.bf16.msra.mxu0 %v326
  %523 = vmatpush.bf16.msra.mxu0 %v310
  %524 = vmatpush.bf16.msra.mxu0 %v294
  %525 = vmatpush.bf16.msra.mxu0 %v278
  %526 = vmatmul.bf16.gmra.mxu0 %v399
  %v527 = vpop.f32.mrf.mxu0
  %v528 = vadd.f32 0.0, %v527
  %v529 = vpop.f32.mrf.mxu0
  %530 = vdwg.mxu0
  %531 = vmatpush.bf16.msra.mxu0 0
  %532 = vmatpush.bf16.msra.mxu0 0
  %533 = vmatpush.bf16.msra.mxu0 0
  %534 = vmatpush.bf16.msra.mxu0 0
  %535 = vmatpush.bf16.msra.mxu0 %v327
  %536 = vmatpush.bf16.msra.mxu0 %v311
  %537 = vmatpush.bf16.msra.mxu0 %v295
  %538 = vmatpush.bf16.msra.mxu0 %v279
  %539 = vmatmul.bf16.gmra.mxu0 %v399
  %v540 = vpop.f32.mrf.mxu0
  %v541 = vadd.f32 0.0, %v540
  %v542 = vpop.f32.mrf.mxu0
  %543 = vdwg.mxu0
  %544 = vmatpush.bf16.msra.mxu0 0
  %545 = vmatpush.bf16.msra.mxu0 0
  %546 = vmatpush.bf16.msra.mxu0 0
  %547 = vmatpush.bf16.msra.mxu0 0
  %548 = vmatpush.bf16.msra.mxu0 %v328
  %549 = vmatpush.bf16.msra.mxu0 %v312
  %550 = vmatpush.bf16.msra.mxu0 %v296
  %551 = vmatpush.bf16.msra.mxu0 %v280
  %552 = vmatmul.bf16.gmra.mxu0 %v399
  %v553 = vpop.f32.mrf.mxu0
  %v554 = vadd.f32 0.0, %v553
  %v555 = vpop.f32.mrf.mxu0
  %556 = vdwg.mxu0
  %557 = vmatpush.bf16.msra.mxu0 0
  %558 = vmatpush.bf16.msra.mxu0 0
  %559 = vmatpush.bf16.msra.mxu0 0
  %560 = vmatpush.bf16.msra.mxu0 0
  %561 = vmatpush.bf16.msra.mxu0 %v329
  %562 = vmatpush.bf16.msra.mxu0 %v313
  %563 = vmatpush.bf16.msra.mxu0 %v297
  %564 = vmatpush.bf16.msra.mxu0 %v281
  %565 = vmatmul.bf16.gmra.mxu0 %v399
  %v566 = vpop.f32.mrf.mxu0
  %v567 = vadd.f32 0.0, %v566
  %v568 = vpop.f32.mrf.mxu0
  %569 = vdwg.mxu0
  %570 = vmatpush.bf16.msra.mxu0 0
  %571 = vmatpush.bf16.msra.mxu0 0
  %572 = vmatpush.bf16.msra.mxu0 0
  %573 = vmatpush.bf16.msra.mxu0 0
  %574 = vmatpush.bf16.msra.mxu0 %v330
  %575 = vmatpush.bf16.msra.mxu0 %v314
  %576 = vmatpush.bf16.msra.mxu0 %v298
  %577 = vmatpush.bf16.msra.mxu0 %v282
  %578 = vmatmul.bf16.gmra.mxu0 %v399
  %v579 = vpop.f32.mrf.mxu0
  %v580 = vadd.f32 0.0, %v579
  %v581 = vpop.f32.mrf.mxu0
  %582 = vdwg.mxu0
  %583 = vmatpush.bf16.msra.mxu0 0
  %584 = vmatpush.bf16.msra.mxu0 0
  %585 = vmatpush.bf16.msra.mxu0 0
  %586 = vmatpush.bf16.msra.mxu0 0
  %587 = vmatpush.bf16.msra.mxu0 %v331
  %588 = vmatpush.bf16.msra.mxu0 %v315
  %589 = vmatpush.bf16.msra.mxu0 %v299
  %590 = vmatpush.bf16.msra.mxu0 %v283
  %591 = vmatmul.bf16.gmra.mxu0 %v399
  %v592 = vpop.f32.mrf.mxu0
  %v593 = vadd.f32 0.0, %v592
  %v594 = vpop.f32.mrf.mxu0
  %595 = vdwg.mxu0
  %596 = vmatpush.bf16.msra.mxu0 0
  %597 = vmatpush.bf16.msra.mxu0 0
  %598 = vmatpush.bf16.msra.mxu0 0
  %599 = vmatpush.bf16.msra.mxu0 0
  %600 = vmatpush.bf16.msra.mxu0 %v332
  %601 = vmatpush.bf16.msra.mxu0 %v316
  %602 = vmatpush.bf16.msra.mxu0 %v300
  %603 = vmatpush.bf16.msra.mxu0 %v284
  %604 = vmatmul.bf16.gmra.mxu0 %v399
  %v605 = vpop.f32.mrf.mxu0
  %v606 = vadd.f32 0.0, %v605
  %v607 = vpop.f32.mrf.mxu0
  %608 = vdwg.mxu0
  %v625 = vrot.slane %v424, 6
  %v626 = vrot.slane %v437, 4
  %v627 = vrot.slane %v450, 2
  %v628 = vrot.slane %v476, 6
  %v629 = vrot.slane %v489, 4
  %v630 = vrot.slane %v502, 2
  %v631 = vrot.slane %v528, 6
  %v632 = vrot.slane %v541, 4
  %v633 = vrot.slane %v554, 2
  %v634 = vrot.slane %v580, 6
  %v635 = vrot.slane %v593, 4
  %v636 = vrot.slane %v606, 2
  %vm637 = vcmask 1041408
  %v638 = vsel %vm637, %v411, %v625
  %vm639 = vcmask 1045508
  %v640 = vsel %vm639, %v626, %v627
  %vm641 = vcmask 1043456
  %v642 = vsel %vm641, %v638, %v640
  %v643 = vsel %vm637, %v463, %v628
  %v644 = vsel %vm639, %v629, %v630
  %v645 = vsel %vm641, %v643, %v644
  %v646 = vsel %vm637, %v515, %v631
  %v647 = vsel %vm639, %v632, %v633
  %v648 = vsel %vm641, %v646, %v647
  %v649 = vsel %vm637, %v567, %v634
  %v650 = vsel %vm639, %v635, %v636
  %v651 = vsel %vm641, %v649, %v650
  %656 = vst [vmem:[%s2] sm:$0xff] %v642
  %657 = vst [vmem:[%s2 + $0x8] sm:$0xff] %v645
  %658 = vst [vmem:[%s2 + $0x10] sm:$0xff] %v648
  %659 = vst [vmem:[%s2 + $0x18] sm:$0xff] %v651
  // Predicated region
  $region10: #{conv_template_forward.6} parent=0 // pred_check
    _
  $region11: #{conv_template_forward.6} parent=0 // pred_check_branch
    %661 = sbr.rel (0) target = $region13
  $region12: #{conv_template_forward.6} parent=0 // pred_region
    _
  $region13: #{conv_template_forward.6} parent=0 // pred_fallthru
    _
  // Predicated region
  $region14: #{conv_template_forward.6} parent=0 // pred_check
    _
  $region15: #{conv_template_forward.6} parent=0 // pred_check_branch
    %663 = sbr.rel (0) target = $region17
  $region16: #{conv_template_forward.6} parent=0 // pred_region
    _
  $region17: #{conv_template_forward.6} parent=0 // pred_fallthru
    _

// kernel: conv_template_forward.7
$region0: #{conv_template_forward.7}
  #allocation0 [shape = 'u32[]', space=smem, size = 0x4, offset = 0x4, fixed_abs, tag = 'smem constant byte address 0x4 - core index']
  #allocation1 [shape = 'u32[72,128]{1,0:T(1,128)}', space=vmem, size = 0x9000, scoped, tag = 'internal scratch']
  %s0 = inlined_call_operand.vmem [shape: bf16[16,32], index: 0, kind: input, shape index: {}]
  %s1 = inlined_call_operand.vmem [shape: bf16[32,2048], index: 1, kind: input, shape index: {}]
  %s2 = inlined_call_operand.vmem [shape: f32[16,2048], index: 2, kind: output, shape index: {}]
  %s3 = sld [smem:[#allocation0]]
  $region18: #{conv_template_forward.7} parent=0
    _
  %s5 = ssub.s32 1, %s3
  %s6 = scalar_select 0, %s5, %s3
  // Predicated region
  $region2: #{conv_template_forward.7} parent=0 // pred_check
    _
  $region3: #{conv_template_forward.7} parent=0 // pred_check_branch
    %8 = sbr.rel (0) target = $region5
  $region4: #{conv_template_forward.7} parent=0 // pred_region
    _
  $region5: #{conv_template_forward.7} parent=0 // pred_fallthru
    _
  // Predicated region
  $region6: #{conv_template_forward.7} parent=0 // pred_check
    _
  $region7: #{conv_template_forward.7} parent=0 // pred_check_branch
    %10 = sbr.rel (0) target = $region9
  $region8: #{conv_template_forward.7} parent=0 // pred_region
    _
  $region9: #{conv_template_forward.7} parent=0 // pred_fallthru
    _
  %v12 = vld [vmem:[%s0] sm:$0xf]
  %v13 = vld [vmem:[%s0 + $0x4] sm:$0xf]
  %v14 = vld [vmem:[%s1] sm:$0xff]
  %v15 = vld [vmem:[%s1 + $0x8] sm:$0xff]
  %v16 = vld [vmem:[%s1 + $0x10] sm:$0xff]
  %v17 = vld [vmem:[%s1 + $0x18] sm:$0xff]
  %v18 = vld [vmem:[%s1 + $0x20] sm:$0xff]
  %v19 = vld [vmem:[%s1 + $0x28] sm:$0xff]
  %v20 = vld [vmem:[%s1 + $0x30] sm:$0xff]
  %v21 = vld [vmem:[%s1 + $0x38] sm:$0xff]
  %v22 = vld [vmem:[%s1 + $0x40] sm:$0xff]
  %v23 = vld [vmem:[%s1 + $0x48] sm:$0xff]
  %v24 = vld [vmem:[%s1 + $0x50] sm:$0xff]
  %v25 = vld [vmem:[%s1 + $0x58] sm:$0xff]
  %v26 = vld [vmem:[%s1 + $0x60] sm:$0xff]
  %v27 = vld [vmem:[%s1 + $0x68] sm:$0xff]
  %v28 = vld [vmem:[%s1 + $0x70] sm:$0xff]
  %v29 = vld [vmem:[%s1 + $0x78] sm:$0xff]
  %v30 = vld [vmem:[%s1 + $0x80] sm:$0xff]
  %v31 = vld [vmem:[%s1 + $0x88] sm:$0xff]
  %v32 = vld [vmem:[%s1 + $0x90] sm:$0xff]
  %v33 = vld [vmem:[%s1 + $0x98] sm:$0xff]
  %v34 = vld [vmem:[%s1 + $0xa0] sm:$0xff]
  %v35 = vld [vmem:[%s1 + $0xa8] sm:$0xff]
  %v36 = vld [vmem:[%s1 + $0xb0] sm:$0xff]
  %v37 = vld [vmem:[%s1 + $0xb8] sm:$0xff]
  %v38 = vld [vmem:[%s1 + $0xc0] sm:$0xff]
  %v39 = vld [vmem:[%s1 + $0xc8] sm:$0xff]
  %v40 = vld [vmem:[%s1 + $0xd0] sm:$0xff]
  %v41 = vld [vmem:[%s1 + $0xd8] sm:$0xff]
  %v42 = vld [vmem:[%s1 + $0xe0] sm:$0xff]
  %v43 = vld [vmem:[%s1 + $0xe8] sm:$0xff]
  %v44 = vld [vmem:[%s1 + $0xf0] sm:$0xff]
  %v45 = vld [vmem:[%s1 + $0xf8] sm:$0xff]
  %v48 = vunpack.c.l.b16 %v12
  %v49 = vunpack.c.l.b16 %v13
  %v50 = vpack.c.b16 %v49, %v48
  %v83 = vunpack.c.l.b16 %v14
  %v84 = vunpack.c.h.b16 %v14
  %v85 = vunpack.c.l.b16 %v15
  %v86 = vunpack.c.h.b16 %v15
  %v87 = vunpack.c.l.b16 %v16
  %v88 = vunpack.c.h.b16 %v16
  %v89 = vunpack.c.l.b16 %v17
  %v90 = vunpack.c.h.b16 %v17
  %v91 = vunpack.c.l.b16 %v18
  %v92 = vunpack.c.h.b16 %v18
  %v93 = vunpack.c.l.b16 %v19
  %v94 = vunpack.c.h.b16 %v19
  %v95 = vunpack.c.l.b16 %v20
  %v96 = vunpack.c.h.b16 %v20
  %v97 = vunpack.c.l.b16 %v21
  %v98 = vunpack.c.h.b16 %v21
  %v99 = vunpack.c.l.b16 %v22
  %v100 = vunpack.c.h.b16 %v22
  %v101 = vunpack.c.l.b16 %v23
  %v102 = vunpack.c.h.b16 %v23
  %v103 = vunpack.c.l.b16 %v24
  %v104 = vunpack.c.h.b16 %v24
  %v105 = vunpack.c.l.b16 %v25
  %v106 = vunpack.c.h.b16 %v25
  %v107 = vunpack.c.l.b16 %v26
  %v108 = vunpack.c.h.b16 %v26
  %v109 = vunpack.c.l.b16 %v27
  %v110 = vunpack.c.h.b16 %v27
  %v111 = vunpack.c.l.b16 %v28
  %v112 = vunpack.c.h.b16 %v28
  %v113 = vunpack.c.l.b16 %v29
  %v114 = vunpack.c.h.b16 %v29
  %v115 = vunpack.c.l.b16 %v30
  %v116 = vunpack.c.h.b16 %v30
  %v117 = vunpack.c.l.b16 %v31
  %v118 = vunpack.c.h.b16 %v31
  %v119 = vunpack.c.l.b16 %v32
  %v120 = vunpack.c.h.b16 %v32
  %v121 = vunpack.c.l.b16 %v33
  %v122 = vunpack.c.h.b16 %v33
  %v123 = vunpack.c.l.b16 %v34
  %v124 = vunpack.c.h.b16 %v34
  %v125 = vunpack.c.l.b16 %v35
  %v126 = vunpack.c.h.b16 %v35
  %v127 = vunpack.c.l.b16 %v36
  %v128 = vunpack.c.h.b16 %v36
  %v129 = vunpack.c.l.b16 %v37
  %v130 = vunpack.c.h.b16 %v37
  %v131 = vunpack.c.l.b16 %v38
  %v132 = vunpack.c.h.b16 %v38
  %v133 = vunpack.c.l.b16 %v39
  %v134 = vunpack.c.h.b16 %v39
  %v135 = vunpack.c.l.b16 %v40
  %v136 = vunpack.c.h.b16 %v40
  %v137 = vunpack.c.l.b16 %v41
  %v138 = vunpack.c.h.b16 %v41
  %v139 = vunpack.c.l.b16 %v42
  %v140 = vunpack.c.h.b16 %v42
  %v141 = vunpack.c.l.b16 %v43
  %v142 = vunpack.c.h.b16 %v43
  %v143 = vunpack.c.l.b16 %v44
  %v144 = vunpack.c.h.b16 %v44
  %v145 = vunpack.c.l.b16 %v45
  %v146 = vunpack.c.h.b16 %v45
  %v147 = vpack.c.b16 %v99, %v83
  %v148 = vpack.c.b16 %v100, %v84
  %v149 = vpack.c.b16 %v101, %v85
  %v150 = vpack.c.b16 %v102, %v86
  %v151 = vpack.c.b16 %v103, %v87
  %v152 = vpack.c.b16 %v104, %v88
  %v153 = vpack.c.b16 %v105, %v89
  %v154 = vpack.c.b16 %v106, %v90
  %v155 = vpack.c.b16 %v107, %v91
  %v156 = vpack.c.b16 %v108, %v92
  %v157 = vpack.c.b16 %v109, %v93
  %v158 = vpack.c.b16 %v110, %v94
  %v159 = vpack.c.b16 %v111, %v95
  %v160 = vpack.c.b16 %v112, %v96
  %v161 = vpack.c.b16 %v113, %v97
  %v162 = vpack.c.b16 %v114, %v98
  %v163 = vpack.c.b16 %v131, %v115
  %v164 = vpack.c.b16 %v132, %v116
  %v165 = vpack.c.b16 %v133, %v117
  %v166 = vpack.c.b16 %v134, %v118
  %v167 = vpack.c.b16 %v135, %v119
  %v168 = vpack.c.b16 %v136, %v120
  %v169 = vpack.c.b16 %v137, %v121
  %v170 = vpack.c.b16 %v138, %v122
  %v171 = vpack.c.b16 %v139, %v123
  %v172 = vpack.c.b16 %v140, %v124
  %v173 = vpack.c.b16 %v141, %v125
  %v174 = vpack.c.b16 %v142, %v126
  %v175 = vpack.c.b16 %v143, %v127
  %v176 = vpack.c.b16 %v144, %v128
  %v177 = vpack.c.b16 %v145, %v129
  %v178 = vpack.c.b16 %v146, %v130
  %vm211 = vcmask 261120
  %v213 = vsel %vm211, %v50, 0
  %215 = vmatpush.bf16.msra.mxu0 0
  %216 = vmatpush.bf16.msra.mxu0 0
  %217 = vmatpush.bf16.msra.mxu0 0
  %218 = vmatpush.bf16.msra.mxu0 0
  %219 = vmatpush.bf16.msra.mxu0 0
  %220 = vmatpush.bf16.msra.mxu0 0
  %221 = vmatpush.bf16.msra.mxu0 %v163
  %222 = vmatpush.bf16.msra.mxu0 %v147
  %223 = vmatmul.bf16.gmra.mxu0 %v213
  %v224 = vpop.f32.mrf.mxu0
  %v225 = vadd.f32 0.0, %v224
  %v226 = vpop.f32.mrf.mxu0
  %v227 = vadd.f32 0.0, %v226
  %228 = vdwg.mxu0
  %229 = vmatpush.bf16.msra.mxu0 0
  %230 = vmatpush.bf16.msra.mxu0 0
  %231 = vmatpush.bf16.msra.mxu0 0
  %232 = vmatpush.bf16.msra.mxu0 0
  %233 = vmatpush.bf16.msra.mxu0 0
  %234 = vmatpush.bf16.msra.mxu0 0
  %235 = vmatpush.bf16.msra.mxu0 %v164
  %236 = vmatpush.bf16.msra.mxu0 %v148
  %237 = vmatmul.bf16.gmra.mxu0 %v213
  %v238 = vpop.f32.mrf.mxu0
  %v239 = vadd.f32 0.0, %v238
  %v240 = vpop.f32.mrf.mxu0
  %v241 = vadd.f32 0.0, %v240
  %242 = vdwg.mxu0
  %243 = vmatpush.bf16.msra.mxu0 0
  %244 = vmatpush.bf16.msra.mxu0 0
  %245 = vmatpush.bf16.msra.mxu0 0
  %246 = vmatpush.bf16.msra.mxu0 0
  %247 = vmatpush.bf16.msra.mxu0 0
  %248 = vmatpush.bf16.msra.mxu0 0
  %249 = vmatpush.bf16.msra.mxu0 %v165
  %250 = vmatpush.bf16.msra.mxu0 %v149
  %251 = vmatmul.bf16.gmra.mxu0 %v213
  %v252 = vpop.f32.mrf.mxu0
  %v253 = vadd.f32 0.0, %v252
  %v254 = vpop.f32.mrf.mxu0
  %v255 = vadd.f32 0.0, %v254
  %256 = vdwg.mxu0
  %257 = vmatpush.bf16.msra.mxu0 0
  %258 = vmatpush.bf16.msra.mxu0 0
  %259 = vmatpush.bf16.msra.mxu0 0
  %260 = vmatpush.bf16.msra.mxu0 0
  %261 = vmatpush.bf16.msra.mxu0 0
  %262 = vmatpush.bf16.msra.mxu0 0
  %263 = vmatpush.bf16.msra.mxu0 %v166
  %264 = vmatpush.bf16.msra.mxu0 %v150
  %265 = vmatmul.bf16.gmra.mxu0 %v213
  %v266 = vpop.f32.mrf.mxu0
  %v267 = vadd.f32 0.0, %v266
  %v268 = vpop.f32.mrf.mxu0
  %v269 = vadd.f32 0.0, %v268
  %270 = vdwg.mxu0
  %271 = vmatpush.bf16.msra.mxu0 0
  %272 = vmatpush.bf16.msra.mxu0 0
  %273 = vmatpush.bf16.msra.mxu0 0
  %274 = vmatpush.bf16.msra.mxu0 0
  %275 = vmatpush.bf16.msra.mxu0 0
  %276 = vmatpush.bf16.msra.mxu0 0
  %277 = vmatpush.bf16.msra.mxu0 %v167
  %278 = vmatpush.bf16.msra.mxu0 %v151
  %279 = vmatmul.bf16.gmra.mxu0 %v213
  %v280 = vpop.f32.mrf.mxu0
  %v281 = vadd.f32 0.0, %v280
  %v282 = vpop.f32.mrf.mxu0
  %v283 = vadd.f32 0.0, %v282
  %284 = vdwg.mxu0
  %285 = vmatpush.bf16.msra.mxu0 0
  %286 = vmatpush.bf16.msra.mxu0 0
  %287 = vmatpush.bf16.msra.mxu0 0
  %288 = vmatpush.bf16.msra.mxu0 0
  %289 = vmatpush.bf16.msra.mxu0 0
  %290 = vmatpush.bf16.msra.mxu0 0
  %291 = vmatpush.bf16.msra.mxu0 %v168
  %292 = vmatpush.bf16.msra.mxu0 %v152
  %293 = vmatmul.bf16.gmra.mxu0 %v213
  %v294 = vpop.f32.mrf.mxu0
  %v295 = vadd.f32 0.0, %v294
  %v296 = vpop.f32.mrf.mxu0
  %v297 = vadd.f32 0.0, %v296
  %298 = vdwg.mxu0
  %299 = vmatpush.bf16.msra.mxu0 0
  %300 = vmatpush.bf16.msra.mxu0 0
  %301 = vmatpush.bf16.msra.mxu0 0
  %302 = vmatpush.bf16.msra.mxu0 0
  %303 = vmatpush.bf16.msra.mxu0 0
  %304 = vmatpush.bf16.msra.mxu0 0
  %305 = vmatpush.bf16.msra.mxu0 %v169
  %306 = vmatpush.bf16.msra.mxu0 %v153
  %307 = vmatmul.bf16.gmra.mxu0 %v213
  %v308 = vpop.f32.mrf.mxu0
  %v309 = vadd.f32 0.0, %v308
  %v310 = vpop.f32.mrf.mxu0
  %v311 = vadd.f32 0.0, %v310
  %312 = vdwg.mxu0
  %313 = vmatpush.bf16.msra.mxu0 0
  %314 = vmatpush.bf16.msra.mxu0 0
  %315 = vmatpush.bf16.msra.mxu0 0
  %316 = vmatpush.bf16.msra.mxu0 0
  %317 = vmatpush.bf16.msra.mxu0 0
  %318 = vmatpush.bf16.msra.mxu0 0
  %319 = vmatpush.bf16.msra.mxu0 %v170
  %320 = vmatpush.bf16.msra.mxu0 %v154
  %321 = vmatmul.bf16.gmra.mxu0 %v213
  %v322 = vpop.f32.mrf.mxu0
  %v323 = vadd.f32 0.0, %v322
  %v324 = vpop.f32.mrf.mxu0
  %v325 = vadd.f32 0.0, %v324
  %326 = vdwg.mxu0
  %327 = vmatpush.bf16.msra.mxu0 0
  %328 = vmatpush.bf16.msra.mxu0 0
  %329 = vmatpush.bf16.msra.mxu0 0
  %330 = vmatpush.bf16.msra.mxu0 0
  %331 = vmatpush.bf16.msra.mxu0 0
  %332 = vmatpush.bf16.msra.mxu0 0
  %333 = vmatpush.bf16.msra.mxu0 %v171
  %334 = vmatpush.bf16.msra.mxu0 %v155
  %335 = vmatmul.bf16.gmra.mxu0 %v213
  %v336 = vpop.f32.mrf.mxu0
  %v337 = vadd.f32 0.0, %v336
  %v338 = vpop.f32.mrf.mxu0
  %v339 = vadd.f32 0.0, %v338
  %340 = vdwg.mxu0
  %341 = vmatpush.bf16.msra.mxu0 0
  %342 = vmatpush.bf16.msra.mxu0 0
  %343 = vmatpush.bf16.msra.mxu0 0
  %344 = vmatpush.bf16.msra.mxu0 0
  %345 = vmatpush.bf16.msra.mxu0 0
  %346 = vmatpush.bf16.msra.mxu0 0
  %347 = vmatpush.bf16.msra.mxu0 %v172
  %348 = vmatpush.bf16.msra.mxu0 %v156
  %349 = vmatmul.bf16.gmra.mxu0 %v213
  %v350 = vpop.f32.mrf.mxu0
  %v351 = vadd.f32 0.0, %v350
  %v352 = vpop.f32.mrf.mxu0
  %v353 = vadd.f32 0.0, %v352
  %354 = vdwg.mxu0
  %355 = vmatpush.bf16.msra.mxu0 0
  %356 = vmatpush.bf16.msra.mxu0 0
  %357 = vmatpush.bf16.msra.mxu0 0
  %358 = vmatpush.bf16.msra.mxu0 0
  %359 = vmatpush.bf16.msra.mxu0 0
  %360 = vmatpush.bf16.msra.mxu0 0
  %361 = vmatpush.bf16.msra.mxu0 %v173
  %362 = vmatpush.bf16.msra.mxu0 %v157
  %363 = vmatmul.bf16.gmra.mxu0 %v213
  %v364 = vpop.f32.mrf.mxu0
  %v365 = vadd.f32 0.0, %v364
  %v366 = vpop.f32.mrf.mxu0
  %v367 = vadd.f32 0.0, %v366
  %368 = vdwg.mxu0
  %369 = vmatpush.bf16.msra.mxu0 0
  %370 = vmatpush.bf16.msra.mxu0 0
  %371 = vmatpush.bf16.msra.mxu0 0
  %372 = vmatpush.bf16.msra.mxu0 0
  %373 = vmatpush.bf16.msra.mxu0 0
  %374 = vmatpush.bf16.msra.mxu0 0
  %375 = vmatpush.bf16.msra.mxu0 %v174
  %376 = vmatpush.bf16.msra.mxu0 %v158
  %377 = vmatmul.bf16.gmra.mxu0 %v213
  %v378 = vpop.f32.mrf.mxu0
  %v379 = vadd.f32 0.0, %v378
  %v380 = vpop.f32.mrf.mxu0
  %v381 = vadd.f32 0.0, %v380
  %382 = vdwg.mxu0
  %383 = vmatpush.bf16.msra.mxu0 0
  %384 = vmatpush.bf16.msra.mxu0 0
  %385 = vmatpush.bf16.msra.mxu0 0
  %386 = vmatpush.bf16.msra.mxu0 0
  %387 = vmatpush.bf16.msra.mxu0 0
  %388 = vmatpush.bf16.msra.mxu0 0
  %389 = vmatpush.bf16.msra.mxu0 %v175
  %390 = vmatpush.bf16.msra.mxu0 %v159
  %391 = vmatmul.bf16.gmra.mxu0 %v213
  %v392 = vpop.f32.mrf.mxu0
  %v393 = vadd.f32 0.0, %v392
  %v394 = vpop.f32.mrf.mxu0
  %v395 = vadd.f32 0.0, %v394
  %396 = vdwg.mxu0
  %397 = vmatpush.bf16.msra.mxu0 0
  %398 = vmatpush.bf16.msra.mxu0 0
  %399 = vmatpush.bf16.msra.mxu0 0
  %400 = vmatpush.bf16.msra.mxu0 0
  %401 = vmatpush.bf16.msra.mxu0 0
  %402 = vmatpush.bf16.msra.mxu0 0
  %403 = vmatpush.bf16.msra.mxu0 %v176
  %404 = vmatpush.bf16.msra.mxu0 %v160
  %405 = vmatmul.bf16.gmra.mxu0 %v213
  %v406 = vpop.f32.mrf.mxu0
  %v407 = vadd.f32 0.0, %v406
  %v408 = vpop.f32.mrf.mxu0
  %v409 = vadd.f32 0.0, %v408
  %410 = vdwg.mxu0
  %411 = vmatpush.bf16.msra.mxu0 0
  %412 = vmatpush.bf16.msra.mxu0 0
  %413 = vmatpush.bf16.msra.mxu0 0
  %414 = vmatpush.bf16.msra.mxu0 0
  %415 = vmatpush.bf16.msra.mxu0 0
  %416 = vmatpush.bf16.msra.mxu0 0
  %417 = vmatpush.bf16.msra.mxu0 %v177
  %418 = vmatpush.bf16.msra.mxu0 %v161
  %419 = vmatmul.bf16.gmra.mxu0 %v213
  %v420 = vpop.f32.mrf.mxu0
  %v421 = vadd.f32 0.0, %v420
  %v422 = vpop.f32.mrf.mxu0
  %v423 = vadd.f32 0.0, %v422
  %424 = vdwg.mxu0
  %425 = vmatpush.bf16.msra.mxu0 0
  %426 = vmatpush.bf16.msra.mxu0 0
  %427 = vmatpush.bf16.msra.mxu0 0
  %428 = vmatpush.bf16.msra.mxu0 0
  %429 = vmatpush.bf16.msra.mxu0 0
  %430 = vmatpush.bf16.msra.mxu0 0
  %431 = vmatpush.bf16.msra.mxu0 %v178
  %432 = vmatpush.bf16.msra.mxu0 %v162
  %433 = vmatmul.bf16.gmra.mxu0 %v213
  %v434 = vpop.f32.mrf.mxu0
  %v435 = vadd.f32 0.0, %v434
  %v436 = vpop.f32.mrf.mxu0
  %v437 = vadd.f32 0.0, %v436
  %438 = vdwg.mxu0
  %439 = vst [vmem:[%s2] sm:$0xff] %v225
  %440 = vst [vmem:[%s2 + $0x8] sm:$0xff] %v239
  %441 = vst [vmem:[%s2 + $0x10] sm:$0xff] %v253
  %442 = vst [vmem:[%s2 + $0x18] sm:$0xff] %v267
  %443 = vst [vmem:[%s2 + $0x20] sm:$0xff] %v281
  %444 = vst [vmem:[%s2 + $0x28] sm:$0xff] %v295
  %445 = vst [vmem:[%s2 + $0x30] sm:$0xff] %v309
  %446 = vst [vmem:[%s2 + $0x38] sm:$0xff] %v323
  %447 = vst [vmem:[%s2 + $0x40] sm:$0xff] %v337
  %448 = vst [vmem:[%s2 + $0x48] sm:$0xff] %v351
  %449 = vst [vmem:[%s2 + $0x50] sm:$0xff] %v365
  %450 = vst [vmem:[%s2 + $0x58] sm:$0xff] %v379
  %451 = vst [vmem:[%s2 + $0x60] sm:$0xff] %v393
  %452 = vst [vmem:[%s2 + $0x68] sm:$0xff] %v407
  %453 = vst [vmem:[%s2 + $0x70] sm:$0xff] %v421
  %454 = vst [vmem:[%s2 + $0x78] sm:$0xff] %v435
  %455 = vst [vmem:[%s2 + $0x80] sm:$0xff] %v227
  %456 = vst [vmem:[%s2 + $0x88] sm:$0xff] %v241
  %457 = vst [vmem:[%s2 + $0x90] sm:$0xff] %v255
  %458 = vst [vmem:[%s2 + $0x98] sm:$0xff] %v269
  %459 = vst [vmem:[%s2 + $0xa0] sm:$0xff] %v283
  %460 = vst [vmem:[%s2 + $0xa8] sm:$0xff] %v297
  %461 = vst [vmem:[%s2 + $0xb0] sm:$0xff] %v311
  %462 = vst [vmem:[%s2 + $0xb8] sm:$0xff] %v325
  %463 = vst [vmem:[%s2 + $0xc0] sm:$0xff] %v339
  %464 = vst [vmem:[%s2 + $0xc8] sm:$0xff] %v353
  %465 = vst [vmem:[%s2 + $0xd0] sm:$0xff] %v367
  %466 = vst [vmem:[%s2 + $0xd8] sm:$0xff] %v381
  %467 = vst [vmem:[%s2 + $0xe0] sm:$0xff] %v395
  %468 = vst [vmem:[%s2 + $0xe8] sm:$0xff] %v409
  %469 = vst [vmem:[%s2 + $0xf0] sm:$0xff] %v423
  %470 = vst [vmem:[%s2 + $0xf8] sm:$0xff] %v437
  // Predicated region
  $region10: #{conv_template_forward.7} parent=0 // pred_check
    _
  $region11: #{conv_template_forward.7} parent=0 // pred_check_branch
    %472 = sbr.rel (0) target = $region13
  $region12: #{conv_template_forward.7} parent=0 // pred_region
    _
  $region13: #{conv_template_forward.7} parent=0 // pred_fallthru
    _
  // Predicated region
  $region14: #{conv_template_forward.7} parent=0 // pred_check
    _
  $region15: #{conv_template_forward.7} parent=0 // pred_check_branch
    %474 = sbr.rel (0) target = $region17
  $region16: #{conv_template_forward.7} parent=0 // pred_region
    _
  $region17: #{conv_template_forward.7} parent=0 // pred_fallthru
    _

// kernel: conv_template_forward.8
$region0: #{conv_template_forward.8}
  #allocation0 [shape = 'u32[]', space=smem, size = 0x4, offset = 0x4, fixed_abs, tag = 'smem constant byte address 0x4 - core index']
  #allocation1 [shape = 'u32[72,128]{1,0:T(1,128)}', space=vmem, size = 0x9000, scoped, tag = 'internal scratch']
  %s0 = inlined_call_operand.vmem [shape: bf16[128,32], index: 0, kind: input, shape index: {}]
  %s1 = inlined_call_operand.vmem [shape: bf16[32,1024], index: 1, kind: input, shape index: {}]
  %s2 = inlined_call_operand.vmem [shape: f32[128,1024], index: 2, kind: output, shape index: {}]
  %s3 = sld [smem:[#allocation0]]
  $region18: #{conv_template_forward.8} parent=0
    _
  %s5 = ssub.s32 1, %s3
  %s6 = scalar_select 0, %s5, %s3
  // Predicated region
  $region2: #{conv_template_forward.8} parent=0 // pred_check
    _
  $region3: #{conv_template_forward.8} parent=0 // pred_check_branch
    %8 = sbr.rel (0) target = $region5
  $region4: #{conv_template_forward.8} parent=0 // pred_region
    _
  $region5: #{conv_template_forward.8} parent=0 // pred_fallthru
    _
  // Predicated region
  $region6: #{conv_template_forward.8} parent=0 // pred_check
    _
  $region7: #{conv_template_forward.8} parent=0 // pred_check_branch
    %10 = sbr.rel (0) target = $region9
  $region8: #{conv_template_forward.8} parent=0 // pred_region
    _
  $region9: #{conv_template_forward.8} parent=0 // pred_fallthru
    _
  %v12 = vld [vmem:[%s0] sm:$0xf]
  %v13 = vld [vmem:[%s0 + $0x4] sm:$0xf]
  %v14 = vld [vmem:[%s0 + $0x8] sm:$0xf]
  %v15 = vld [vmem:[%s0 + $0xc] sm:$0xf]
  %v16 = vld [vmem:[%s0 + $0x10] sm:$0xf]
  %v17 = vld [vmem:[%s0 + $0x14] sm:$0xf]
  %v18 = vld [vmem:[%s0 + $0x18] sm:$0xf]
  %v19 = vld [vmem:[%s0 + $0x1c] sm:$0xf]
  %v20 = vld [vmem:[%s0 + $0x20] sm:$0xf]
  %v21 = vld [vmem:[%s0 + $0x24] sm:$0xf]
  %v22 = vld [vmem:[%s0 + $0x28] sm:$0xf]
  %v23 = vld [vmem:[%s0 + $0x2c] sm:$0xf]
  %v24 = vld [vmem:[%s0 + $0x30] sm:$0xf]
  %v25 = vld [vmem:[%s0 + $0x34] sm:$0xf]
  %v26 = vld [vmem:[%s0 + $0x38] sm:$0xf]
  %v27 = vld [vmem:[%s0 + $0x3c] sm:$0xf]
  %v28 = vld [vmem:[%s1] sm:$0xff]
  %v29 = vld [vmem:[%s1 + $0x8] sm:$0xff]
  %v30 = vld [vmem:[%s1 + $0x10] sm:$0xff]
  %v31 = vld [vmem:[%s1 + $0x18] sm:$0xff]
  %v32 = vld [vmem:[%s1 + $0x20] sm:$0xff]
  %v33 = vld [vmem:[%s1 + $0x28] sm:$0xff]
  %v34 = vld [vmem:[%s1 + $0x30] sm:$0xff]
  %v35 = vld [vmem:[%s1 + $0x38] sm:$0xff]
  %v36 = vld [vmem:[%s1 + $0x40] sm:$0xff]
  %v37 = vld [vmem:[%s1 + $0x48] sm:$0xff]
  %v38 = vld [vmem:[%s1 + $0x50] sm:$0xff]
  %v39 = vld [vmem:[%s1 + $0x58] sm:$0xff]
  %v40 = vld [vmem:[%s1 + $0x60] sm:$0xff]
  %v41 = vld [vmem:[%s1 + $0x68] sm:$0xff]
  %v42 = vld [vmem:[%s1 + $0x70] sm:$0xff]
  %v43 = vld [vmem:[%s1 + $0x78] sm:$0xff]
  %v60 = vunpack.c.l.b16 %v12
  %v61 = vunpack.c.l.b16 %v13
  %v62 = vunpack.c.l.b16 %v14
  %v63 = vunpack.c.l.b16 %v15
  %v64 = vunpack.c.l.b16 %v16
  %v65 = vunpack.c.l.b16 %v17
  %v66 = vunpack.c.l.b16 %v18
  %v67 = vunpack.c.l.b16 %v19
  %v68 = vunpack.c.l.b16 %v20
  %v69 = vunpack.c.l.b16 %v21
  %v70 = vunpack.c.l.b16 %v22
  %v71 = vunpack.c.l.b16 %v23
  %v72 = vunpack.c.l.b16 %v24
  %v73 = vunpack.c.l.b16 %v25
  %v74 = vunpack.c.l.b16 %v26
  %v75 = vunpack.c.l.b16 %v27
  %v76 = vpack.c.b16 %v61, %v60
  %v77 = vpack.c.b16 %v63, %v62
  %v78 = vpack.c.b16 %v65, %v64
  %v79 = vpack.c.b16 %v67, %v66
  %v80 = vpack.c.b16 %v69, %v68
  %v81 = vpack.c.b16 %v71, %v70
  %v82 = vpack.c.b16 %v73, %v72
  %v83 = vpack.c.b16 %v75, %v74
  %v100 = vunpack.c.l.b16 %v28
  %v101 = vunpack.c.h.b16 %v28
  %v102 = vunpack.c.l.b16 %v29
  %v103 = vunpack.c.h.b16 %v29
  %v104 = vunpack.c.l.b16 %v30
  %v105 = vunpack.c.h.b16 %v30
  %v106 = vunpack.c.l.b16 %v31
  %v107 = vunpack.c.h.b16 %v31
  %v108 = vunpack.c.l.b16 %v32
  %v109 = vunpack.c.h.b16 %v32
  %v110 = vunpack.c.l.b16 %v33
  %v111 = vunpack.c.h.b16 %v33
  %v112 = vunpack.c.l.b16 %v34
  %v113 = vunpack.c.h.b16 %v34
  %v114 = vunpack.c.l.b16 %v35
  %v115 = vunpack.c.h.b16 %v35
  %v116 = vunpack.c.l.b16 %v36
  %v117 = vunpack.c.h.b16 %v36
  %v118 = vunpack.c.l.b16 %v37
  %v119 = vunpack.c.h.b16 %v37
  %v120 = vunpack.c.l.b16 %v38
  %v121 = vunpack.c.h.b16 %v38
  %v122 = vunpack.c.l.b16 %v39
  %v123 = vunpack.c.h.b16 %v39
  %v124 = vunpack.c.l.b16 %v40
  %v125 = vunpack.c.h.b16 %v40
  %v126 = vunpack.c.l.b16 %v41
  %v127 = vunpack.c.h.b16 %v41
  %v128 = vunpack.c.l.b16 %v42
  %v129 = vunpack.c.h.b16 %v42
  %v130 = vunpack.c.l.b16 %v43
  %v131 = vunpack.c.h.b16 %v43
  %v132 = vpack.c.b16 %v108, %v100
  %v133 = vpack.c.b16 %v109, %v101
  %v134 = vpack.c.b16 %v110, %v102
  %v135 = vpack.c.b16 %v111, %v103
  %v136 = vpack.c.b16 %v112, %v104
  %v137 = vpack.c.b16 %v113, %v105
  %v138 = vpack.c.b16 %v114, %v106
  %v139 = vpack.c.b16 %v115, %v107
  %v140 = vpack.c.b16 %v124, %v116
  %v141 = vpack.c.b16 %v125, %v117
  %v142 = vpack.c.b16 %v126, %v118
  %v143 = vpack.c.b16 %v127, %v119
  %v144 = vpack.c.b16 %v128, %v120
  %v145 = vpack.c.b16 %v129, %v121
  %v146 = vpack.c.b16 %v130, %v122
  %v147 = vpack.c.b16 %v131, %v123
  %vm164 = vcmask 261120
  %v166 = vsel %vm164, %v76, 0
  %v169 = vsel %vm164, %v77, 0
  %v172 = vsel %vm164, %v78, 0
  %v175 = vsel %vm164, %v79, 0
  %v178 = vsel %vm164, %v80, 0
  %v181 = vsel %vm164, %v81, 0
  %v184 = vsel %vm164, %v82, 0
  %v187 = vsel %vm164, %v83, 0
  %189 = vmatpush.bf16.msra.mxu0 0
  %190 = vmatpush.bf16.msra.mxu0 0
  %191 = vmatpush.bf16.msra.mxu0 0
  %192 = vmatpush.bf16.msra.mxu0 0
  %193 = vmatpush.bf16.msra.mxu0 0
  %194 = vmatpush.bf16.msra.mxu0 0
  %195 = vmatpush.bf16.msra.mxu0 %v140
  %196 = vmatpush.bf16.msra.mxu0 %v132
  %197 = vmatmul.bf16.gmra.mxu0 %v166
  %v198 = vpop.f32.mrf.mxu0
  %v199 = vadd.f32 0.0, %v198
  %v200 = vpop.f32.mrf.mxu0
  %v201 = vadd.f32 0.0, %v200
  %202 = vmatmul.bf16.gmra.mxu0 %v169
  %v203 = vpop.f32.mrf.mxu0
  %v204 = vadd.f32 0.0, %v203
  %v205 = vpop.f32.mrf.mxu0
  %v206 = vadd.f32 0.0, %v205
  %207 = vmatmul.bf16.gmra.mxu0 %v172
  %v208 = vpop.f32.mrf.mxu0
  %v209 = vadd.f32 0.0, %v208
  %v210 = vpop.f32.mrf.mxu0
  %v211 = vadd.f32 0.0, %v210
  %212 = vmatmul.bf16.gmra.mxu0 %v175
  %v213 = vpop.f32.mrf.mxu0
  %v214 = vadd.f32 0.0, %v213
  %v215 = vpop.f32.mrf.mxu0
  %v216 = vadd.f32 0.0, %v215
  %217 = vmatmul.bf16.gmra.mxu0 %v178
  %v218 = vpop.f32.mrf.mxu0
  %v219 = vadd.f32 0.0, %v218
  %v220 = vpop.f32.mrf.mxu0
  %v221 = vadd.f32 0.0, %v220
  %222 = vmatmul.bf16.gmra.mxu0 %v181
  %v223 = vpop.f32.mrf.mxu0
  %v224 = vadd.f32 0.0, %v223
  %v225 = vpop.f32.mrf.mxu0
  %v226 = vadd.f32 0.0, %v225
  %227 = vmatmul.bf16.gmra.mxu0 %v184
  %v228 = vpop.f32.mrf.mxu0
  %v229 = vadd.f32 0.0, %v228
  %v230 = vpop.f32.mrf.mxu0
  %v231 = vadd.f32 0.0, %v230
  %232 = vmatmul.bf16.gmra.mxu0 %v187
  %v233 = vpop.f32.mrf.mxu0
  %v234 = vadd.f32 0.0, %v233
  %v235 = vpop.f32.mrf.mxu0
  %v236 = vadd.f32 0.0, %v235
  %237 = vdwg.mxu0
  %238 = vmatpush.bf16.msra.mxu0 0
  %239 = vmatpush.bf16.msra.mxu0 0
  %240 = vmatpush.bf16.msra.mxu0 0
  %241 = vmatpush.bf16.msra.mxu0 0
  %242 = vmatpush.bf16.msra.mxu0 0
  %243 = vmatpush.bf16.msra.mxu0 0
  %244 = vmatpush.bf16.msra.mxu0 %v141
  %245 = vmatpush.bf16.msra.mxu0 %v133
  %246 = vmatmul.bf16.gmra.mxu0 %v166
  %v247 = vpop.f32.mrf.mxu0
  %v248 = vadd.f32 0.0, %v247
  %v249 = vpop.f32.mrf.mxu0
  %v250 = vadd.f32 0.0, %v249
  %251 = vmatmul.bf16.gmra.mxu0 %v169
  %v252 = vpop.f32.mrf.mxu0
  %v253 = vadd.f32 0.0, %v252
  %v254 = vpop.f32.mrf.mxu0
  %v255 = vadd.f32 0.0, %v254
  %256 = vmatmul.bf16.gmra.mxu0 %v172
  %v257 = vpop.f32.mrf.mxu0
  %v258 = vadd.f32 0.0, %v257
  %v259 = vpop.f32.mrf.mxu0
  %v260 = vadd.f32 0.0, %v259
  %261 = vmatmul.bf16.gmra.mxu0 %v175
  %v262 = vpop.f32.mrf.mxu0
  %v263 = vadd.f32 0.0, %v262
  %v264 = vpop.f32.mrf.mxu0
  %v265 = vadd.f32 0.0, %v264
  %266 = vmatmul.bf16.gmra.mxu0 %v178
  %v267 = vpop.f32.mrf.mxu0
  %v268 = vadd.f32 0.0, %v267
  %v269 = vpop.f32.mrf.mxu0
  %v270 = vadd.f32 0.0, %v269
  %271 = vmatmul.bf16.gmra.mxu0 %v181
  %v272 = vpop.f32.mrf.mxu0
  %v273 = vadd.f32 0.0, %v272
  %v274 = vpop.f32.mrf.mxu0
  %v275 = vadd.f32 0.0, %v274
  %276 = vmatmul.bf16.gmra.mxu0 %v184
  %v277 = vpop.f32.mrf.mxu0
  %v278 = vadd.f32 0.0, %v277
  %v279 = vpop.f32.mrf.mxu0
  %v280 = vadd.f32 0.0, %v279
  %281 = vmatmul.bf16.gmra.mxu0 %v187
  %v282 = vpop.f32.mrf.mxu0
  %v283 = vadd.f32 0.0, %v282
  %v284 = vpop.f32.mrf.mxu0
  %v285 = vadd.f32 0.0, %v284
  %286 = vdwg.mxu0
  %287 = vmatpush.bf16.msra.mxu0 0
  %288 = vmatpush.bf16.msra.mxu0 0
  %289 = vmatpush.bf16.msra.mxu0 0
  %290 = vmatpush.bf16.msra.mxu0 0
  %291 = vmatpush.bf16.msra.mxu0 0
  %292 = vmatpush.bf16.msra.mxu0 0
  %293 = vmatpush.bf16.msra.mxu0 %v142
  %294 = vmatpush.bf16.msra.mxu0 %v134
  %295 = vmatmul.bf16.gmra.mxu0 %v166
  %v296 = vpop.f32.mrf.mxu0
  %v297 = vadd.f32 0.0, %v296
  %v298 = vpop.f32.mrf.mxu0
  %v299 = vadd.f32 0.0, %v298
  %300 = vmatmul.bf16.gmra.mxu0 %v169
  %v301 = vpop.f32.mrf.mxu0
  %v302 = vadd.f32 0.0, %v301
  %v303 = vpop.f32.mrf.mxu0
  %v304 = vadd.f32 0.0, %v303
  %305 = vmatmul.bf16.gmra.mxu0 %v172
  %v306 = vpop.f32.mrf.mxu0
  %v307 = vadd.f32 0.0, %v306
  %v308 = vpop.f32.mrf.mxu0
  %v309 = vadd.f32 0.0, %v308
  %310 = vmatmul.bf16.gmra.mxu0 %v175
  %v311 = vpop.f32.mrf.mxu0
  %v312 = vadd.f32 0.0, %v311
  %v313 = vpop.f32.mrf.mxu0
  %v314 = vadd.f32 0.0, %v313
  %315 = vmatmul.bf16.gmra.mxu0 %v178
  %v316 = vpop.f32.mrf.mxu0
  %v317 = vadd.f32 0.0, %v316
  %v318 = vpop.f32.mrf.mxu0
  %v319 = vadd.f32 0.0, %v318
  %320 = vmatmul.bf16.gmra.mxu0 %v181
  %v321 = vpop.f32.mrf.mxu0
  %v322 = vadd.f32 0.0, %v321
  %v323 = vpop.f32.mrf.mxu0
  %v324 = vadd.f32 0.0, %v323
  %325 = vmatmul.bf16.gmra.mxu0 %v184
  %v326 = vpop.f32.mrf.mxu0
  %v327 = vadd.f32 0.0, %v326
  %v328 = vpop.f32.mrf.mxu0
  %v329 = vadd.f32 0.0, %v328
  %330 = vmatmul.bf16.gmra.mxu0 %v187
  %v331 = vpop.f32.mrf.mxu0
  %v332 = vadd.f32 0.0, %v331
  %v333 = vpop.f32.mrf.mxu0
  %v334 = vadd.f32 0.0, %v333
  %335 = vdwg.mxu0
  %336 = vmatpush.bf16.msra.mxu0 0
  %337 = vmatpush.bf16.msra.mxu0 0
  %338 = vmatpush.bf16.msra.mxu0 0
  %339 = vmatpush.bf16.msra.mxu0 0
  %340 = vmatpush.bf16.msra.mxu0 0
  %341 = vmatpush.bf16.msra.mxu0 0
  %342 = vmatpush.bf16.msra.mxu0 %v143
  %343 = vmatpush.bf16.msra.mxu0 %v135
  %344 = vmatmul.bf16.gmra.mxu0 %v166
  %v345 = vpop.f32.mrf.mxu0
  %v346 = vadd.f32 0.0, %v345
  %v347 = vpop.f32.mrf.mxu0
  %v348 = vadd.f32 0.0, %v347
  %349 = vmatmul.bf16.gmra.mxu0 %v169
  %v350 = vpop.f32.mrf.mxu0
  %v351 = vadd.f32 0.0, %v350
  %v352 = vpop.f32.mrf.mxu0
  %v353 = vadd.f32 0.0, %v352
  %354 = vmatmul.bf16.gmra.mxu0 %v172
  %v355 = vpop.f32.mrf.mxu0
  %v356 = vadd.f32 0.0, %v355
  %v357 = vpop.f32.mrf.mxu0
  %v358 = vadd.f32 0.0, %v357
  %359 = vmatmul.bf16.gmra.mxu0 %v175
  %v360 = vpop.f32.mrf.mxu0
  %v361 = vadd.f32 0.0, %v360
  %v362 = vpop.f32.mrf.mxu0
  %v363 = vadd.f32 0.0, %v362
  %364 = vmatmul.bf16.gmra.mxu0 %v178
  %v365 = vpop.f32.mrf.mxu0
  %v366 = vadd.f32 0.0, %v365
  %v367 = vpop.f32.mrf.mxu0
  %v368 = vadd.f32 0.0, %v367
  %369 = vmatmul.bf16.gmra.mxu0 %v181
  %v370 = vpop.f32.mrf.mxu0
  %v371 = vadd.f32 0.0, %v370
  %v372 = vpop.f32.mrf.mxu0
  %v373 = vadd.f32 0.0, %v372
  %374 = vmatmul.bf16.gmra.mxu0 %v184
  %v375 = vpop.f32.mrf.mxu0
  %v376 = vadd.f32 0.0, %v375
  %v377 = vpop.f32.mrf.mxu0
  %v378 = vadd.f32 0.0, %v377
  %379 = vmatmul.bf16.gmra.mxu0 %v187
  %v380 = vpop.f32.mrf.mxu0
  %v381 = vadd.f32 0.0, %v380
  %v382 = vpop.f32.mrf.mxu0
  %v383 = vadd.f32 0.0, %v382
  %384 = vdwg.mxu0
  %385 = vmatpush.bf16.msra.mxu0 0
  %386 = vmatpush.bf16.msra.mxu0 0
  %387 = vmatpush.bf16.msra.mxu0 0
  %388 = vmatpush.bf16.msra.mxu0 0
  %389 = vmatpush.bf16.msra.mxu0 0
  %390 = vmatpush.bf16.msra.mxu0 0
  %391 = vmatpush.bf16.msra.mxu0 %v144
  %392 = vmatpush.bf16.msra.mxu0 %v136
  %393 = vmatmul.bf16.gmra.mxu0 %v166
  %v394 = vpop.f32.mrf.mxu0
  %v395 = vadd.f32 0.0, %v394
  %v396 = vpop.f32.mrf.mxu0
  %v397 = vadd.f32 0.0, %v396
  %398 = vmatmul.bf16.gmra.mxu0 %v169
  %v399 = vpop.f32.mrf.mxu0
  %v400 = vadd.f32 0.0, %v399
  %v401 = vpop.f32.mrf.mxu0
  %v402 = vadd.f32 0.0, %v401
  %403 = vmatmul.bf16.gmra.mxu0 %v172
  %v404 = vpop.f32.mrf.mxu0
  %v405 = vadd.f32 0.0, %v404
  %v406 = vpop.f32.mrf.mxu0
  %v407 = vadd.f32 0.0, %v406
  %408 = vmatmul.bf16.gmra.mxu0 %v175
  %v409 = vpop.f32.mrf.mxu0
  %v410 = vadd.f32 0.0, %v409
  %v411 = vpop.f32.mrf.mxu0
  %v412 = vadd.f32 0.0, %v411
  %413 = vmatmul.bf16.gmra.mxu0 %v178
  %v414 = vpop.f32.mrf.mxu0
  %v415 = vadd.f32 0.0, %v414
  %v416 = vpop.f32.mrf.mxu0
  %v417 = vadd.f32 0.0, %v416
  %418 = vmatmul.bf16.gmra.mxu0 %v181
  %v419 = vpop.f32.mrf.mxu0
  %v420 = vadd.f32 0.0, %v419
  %v421 = vpop.f32.mrf.mxu0
  %v422 = vadd.f32 0.0, %v421
  %423 = vmatmul.bf16.gmra.mxu0 %v184
  %v424 = vpop.f32.mrf.mxu0
  %v425 = vadd.f32 0.0, %v424
  %v426 = vpop.f32.mrf.mxu0
  %v427 = vadd.f32 0.0, %v426
  %428 = vmatmul.bf16.gmra.mxu0 %v187
  %v429 = vpop.f32.mrf.mxu0
  %v430 = vadd.f32 0.0, %v429
  %v431 = vpop.f32.mrf.mxu0
  %v432 = vadd.f32 0.0, %v431
  %433 = vdwg.mxu0
  %434 = vmatpush.bf16.msra.mxu0 0
  %435 = vmatpush.bf16.msra.mxu0 0
  %436 = vmatpush.bf16.msra.mxu0 0
  %437 = vmatpush.bf16.msra.mxu0 0
  %438 = vmatpush.bf16.msra.mxu0 0
  %439 = vmatpush.bf16.msra.mxu0 0
  %440 = vmatpush.bf16.msra.mxu0 %v145
  %441 = vmatpush.bf16.msra.mxu0 %v137
  %442 = vmatmul.bf16.gmra.mxu0 %v166
  %v443 = vpop.f32.mrf.mxu0
  %v444 = vadd.f32 0.0, %v443
  %v445 = vpop.f32.mrf.mxu0
  %v446 = vadd.f32 0.0, %v445
  %447 = vmatmul.bf16.gmra.mxu0 %v169
  %v448 = vpop.f32.mrf.mxu0
  %v449 = vadd.f32 0.0, %v448
  %v450 = vpop.f32.mrf.mxu0
  %v451 = vadd.f32 0.0, %v450
  %452 = vmatmul.bf16.gmra.mxu0 %v172
  %v453 = vpop.f32.mrf.mxu0
  %v454 = vadd.f32 0.0, %v453
  %v455 = vpop.f32.mrf.mxu0
  %v456 = vadd.f32 0.0, %v455
  %457 = vmatmul.bf16.gmra.mxu0 %v175
  %v458 = vpop.f32.mrf.mxu0
  %v459 = vadd.f32 0.0, %v458
  %v460 = vpop.f32.mrf.mxu0
  %v461 = vadd.f32 0.0, %v460
  %462 = vmatmul.bf16.gmra.mxu0 %v178
  %v463 = vpop.f32.mrf.mxu0
  %v464 = vadd.f32 0.0, %v463
  %v465 = vpop.f32.mrf.mxu0
  %v466 = vadd.f32 0.0, %v465
  %467 = vmatmul.bf16.gmra.mxu0 %v181
  %v468 = vpop.f32.mrf.mxu0
  %v469 = vadd.f32 0.0, %v468
  %v470 = vpop.f32.mrf.mxu0
  %v471 = vadd.f32 0.0, %v470
  %472 = vmatmul.bf16.gmra.mxu0 %v184
  %v473 = vpop.f32.mrf.mxu0
  %v474 = vadd.f32 0.0, %v473
  %v475 = vpop.f32.mrf.mxu0
  %v476 = vadd.f32 0.0, %v475
  %477 = vmatmul.bf16.gmra.mxu0 %v187
  %v478 = vpop.f32.mrf.mxu0
  %v479 = vadd.f32 0.0, %v478
  %v480 = vpop.f32.mrf.mxu0
  %v481 = vadd.f32 0.0, %v480
  %482 = vdwg.mxu0
  %483 = vmatpush.bf16.msra.mxu0 0
  %484 = vmatpush.bf16.msra.mxu0 0
  %485 = vmatpush.bf16.msra.mxu0 0
  %486 = vmatpush.bf16.msra.mxu0 0
  %487 = vmatpush.bf16.msra.mxu0 0
  %488 = vmatpush.bf16.msra.mxu0 0
  %489 = vmatpush.bf16.msra.mxu0 %v146
  %490 = vmatpush.bf16.msra.mxu0 %v138
  %491 = vmatmul.bf16.gmra.mxu0 %v166
  %v492 = vpop.f32.mrf.mxu0
  %v493 = vadd.f32 0.0, %v492
  %v494 = vpop.f32.mrf.mxu0
  %v495 = vadd.f32 0.0, %v494
  %496 = vmatmul.bf16.gmra.mxu0 %v169
  %v497 = vpop.f32.mrf.mxu0
  %v498 = vadd.f32 0.0, %v497
  %v499 = vpop.f32.mrf.mxu0
  %v500 = vadd.f32 0.0, %v499
  %501 = vmatmul.bf16.gmra.mxu0 %v172
  %v502 = vpop.f32.mrf.mxu0
  %v503 = vadd.f32 0.0, %v502
  %v504 = vpop.f32.mrf.mxu0
  %v505 = vadd.f32 0.0, %v504
  %506 = vmatmul.bf16.gmra.mxu0 %v175
  %v507 = vpop.f32.mrf.mxu0
  %v508 = vadd.f32 0.0, %v507
  %v509 = vpop.f32.mrf.mxu0
  %v510 = vadd.f32 0.0, %v509
  %511 = vmatmul.bf16.gmra.mxu0 %v178
  %v512 = vpop.f32.mrf.mxu0
  %v513 = vadd.f32 0.0, %v512
  %v514 = vpop.f32.mrf.mxu0
  %v515 = vadd.f32 0.0, %v514
  %516 = vmatmul.bf16.gmra.mxu0 %v181
  %v517 = vpop.f32.mrf.mxu0
  %v518 = vadd.f32 0.0, %v517
  %v519 = vpop.f32.mrf.mxu0
  %v520 = vadd.f32 0.0, %v519
  %521 = vmatmul.bf16.gmra.mxu0 %v184
  %v522 = vpop.f32.mrf.mxu0
  %v523 = vadd.f32 0.0, %v522
  %v524 = vpop.f32.mrf.mxu0
  %v525 = vadd.f32 0.0, %v524
  %526 = vmatmul.bf16.gmra.mxu0 %v187
  %v527 = vpop.f32.mrf.mxu0
  %v528 = vadd.f32 0.0, %v527
  %v529 = vpop.f32.mrf.mxu0
  %v530 = vadd.f32 0.0, %v529
  %531 = vdwg.mxu0
  %532 = vmatpush.bf16.msra.mxu0 0
  %533 = vmatpush.bf16.msra.mxu0 0
  %534 = vmatpush.bf16.msra.mxu0 0
  %535 = vmatpush.bf16.msra.mxu0 0
  %536 = vmatpush.bf16.msra.mxu0 0
  %537 = vmatpush.bf16.msra.mxu0 0
  %538 = vmatpush.bf16.msra.mxu0 %v147
  %539 = vmatpush.bf16.msra.mxu0 %v139
  %540 = vmatmul.bf16.gmra.mxu0 %v166
  %v541 = vpop.f32.mrf.mxu0
  %v542 = vadd.f32 0.0, %v541
  %v543 = vpop.f32.mrf.mxu0
  %v544 = vadd.f32 0.0, %v543
  %545 = vmatmul.bf16.gmra.mxu0 %v169
  %v546 = vpop.f32.mrf.mxu0
  %v547 = vadd.f32 0.0, %v546
  %v548 = vpop.f32.mrf.mxu0
  %v549 = vadd.f32 0.0, %v548
  %550 = vmatmul.bf16.gmra.mxu0 %v172
  %v551 = vpop.f32.mrf.mxu0
  %v552 = vadd.f32 0.0, %v551
  %v553 = vpop.f32.mrf.mxu0
  %v554 = vadd.f32 0.0, %v553
  %555 = vmatmul.bf16.gmra.mxu0 %v175
  %v556 = vpop.f32.mrf.mxu0
  %v557 = vadd.f32 0.0, %v556
  %v558 = vpop.f32.mrf.mxu0
  %v559 = vadd.f32 0.0, %v558
  %560 = vmatmul.bf16.gmra.mxu0 %v178
  %v561 = vpop.f32.mrf.mxu0
  %v562 = vadd.f32 0.0, %v561
  %v563 = vpop.f32.mrf.mxu0
  %v564 = vadd.f32 0.0, %v563
  %565 = vmatmul.bf16.gmra.mxu0 %v181
  %v566 = vpop.f32.mrf.mxu0
  %v567 = vadd.f32 0.0, %v566
  %v568 = vpop.f32.mrf.mxu0
  %v569 = vadd.f32 0.0, %v568
  %570 = vmatmul.bf16.gmra.mxu0 %v184
  %v571 = vpop.f32.mrf.mxu0
  %v572 = vadd.f32 0.0, %v571
  %v573 = vpop.f32.mrf.mxu0
  %v574 = vadd.f32 0.0, %v573
  %575 = vmatmul.bf16.gmra.mxu0 %v187
  %v576 = vpop.f32.mrf.mxu0
  %v577 = vadd.f32 0.0, %v576
  %v578 = vpop.f32.mrf.mxu0
  %v579 = vadd.f32 0.0, %v578
  %580 = vdwg.mxu0
  %581 = vst [vmem:[%s2] sm:$0xff] %v199
  %582 = vst [vmem:[%s2 + $0x8] sm:$0xff] %v248
  %583 = vst [vmem:[%s2 + $0x10] sm:$0xff] %v297
  %584 = vst [vmem:[%s2 + $0x18] sm:$0xff] %v346
  %585 = vst [vmem:[%s2 + $0x20] sm:$0xff] %v395
  %586 = vst [vmem:[%s2 + $0x28] sm:$0xff] %v444
  %587 = vst [vmem:[%s2 + $0x30] sm:$0xff] %v493
  %588 = vst [vmem:[%s2 + $0x38] sm:$0xff] %v542
  %589 = vst [vmem:[%s2 + $0x40] sm:$0xff] %v201
  %590 = vst [vmem:[%s2 + $0x48] sm:$0xff] %v250
  %591 = vst [vmem:[%s2 + $0x50] sm:$0xff] %v299
  %592 = vst [vmem:[%s2 + $0x58] sm:$0xff] %v348
  %593 = vst [vmem:[%s2 + $0x60] sm:$0xff] %v397
  %594 = vst [vmem:[%s2 + $0x68] sm:$0xff] %v446
  %595 = vst [vmem:[%s2 + $0x70] sm:$0xff] %v495
  %596 = vst [vmem:[%s2 + $0x78] sm:$0xff] %v544
  %597 = vst [vmem:[%s2 + $0x80] sm:$0xff] %v204
  %598 = vst [vmem:[%s2 + $0x88] sm:$0xff] %v253
  %599 = vst [vmem:[%s2 + $0x90] sm:$0xff] %v302
  %600 = vst [vmem:[%s2 + $0x98] sm:$0xff] %v351
  %601 = vst [vmem:[%s2 + $0xa0] sm:$0xff] %v400
  %602 = vst [vmem:[%s2 + $0xa8] sm:$0xff] %v449
  %603 = vst [vmem:[%s2 + $0xb0] sm:$0xff] %v498
  %604 = vst [vmem:[%s2 + $0xb8] sm:$0xff] %v547
  %605 = vst [vmem:[%s2 + $0xc0] sm:$0xff] %v206
  %606 = vst [vmem:[%s2 + $0xc8] sm:$0xff] %v255
  %607 = vst [vmem:[%s2 + $0xd0] sm:$0xff] %v304
  %608 = vst [vmem:[%s2 + $0xd8] sm:$0xff] %v353
  %609 = vst [vmem:[%s2 + $0xe0] sm:$0xff] %v402
  %610 = vst [vmem:[%s2 + $0xe8] sm:$0xff] %v451
  %611 = vst [vmem:[%s2 + $0xf0] sm:$0xff] %v500
  %612 = vst [vmem:[%s2 + $0xf8] sm:$0xff] %v549
  %613 = vst [vmem:[%s2 + $0x100] sm:$0xff] %v209
  %614 = vst [vmem:[%s2 + $0x108] sm:$0xff] %v258
  %615 = vst [vmem:[%s2 + $0x110] sm:$0xff] %v307
  %616 = vst [vmem:[%s2 + $0x118] sm:$0xff] %v356
  %617 = vst [vmem:[%s2 + $0x120] sm:$0xff] %v405
  %618 = vst [vmem:[%s2 + $0x128] sm:$0xff] %v454
  %619 = vst [vmem:[%s2 + $0x130] sm:$0xff] %v503
  %620 = vst [vmem:[%s2 + $0x138] sm:$0xff] %v552
  %621 = vst [vmem:[%s2 + $0x140] sm:$0xff] %v211
  %622 = vst [vmem:[%s2 + $0x148] sm:$0xff] %v260
  %623 = vst [vmem:[%s2 + $0x150] sm:$0xff] %v309
  %624 = vst [vmem:[%s2 + $0x158] sm:$0xff] %v358
  %625 = vst [vmem:[%s2 + $0x160] sm:$0xff] %v407
  %626 = vst [vmem:[%s2 + $0x168] sm:$0xff] %v456
  %627 = vst [vmem:[%s2 + $0x170] sm:$0xff] %v505
  %628 = vst [vmem:[%s2 + $0x178] sm:$0xff] %v554
  %629 = vst [vmem:[%s2 + $0x180] sm:$0xff] %v214
  %630 = vst [vmem:[%s2 + $0x188] sm:$0xff] %v263
  %631 = vst [vmem:[%s2 + $0x190] sm:$0xff] %v312
  %632 = vst [vmem:[%s2 + $0x198] sm:$0xff] %v361
  %633 = vst [vmem:[%s2 + $0x1a0] sm:$0xff] %v410
  %634 = vst [vmem:[%s2 + $0x1a8] sm:$0xff] %v459
  %635 = vst [vmem:[%s2 + $0x1b0] sm:$0xff] %v508
  %636 = vst [vmem:[%s2 + $0x1b8] sm:$0xff] %v557
  %637 = vst [vmem:[%s2 + $0x1c0] sm:$0xff] %v216
  %638 = vst [vmem:[%s2 + $0x1c8] sm:$0xff] %v265
  %639 = vst [vmem:[%s2 + $0x1d0] sm:$0xff] %v314
  %640 = vst [vmem:[%s2 + $0x1d8] sm:$0xff] %v363
  %641 = vst [vmem:[%s2 + $0x1e0] sm:$0xff] %v412
  %642 = vst [vmem:[%s2 + $0x1e8] sm:$0xff] %v461
  %643 = vst [vmem:[%s2 + $0x1f0] sm:$0xff] %v510
  %644 = vst [vmem:[%s2 + $0x1f8] sm:$0xff] %v559
  %645 = vst [vmem:[%s2 + $0x200] sm:$0xff] %v219
  %646 = vst [vmem:[%s2 + $0x208] sm:$0xff] %v268
  %647 = vst [vmem:[%s2 + $0x210] sm:$0xff] %v317
  %648 = vst [vmem:[%s2 + $0x218] sm:$0xff] %v366
  %649 = vst [vmem:[%s2 + $0x220] sm:$0xff] %v415
  %650 = vst [vmem:[%s2 + $0x228] sm:$0xff] %v464
  %651 = vst [vmem:[%s2 + $0x230] sm:$0xff] %v513
  %652 = vst [vmem:[%s2 + $0x238] sm:$0xff] %v562
  %653 = vst [vmem:[%s2 + $0x240] sm:$0xff] %v221
  %654 = vst [vmem:[%s2 + $0x248] sm:$0xff] %v270
  %655 = vst [vmem:[%s2 + $0x250] sm:$0xff] %v319
  %656 = vst [vmem:[%s2 + $0x258] sm:$0xff] %v368
  %657 = vst [vmem:[%s2 + $0x260] sm:$0xff] %v417
  %658 = vst [vmem:[%s2 + $0x268] sm:$0xff] %v466
  %659 = vst [vmem:[%s2 + $0x270] sm:$0xff] %v515
  %660 = vst [vmem:[%s2 + $0x278] sm:$0xff] %v564
  %661 = vst [vmem:[%s2 + $0x280] sm:$0xff] %v224
  %662 = vst [vmem:[%s2 + $0x288] sm:$0xff] %v273
  %663 = vst [vmem:[%s2 + $0x290] sm:$0xff] %v322
  %664 = vst [vmem:[%s2 + $0x298] sm:$0xff] %v371
  %665 = vst [vmem:[%s2 + $0x2a0] sm:$0xff] %v420
  %666 = vst [vmem:[%s2 + $0x2a8] sm:$0xff] %v469
  %667 = vst [vmem:[%s2 + $0x2b0] sm:$0xff] %v518
  %668 = vst [vmem:[%s2 + $0x2b8] sm:$0xff] %v567
  %669 = vst [vmem:[%s2 + $0x2c0] sm:$0xff] %v226
  %670 = vst [vmem:[%s2 + $0x2c8] sm:$0xff] %v275
  %671 = vst [vmem:[%s2 + $0x2d0] sm:$0xff] %v324
  %672 = vst [vmem:[%s2 + $0x2d8] sm:$0xff] %v373
  %673 = vst [vmem:[%s2 + $0x2e0] sm:$0xff] %v422
  %674 = vst [vmem:[%s2 + $0x2e8] sm:$0xff] %v471
  %675 = vst [vmem:[%s2 + $0x2f0] sm:$0xff] %v520
  %676 = vst [vmem:[%s2 + $0x2f8] sm:$0xff] %v569
  %677 = vst [vmem:[%s2 + $0x300] sm:$0xff] %v229
  %678 = vst [vmem:[%s2 + $0x308] sm:$0xff] %v278
  %679 = vst [vmem:[%s2 + $0x310] sm:$0xff] %v327
  %680 = vst [vmem:[%s2 + $0x318] sm:$0xff] %v376
  %681 = vst [vmem:[%s2 + $0x320] sm:$0xff] %v425
  %682 = vst [vmem:[%s2 + $0x328] sm:$0xff] %v474
  %683 = vst [vmem:[%s2 + $0x330] sm:$0xff] %v523
  %684 = vst [vmem:[%s2 + $0x338] sm:$0xff] %v572
  %685 = vst [vmem:[%s2 + $0x340] sm:$0xff] %v231
  %686 = vst [vmem:[%s2 + $0x348] sm:$0xff] %v280
  %687 = vst [vmem:[%s2 + $0x350] sm:$0xff] %v329
  %688 = vst [vmem:[%s2 + $0x358] sm:$0xff] %v378
  %689 = vst [vmem:[%s2 + $0x360] sm:$0xff] %v427
  %690 = vst [vmem:[%s2 + $0x368] sm:$0xff] %v476
  %691 = vst [vmem:[%s2 + $0x370] sm:$0xff] %v525
  %692 = vst [vmem:[%s2 + $0x378] sm:$0xff] %v574
  %693 = vst [vmem:[%s2 + $0x380] sm:$0xff] %v234
  %694 = vst [vmem:[%s2 + $0x388] sm:$0xff] %v283
  %695 = vst [vmem:[%s2 + $0x390] sm:$0xff] %v332
  %696 = vst [vmem:[%s2 + $0x398] sm:$0xff] %v381
  %697 = vst [vmem:[%s2 + $0x3a0] sm:$0xff] %v430
  %698 = vst [vmem:[%s2 + $0x3a8] sm:$0xff] %v479
  %699 = vst [vmem:[%s2 + $0x3b0] sm:$0xff] %v528
  %700 = vst [vmem:[%s2 + $0x3b8] sm:$0xff] %v577
  %701 = vst [vmem:[%s2 + $0x3c0] sm:$0xff] %v236
  %702 = vst [vmem:[%s2 + $0x3c8] sm:$0xff] %v285
  %703 = vst [vmem:[%s2 + $0x3d0] sm:$0xff] %v334
  %704 = vst [vmem:[%s2 + $0x3d8] sm:$0xff] %v383
  %705 = vst [vmem:[%s2 + $0x3e0] sm:$0xff] %v432
  %706 = vst [vmem:[%s2 + $0x3e8] sm:$0xff] %v481
  %707 = vst [vmem:[%s2 + $0x3f0] sm:$0xff] %v530
  %708 = vst [vmem:[%s2 + $0x3f8] sm:$0xff] %v579
  // Predicated region
  $region10: #{conv_template_forward.8} parent=0 // pred_check
    _
  $region11: #{conv_template_forward.8} parent=0 // pred_check_branch
    %710 = sbr.rel (0) target = $region13
  $region12: #{conv_template_forward.8} parent=0 // pred_region
    _
  $region13: #{conv_template_forward.8} parent=0 // pred_fallthru
    _
  // Predicated region
  $region14: #{conv_template_forward.8} parent=0 // pred_check
    _
  $region15: #{conv_template_forward.8} parent=0 // pred_check_branch
    %712 = sbr.rel (0) target = $region17
  $region16: #{conv_template_forward.8} parent=0 // pred_region
    _
  $region17: #{conv_template_forward.8} parent=0 // pred_fallthru
    _

// kernel: conv_template_forward.9
$region0: #{conv_template_forward.9}
  #allocation0 [shape = 'u32[]', space=smem, size = 0x4, offset = 0x4, fixed_abs, tag = 'smem constant byte address 0x4 - core index']
  #allocation1 [shape = 'u32[72,128]{1,0:T(1,128)}', space=vmem, size = 0x9000, scoped, tag = 'internal scratch']
  %s0 = inlined_call_operand.vmem [shape: bf16[1024,16], index: 0, kind: input, shape index: {}]
  %s1 = inlined_call_operand.vmem [shape: bf16[16,256], index: 1, kind: input, shape index: {}]
  %s2 = inlined_call_operand.vmem [shape: f32[1024,256], index: 2, kind: output, shape index: {}]
  %s3 = sld [smem:[#allocation0]]
  $region18: #{conv_template_forward.9} parent=0
    _
  %s5 = ssub.s32 1, %s3
  %s6 = scalar_select 0, %s5, %s3
  // Predicated region
  $region2: #{conv_template_forward.9} parent=0 // pred_check
    _
  $region3: #{conv_template_forward.9} parent=0 // pred_check_branch
    %8 = sbr.rel (0) target = $region5
  $region4: #{conv_template_forward.9} parent=0 // pred_region
    _
  $region5: #{conv_template_forward.9} parent=0 // pred_fallthru
    _
  // Predicated region
  $region6: #{conv_template_forward.9} parent=0 // pred_check
    _
  $region7: #{conv_template_forward.9} parent=0 // pred_check_branch
    %10 = sbr.rel (0) target = $region9
  $region8: #{conv_template_forward.9} parent=0 // pred_region
    _
  $region9: #{conv_template_forward.9} parent=0 // pred_fallthru
    _
  %v12 = vld [vmem:[%s0] sm:$0xf]
  %v13 = vld [vmem:[%s0 + $0x4] sm:$0xf]
  %v14 = vld [vmem:[%s0 + $0x8] sm:$0xf]
  %v15 = vld [vmem:[%s0 + $0xc] sm:$0xf]
  %v16 = vld [vmem:[%s0 + $0x10] sm:$0xf]
  %v17 = vld [vmem:[%s0 + $0x14] sm:$0xf]
  %v18 = vld [vmem:[%s0 + $0x18] sm:$0xf]
  %v19 = vld [vmem:[%s0 + $0x1c] sm:$0xf]
  %v20 = vld [vmem:[%s0 + $0x20] sm:$0xf]
  %v21 = vld [vmem:[%s0 + $0x24] sm:$0xf]
  %v22 = vld [vmem:[%s0 + $0x28] sm:$0xf]
  %v23 = vld [vmem:[%s0 + $0x2c] sm:$0xf]
  %v24 = vld [vmem:[%s0 + $0x30] sm:$0xf]
  %v25 = vld [vmem:[%s0 + $0x34] sm:$0xf]
  %v26 = vld [vmem:[%s0 + $0x38] sm:$0xf]
  %v27 = vld [vmem:[%s0 + $0x3c] sm:$0xf]
  %v28 = vld [vmem:[%s0 + $0x40] sm:$0xf]
  %v29 = vld [vmem:[%s0 + $0x44] sm:$0xf]
  %v30 = vld [vmem:[%s0 + $0x48] sm:$0xf]
  %v31 = vld [vmem:[%s0 + $0x4c] sm:$0xf]
  %v32 = vld [vmem:[%s0 + $0x50] sm:$0xf]
  %v33 = vld [vmem:[%s0 + $0x54] sm:$0xf]
  %v34 = vld [vmem:[%s0 + $0x58] sm:$0xf]
  %v35 = vld [vmem:[%s0 + $0x5c] sm:$0xf]
  %v36 = vld [vmem:[%s0 + $0x60] sm:$0xf]
  %v37 = vld [vmem:[%s0 + $0x64] sm:$0xf]
  %v38 = vld [vmem:[%s0 + $0x68] sm:$0xf]
  %v39 = vld [vmem:[%s0 + $0x6c] sm:$0xf]
  %v40 = vld [vmem:[%s0 + $0x70] sm:$0xf]
  %v41 = vld [vmem:[%s0 + $0x74] sm:$0xf]
  %v42 = vld [vmem:[%s0 + $0x78] sm:$0xf]
  %v43 = vld [vmem:[%s0 + $0x7c] sm:$0xf]
  %v44 = vld [vmem:[%s0 + $0x80] sm:$0xf]
  %v45 = vld [vmem:[%s0 + $0x84] sm:$0xf]
  %v46 = vld [vmem:[%s0 + $0x88] sm:$0xf]
  %v47 = vld [vmem:[%s0 + $0x8c] sm:$0xf]
  %v48 = vld [vmem:[%s0 + $0x90] sm:$0xf]
  %v49 = vld [vmem:[%s0 + $0x94] sm:$0xf]
  %v50 = vld [vmem:[%s0 + $0x98] sm:$0xf]
  %v51 = vld [vmem:[%s0 + $0x9c] sm:$0xf]
  %v52 = vld [vmem:[%s0 + $0xa0] sm:$0xf]
  %v53 = vld [vmem:[%s0 + $0xa4] sm:$0xf]
  %v54 = vld [vmem:[%s0 + $0xa8] sm:$0xf]
  %v55 = vld [vmem:[%s0 + $0xac] sm:$0xf]
  %v56 = vld [vmem:[%s0 + $0xb0] sm:$0xf]
  %v57 = vld [vmem:[%s0 + $0xb4] sm:$0xf]
  %v58 = vld [vmem:[%s0 + $0xb8] sm:$0xf]
  %v59 = vld [vmem:[%s0 + $0xbc] sm:$0xf]
  %v60 = vld [vmem:[%s0 + $0xc0] sm:$0xf]
  %v61 = vld [vmem:[%s0 + $0xc4] sm:$0xf]
  %v62 = vld [vmem:[%s0 + $0xc8] sm:$0xf]
  %v63 = vld [vmem:[%s0 + $0xcc] sm:$0xf]
  %v64 = vld [vmem:[%s0 + $0xd0] sm:$0xf]
  %v65 = vld [vmem:[%s0 + $0xd4] sm:$0xf]
  %v66 = vld [vmem:[%s0 + $0xd8] sm:$0xf]
  %v67 = vld [vmem:[%s0 + $0xdc] sm:$0xf]
  %v68 = vld [vmem:[%s0 + $0xe0] sm:$0xf]
  %v69 = vld [vmem:[%s0 + $0xe4] sm:$0xf]
  %v70 = vld [vmem:[%s0 + $0xe8] sm:$0xf]
  %v71 = vld [vmem:[%s0 + $0xec] sm:$0xf]
  %v72 = vld [vmem:[%s0 + $0xf0] sm:$0xf]
  %v73 = vld [vmem:[%s0 + $0xf4] sm:$0xf]
  %v74 = vld [vmem:[%s0 + $0xf8] sm:$0xf]
  %v75 = vld [vmem:[%s0 + $0xfc] sm:$0xf]
  %v76 = vld [vmem:[%s0 + $0x100] sm:$0xf]
  %v77 = vld [vmem:[%s0 + $0x104] sm:$0xf]
  %v78 = vld [vmem:[%s0 + $0x108] sm:$0xf]
  %v79 = vld [vmem:[%s0 + $0x10c] sm:$0xf]
  %v80 = vld [vmem:[%s0 + $0x110] sm:$0xf]
  %v81 = vld [vmem:[%s0 + $0x114] sm:$0xf]
  %v82 = vld [vmem:[%s0 + $0x118] sm:$0xf]
  %v83 = vld [vmem:[%s0 + $0x11c] sm:$0xf]
  %v84 = vld [vmem:[%s0 + $0x120] sm:$0xf]
  %v85 = vld [vmem:[%s0 + $0x124] sm:$0xf]
  %v86 = vld [vmem:[%s0 + $0x128] sm:$0xf]
  %v87 = vld [vmem:[%s0 + $0x12c] sm:$0xf]
  %v88 = vld [vmem:[%s0 + $0x130] sm:$0xf]
  %v89 = vld [vmem:[%s0 + $0x134] sm:$0xf]
  %v90 = vld [vmem:[%s0 + $0x138] sm:$0xf]
  %v91 = vld [vmem:[%s0 + $0x13c] sm:$0xf]
  %v92 = vld [vmem:[%s0 + $0x140] sm:$0xf]
  %v93 = vld [vmem:[%s0 + $0x144] sm:$0xf]
  %v94 = vld [vmem:[%s0 + $0x148] sm:$0xf]
  %v95 = vld [vmem:[%s0 + $0x14c] sm:$0xf]
  %v96 = vld [vmem:[%s0 + $0x150] sm:$0xf]
  %v97 = vld [vmem:[%s0 + $0x154] sm:$0xf]
  %v98 = vld [vmem:[%s0 + $0x158] sm:$0xf]
  %v99 = vld [vmem:[%s0 + $0x15c] sm:$0xf]
  %v100 = vld [vmem:[%s0 + $0x160] sm:$0xf]
  %v101 = vld [vmem:[%s0 + $0x164] sm:$0xf]
  %v102 = vld [vmem:[%s0 + $0x168] sm:$0xf]
  %v103 = vld [vmem:[%s0 + $0x16c] sm:$0xf]
  %v104 = vld [vmem:[%s0 + $0x170] sm:$0xf]
  %v105 = vld [vmem:[%s0 + $0x174] sm:$0xf]
  %v106 = vld [vmem:[%s0 + $0x178] sm:$0xf]
  %v107 = vld [vmem:[%s0 + $0x17c] sm:$0xf]
  %v108 = vld [vmem:[%s0 + $0x180] sm:$0xf]
  %v109 = vld [vmem:[%s0 + $0x184] sm:$0xf]
  %v110 = vld [vmem:[%s0 + $0x188] sm:$0xf]
  %v111 = vld [vmem:[%s0 + $0x18c] sm:$0xf]
  %v112 = vld [vmem:[%s0 + $0x190] sm:$0xf]
  %v113 = vld [vmem:[%s0 + $0x194] sm:$0xf]
  %v114 = vld [vmem:[%s0 + $0x198] sm:$0xf]
  %v115 = vld [vmem:[%s0 + $0x19c] sm:$0xf]
  %v116 = vld [vmem:[%s0 + $0x1a0] sm:$0xf]
  %v117 = vld [vmem:[%s0 + $0x1a4] sm:$0xf]
  %v118 = vld [vmem:[%s0 + $0x1a8] sm:$0xf]
  %v119 = vld [vmem:[%s0 + $0x1ac] sm:$0xf]
  %v120 = vld [vmem:[%s0 + $0x1b0] sm:$0xf]
  %v121 = vld [vmem:[%s0 + $0x1b4] sm:$0xf]
  %v122 = vld [vmem:[%s0 + $0x1b8] sm:$0xf]
  %v123 = vld [vmem:[%s0 + $0x1bc] sm:$0xf]
  %v124 = vld [vmem:[%s0 + $0x1c0] sm:$0xf]
  %v125 = vld [vmem:[%s0 + $0x1c4] sm:$0xf]
  %v126 = vld [vmem:[%s0 + $0x1c8] sm:$0xf]
  %v127 = vld [vmem:[%s0 + $0x1cc] sm:$0xf]
  %v128 = vld [vmem:[%s0 + $0x1d0] sm:$0xf]
  %v129 = vld [vmem:[%s0 + $0x1d4] sm:$0xf]
  %v130 = vld [vmem:[%s0 + $0x1d8] sm:$0xf]
  %v131 = vld [vmem:[%s0 + $0x1dc] sm:$0xf]
  %v132 = vld [vmem:[%s0 + $0x1e0] sm:$0xf]
  %v133 = vld [vmem:[%s0 + $0x1e4] sm:$0xf]
  %v134 = vld [vmem:[%s0 + $0x1e8] sm:$0xf]
  %v135 = vld [vmem:[%s0 + $0x1ec] sm:$0xf]
  %v136 = vld [vmem:[%s0 + $0x1f0] sm:$0xf]
  %v137 = vld [vmem:[%s0 + $0x1f4] sm:$0xf]
  %v138 = vld [vmem:[%s0 + $0x1f8] sm:$0xf]
  %v139 = vld [vmem:[%s0 + $0x1fc] sm:$0xf]
  %v140 = vld [vmem:[%s1] sm:$0xff]
  %v141 = vld [vmem:[%s1 + $0x8] sm:$0xff]
  %v270 = vunpack.c.l.b16 %v12
  %v271 = vunpack.c.l.b16 %v13
  %v272 = vunpack.c.l.b16 %v14
  %v273 = vunpack.c.l.b16 %v15
  %v274 = vunpack.c.l.b16 %v16
  %v275 = vunpack.c.l.b16 %v17
  %v276 = vunpack.c.l.b16 %v18
  %v277 = vunpack.c.l.b16 %v19
  %v278 = vunpack.c.l.b16 %v20
  %v279 = vunpack.c.l.b16 %v21
  %v280 = vunpack.c.l.b16 %v22
  %v281 = vunpack.c.l.b16 %v23
  %v282 = vunpack.c.l.b16 %v24
  %v283 = vunpack.c.l.b16 %v25
  %v284 = vunpack.c.l.b16 %v26
  %v285 = vunpack.c.l.b16 %v27
  %v286 = vunpack.c.l.b16 %v28
  %v287 = vunpack.c.l.b16 %v29
  %v288 = vunpack.c.l.b16 %v30
  %v289 = vunpack.c.l.b16 %v31
  %v290 = vunpack.c.l.b16 %v32
  %v291 = vunpack.c.l.b16 %v33
  %v292 = vunpack.c.l.b16 %v34
  %v293 = vunpack.c.l.b16 %v35
  %v294 = vunpack.c.l.b16 %v36
  %v295 = vunpack.c.l.b16 %v37
  %v296 = vunpack.c.l.b16 %v38
  %v297 = vunpack.c.l.b16 %v39
  %v298 = vunpack.c.l.b16 %v40
  %v299 = vunpack.c.l.b16 %v41
  %v300 = vunpack.c.l.b16 %v42
  %v301 = vunpack.c.l.b16 %v43
  %v302 = vunpack.c.l.b16 %v44
  %v303 = vunpack.c.l.b16 %v45
  %v304 = vunpack.c.l.b16 %v46
  %v305 = vunpack.c.l.b16 %v47
  %v306 = vunpack.c.l.b16 %v48
  %v307 = vunpack.c.l.b16 %v49
  %v308 = vunpack.c.l.b16 %v50
  %v309 = vunpack.c.l.b16 %v51
  %v310 = vunpack.c.l.b16 %v52
  %v311 = vunpack.c.l.b16 %v53
  %v312 = vunpack.c.l.b16 %v54
  %v313 = vunpack.c.l.b16 %v55
  %v314 = vunpack.c.l.b16 %v56
  %v315 = vunpack.c.l.b16 %v57
  %v316 = vunpack.c.l.b16 %v58
  %v317 = vunpack.c.l.b16 %v59
  %v318 = vunpack.c.l.b16 %v60
  %v319 = vunpack.c.l.b16 %v61
  %v320 = vunpack.c.l.b16 %v62
  %v321 = vunpack.c.l.b16 %v63
  %v322 = vunpack.c.l.b16 %v64
  %v323 = vunpack.c.l.b16 %v65
  %v324 = vunpack.c.l.b16 %v66
  %v325 = vunpack.c.l.b16 %v67
  %v326 = vunpack.c.l.b16 %v68
  %v327 = vunpack.c.l.b16 %v69
  %v328 = vunpack.c.l.b16 %v70
  %v329 = vunpack.c.l.b16 %v71
  %v330 = vunpack.c.l.b16 %v72
  %v331 = vunpack.c.l.b16 %v73
  %v332 = vunpack.c.l.b16 %v74
  %v333 = vunpack.c.l.b16 %v75
  %v334 = vunpack.c.l.b16 %v76
  %v335 = vunpack.c.l.b16 %v77
  %v336 = vunpack.c.l.b16 %v78
  %v337 = vunpack.c.l.b16 %v79
  %v338 = vunpack.c.l.b16 %v80
  %v339 = vunpack.c.l.b16 %v81
  %v340 = vunpack.c.l.b16 %v82
  %v341 = vunpack.c.l.b16 %v83
  %v342 = vunpack.c.l.b16 %v84
  %v343 = vunpack.c.l.b16 %v85
  %v344 = vunpack.c.l.b16 %v86
  %v345 = vunpack.c.l.b16 %v87
  %v346 = vunpack.c.l.b16 %v88
  %v347 = vunpack.c.l.b16 %v89
  %v348 = vunpack.c.l.b16 %v90
  %v349 = vunpack.c.l.b16 %v91
  %v350 = vunpack.c.l.b16 %v92
  %v351 = vunpack.c.l.b16 %v93
  %v352 = vunpack.c.l.b16 %v94
  %v353 = vunpack.c.l.b16 %v95
  %v354 = vunpack.c.l.b16 %v96
  %v355 = vunpack.c.l.b16 %v97
  %v356 = vunpack.c.l.b16 %v98
  %v357 = vunpack.c.l.b16 %v99
  %v358 = vunpack.c.l.b16 %v100
  %v359 = vunpack.c.l.b16 %v101
  %v360 = vunpack.c.l.b16 %v102
  %v361 = vunpack.c.l.b16 %v103
  %v362 = vunpack.c.l.b16 %v104
  %v363 = vunpack.c.l.b16 %v105
  %v364 = vunpack.c.l.b16 %v106
  %v365 = vunpack.c.l.b16 %v107
  %v366 = vunpack.c.l.b16 %v108
  %v367 = vunpack.c.l.b16 %v109
  %v368 = vunpack.c.l.b16 %v110
  %v369 = vunpack.c.l.b16 %v111
  %v370 = vunpack.c.l.b16 %v112
  %v371 = vunpack.c.l.b16 %v113
  %v372 = vunpack.c.l.b16 %v114
  %v373 = vunpack.c.l.b16 %v115
  %v374 = vunpack.c.l.b16 %v116
  %v375 = vunpack.c.l.b16 %v117
  %v376 = vunpack.c.l.b16 %v118
  %v377 = vunpack.c.l.b16 %v119
  %v378 = vunpack.c.l.b16 %v120
  %v379 = vunpack.c.l.b16 %v121
  %v380 = vunpack.c.l.b16 %v122
  %v381 = vunpack.c.l.b16 %v123
  %v382 = vunpack.c.l.b16 %v124
  %v383 = vunpack.c.l.b16 %v125
  %v384 = vunpack.c.l.b16 %v126
  %v385 = vunpack.c.l.b16 %v127
  %v386 = vunpack.c.l.b16 %v128
  %v387 = vunpack.c.l.b16 %v129
  %v388 = vunpack.c.l.b16 %v130
  %v389 = vunpack.c.l.b16 %v131
  %v390 = vunpack.c.l.b16 %v132
  %v391 = vunpack.c.l.b16 %v133
  %v392 = vunpack.c.l.b16 %v134
  %v393 = vunpack.c.l.b16 %v135
  %v394 = vunpack.c.l.b16 %v136
  %v395 = vunpack.c.l.b16 %v137
  %v396 = vunpack.c.l.b16 %v138
  %v397 = vunpack.c.l.b16 %v139
  %v398 = vpack.c.b16 %v271, %v270
  %v399 = vpack.c.b16 %v273, %v272
  %v400 = vpack.c.b16 %v275, %v274
  %v401 = vpack.c.b16 %v277, %v276
  %v402 = vpack.c.b16 %v279, %v278
  %v403 = vpack.c.b16 %v281, %v280
  %v404 = vpack.c.b16 %v283, %v282
  %v405 = vpack.c.b16 %v285, %v284
  %v406 = vpack.c.b16 %v287, %v286
  %v407 = vpack.c.b16 %v289, %v288
  %v408 = vpack.c.b16 %v291, %v290
  %v409 = vpack.c.b16 %v293, %v292
  %v410 = vpack.c.b16 %v295, %v294
  %v411 = vpack.c.b16 %v297, %v296
  %v412 = vpack.c.b16 %v299, %v298
  %v413 = vpack.c.b16 %v301, %v300
  %v414 = vpack.c.b16 %v303, %v302
  %v415 = vpack.c.b16 %v305, %v304
  %v416 = vpack.c.b16 %v307, %v306
  %v417 = vpack.c.b16 %v309, %v308
  %v418 = vpack.c.b16 %v311, %v310
  %v419 = vpack.c.b16 %v313, %v312
  %v420 = vpack.c.b16 %v315, %v314
  %v421 = vpack.c.b16 %v317, %v316
  %v422 = vpack.c.b16 %v319, %v318
  %v423 = vpack.c.b16 %v321, %v320
  %v424 = vpack.c.b16 %v323, %v322
  %v425 = vpack.c.b16 %v325, %v324
  %v426 = vpack.c.b16 %v327, %v326
  %v427 = vpack.c.b16 %v329, %v328
  %v428 = vpack.c.b16 %v331, %v330
  %v429 = vpack.c.b16 %v333, %v332
  %v430 = vpack.c.b16 %v335, %v334
  %v431 = vpack.c.b16 %v337, %v336
  %v432 = vpack.c.b16 %v339, %v338
  %v433 = vpack.c.b16 %v341, %v340
  %v434 = vpack.c.b16 %v343, %v342
  %v435 = vpack.c.b16 %v345, %v344
  %v436 = vpack.c.b16 %v347, %v346
  %v437 = vpack.c.b16 %v349, %v348
  %v438 = vpack.c.b16 %v351, %v350
  %v439 = vpack.c.b16 %v353, %v352
  %v440 = vpack.c.b16 %v355, %v354
  %v441 = vpack.c.b16 %v357, %v356
  %v442 = vpack.c.b16 %v359, %v358
  %v443 = vpack.c.b16 %v361, %v360
  %v444 = vpack.c.b16 %v363, %v362
  %v445 = vpack.c.b16 %v365, %v364
  %v446 = vpack.c.b16 %v367, %v366
  %v447 = vpack.c.b16 %v369, %v368
  %v448 = vpack.c.b16 %v371, %v370
  %v449 = vpack.c.b16 %v373, %v372
  %v450 = vpack.c.b16 %v375, %v374
  %v451 = vpack.c.b16 %v377, %v376
  %v452 = vpack.c.b16 %v379, %v378
  %v453 = vpack.c.b16 %v381, %v380
  %v454 = vpack.c.b16 %v383, %v382
  %v455 = vpack.c.b16 %v385, %v384
  %v456 = vpack.c.b16 %v387, %v386
  %v457 = vpack.c.b16 %v389, %v388
  %v458 = vpack.c.b16 %v391, %v390
  %v459 = vpack.c.b16 %v393, %v392
  %v460 = vpack.c.b16 %v395, %v394
  %v461 = vpack.c.b16 %v397, %v396
  %v464 = vunpack.c.l.b16 %v140
  %v465 = vunpack.c.h.b16 %v140
  %v466 = vunpack.c.l.b16 %v141
  %v467 = vunpack.c.h.b16 %v141
  %v468 = vpack.c.b16 %v466, %v464
  %v469 = vpack.c.b16 %v467, %v465
  %vm472 = vcmask 130048
  %v474 = vsel %vm472, %v398, 0
  %v477 = vsel %vm472, %v399, 0
  %v480 = vsel %vm472, %v400, 0
  %v483 = vsel %vm472, %v401, 0
  %v486 = vsel %vm472, %v402, 0
  %v489 = vsel %vm472, %v403, 0
  %v492 = vsel %vm472, %v404, 0
  %v495 = vsel %vm472, %v405, 0
  %v498 = vsel %vm472, %v406, 0
  %v501 = vsel %vm472, %v407, 0
  %v504 = vsel %vm472, %v408, 0
  %v507 = vsel %vm472, %v409, 0
  %v510 = vsel %vm472, %v410, 0
  %v513 = vsel %vm472, %v411, 0
  %v516 = vsel %vm472, %v412, 0
  %v519 = vsel %vm472, %v413, 0
  %v522 = vsel %vm472, %v414, 0
  %v525 = vsel %vm472, %v415, 0
  %v528 = vsel %vm472, %v416, 0
  %v531 = vsel %vm472, %v417, 0
  %v534 = vsel %vm472, %v418, 0
  %v537 = vsel %vm472, %v419, 0
  %v540 = vsel %vm472, %v420, 0
  %v543 = vsel %vm472, %v421, 0
  %v546 = vsel %vm472, %v422, 0
  %v549 = vsel %vm472, %v423, 0
  %v552 = vsel %vm472, %v424, 0
  %v555 = vsel %vm472, %v425, 0
  %v558 = vsel %vm472, %v426, 0
  %v561 = vsel %vm472, %v427, 0
  %v564 = vsel %vm472, %v428, 0
  %v567 = vsel %vm472, %v429, 0
  %v570 = vsel %vm472, %v430, 0
  %v573 = vsel %vm472, %v431, 0
  %v576 = vsel %vm472, %v432, 0
  %v579 = vsel %vm472, %v433, 0
  %v582 = vsel %vm472, %v434, 0
  %v585 = vsel %vm472, %v435, 0
  %v588 = vsel %vm472, %v436, 0
  %v591 = vsel %vm472, %v437, 0
  %v594 = vsel %vm472, %v438, 0
  %v597 = vsel %vm472, %v439, 0
  %v600 = vsel %vm472, %v440, 0
  %v603 = vsel %vm472, %v441, 0
  %v606 = vsel %vm472, %v442, 0
  %v609 = vsel %vm472, %v443, 0
  %v612 = vsel %vm472, %v444, 0
  %v615 = vsel %vm472, %v445, 0
  %v618 = vsel %vm472, %v446, 0
  %v621 = vsel %vm472, %v447, 0
  %v624 = vsel %vm472, %v448, 0
  %v627 = vsel %vm472, %v449, 0
  %v630 = vsel %vm472, %v450, 0
  %v633 = vsel %vm472, %v451, 0
  %v636 = vsel %vm472, %v452, 0
  %v639 = vsel %vm472, %v453, 0
  %v642 = vsel %vm472, %v454, 0
  %v645 = vsel %vm472, %v455, 0
  %v648 = vsel %vm472, %v456, 0
  %v651 = vsel %vm472, %v457, 0
  %v654 = vsel %vm472, %v458, 0
  %v657 = vsel %vm472, %v459, 0
  %v660 = vsel %vm472, %v460, 0
  %v663 = vsel %vm472, %v461, 0
  %665 = vmatpush.bf16.msra.mxu0 0
  %666 = vmatpush.bf16.msra.mxu0 0
  %667 = vmatpush.bf16.msra.mxu0 0
  %668 = vmatpush.bf16.msra.mxu0 0
  %669 = vmatpush.bf16.msra.mxu0 0
  %670 = vmatpush.bf16.msra.mxu0 0
  %671 = vmatpush.bf16.msra.mxu0 0
  %672 = vmatpush.bf16.msra.mxu0 %v468
  %673 = vmatmul.bf16.gmra.mxu0 %v474
  %v674 = vpop.f32.mrf.mxu0
  %v675 = vadd.f32 0.0, %v674
  %v676 = vpop.f32.mrf.mxu0
  %v677 = vadd.f32 0.0, %v676
  %678 = vmatmul.bf16.gmra.mxu0 %v477
  %v679 = vpop.f32.mrf.mxu0
  %v680 = vadd.f32 0.0, %v679
  %v681 = vpop.f32.mrf.mxu0
  %v682 = vadd.f32 0.0, %v681
  %683 = vmatmul.bf16.gmra.mxu0 %v480
  %v684 = vpop.f32.mrf.mxu0
  %v685 = vadd.f32 0.0, %v684
  %v686 = vpop.f32.mrf.mxu0
  %v687 = vadd.f32 0.0, %v686
  %688 = vmatmul.bf16.gmra.mxu0 %v483
  %v689 = vpop.f32.mrf.mxu0
  %v690 = vadd.f32 0.0, %v689
  %v691 = vpop.f32.mrf.mxu0
  %v692 = vadd.f32 0.0, %v691
  %693 = vmatmul.bf16.gmra.mxu0 %v486
  %v694 = vpop.f32.mrf.mxu0
  %v695 = vadd.f32 0.0, %v694
  %v696 = vpop.f32.mrf.mxu0
  %v697 = vadd.f32 0.0, %v696
  %698 = vmatmul.bf16.gmra.mxu0 %v489
  %v699 = vpop.f32.mrf.mxu0
  %v700 = vadd.f32 0.0, %v699
  %v701 = vpop.f32.mrf.mxu0
  %v702 = vadd.f32 0.0, %v701
  %703 = vmatmul.bf16.gmra.mxu0 %v492
  %v704 = vpop.f32.mrf.mxu0
  %v705 = vadd.f32 0.0, %v704
  %v706 = vpop.f32.mrf.mxu0
  %v707 = vadd.f32 0.0, %v706
  %708 = vmatmul.bf16.gmra.mxu0 %v495
  %v709 = vpop.f32.mrf.mxu0
  %v710 = vadd.f32 0.0, %v709
  %v711 = vpop.f32.mrf.mxu0
  %v712 = vadd.f32 0.0, %v711
  %713 = vmatmul.bf16.gmra.mxu0 %v498
  %v714 = vpop.f32.mrf.mxu0
  %v715 = vadd.f32 0.0, %v714
  %v716 = vpop.f32.mrf.mxu0
  %v717 = vadd.f32 0.0, %v716
  %718 = vmatmul.bf16.gmra.mxu0 %v501
  %v719 = vpop.f32.mrf.mxu0
  %v720 = vadd.f32 0.0, %v719
  %v721 = vpop.f32.mrf.mxu0
  %v722 = vadd.f32 0.0, %v721
  %723 = vmatmul.bf16.gmra.mxu0 %v504
  %v724 = vpop.f32.mrf.mxu0
  %v725 = vadd.f32 0.0, %v724
  %v726 = vpop.f32.mrf.mxu0
  %v727 = vadd.f32 0.0, %v726
  %728 = vmatmul.bf16.gmra.mxu0 %v507
  %v729 = vpop.f32.mrf.mxu0
  %v730 = vadd.f32 0.0, %v729
  %v731 = vpop.f32.mrf.mxu0
  %v732 = vadd.f32 0.0, %v731
  %733 = vmatmul.bf16.gmra.mxu0 %v510
  %v734 = vpop.f32.mrf.mxu0
  %v735 = vadd.f32 0.0, %v734
  %v736 = vpop.f32.mrf.mxu0
  %v737 = vadd.f32 0.0, %v736
  %738 = vmatmul.bf16.gmra.mxu0 %v513
  %v739 = vpop.f32.mrf.mxu0
  %v740 = vadd.f32 0.0, %v739
  %v741 = vpop.f32.mrf.mxu0
  %v742 = vadd.f32 0.0, %v741
  %743 = vmatmul.bf16.gmra.mxu0 %v516
  %v744 = vpop.f32.mrf.mxu0
  %v745 = vadd.f32 0.0, %v744
  %v746 = vpop.f32.mrf.mxu0
  %v747 = vadd.f32 0.0, %v746
  %748 = vmatmul.bf16.gmra.mxu0 %v519
  %v749 = vpop.f32.mrf.mxu0
  %v750 = vadd.f32 0.0, %v749
  %v751 = vpop.f32.mrf.mxu0
  %v752 = vadd.f32 0.0, %v751
  %753 = vmatmul.bf16.gmra.mxu0 %v522
  %v754 = vpop.f32.mrf.mxu0
  %v755 = vadd.f32 0.0, %v754
  %v756 = vpop.f32.mrf.mxu0
  %v757 = vadd.f32 0.0, %v756
  %758 = vmatmul.bf16.gmra.mxu0 %v525
  %v759 = vpop.f32.mrf.mxu0
  %v760 = vadd.f32 0.0, %v759
  %v761 = vpop.f32.mrf.mxu0
  %v762 = vadd.f32 0.0, %v761
  %763 = vmatmul.bf16.gmra.mxu0 %v528
  %v764 = vpop.f32.mrf.mxu0
  %v765 = vadd.f32 0.0, %v764
  %v766 = vpop.f32.mrf.mxu0
  %v767 = vadd.f32 0.0, %v766
  %768 = vmatmul.bf16.gmra.mxu0 %v531
  %v769 = vpop.f32.mrf.mxu0
  %v770 = vadd.f32 0.0, %v769
  %v771 = vpop.f32.mrf.mxu0
  %v772 = vadd.f32 0.0, %v771
  %773 = vmatmul.bf16.gmra.mxu0 %v534
  %v774 = vpop.f32.mrf.mxu0
  %v775 = vadd.f32 0.0, %v774
  %v776 = vpop.f32.mrf.mxu0
  %v777 = vadd.f32 0.0, %v776
  %778 = vmatmul.bf16.gmra.mxu0 %v537
  %v779 = vpop.f32.mrf.mxu0
  %v780 = vadd.f32 0.0, %v779
  %v781 = vpop.f32.mrf.mxu0
  %v782 = vadd.f32 0.0, %v781
  %783 = vmatmul.bf16.gmra.mxu0 %v540
  %v784 = vpop.f32.mrf.mxu0
  %v785 = vadd.f32 0.0, %v784
  %v786 = vpop.f32.mrf.mxu0
  %v787 = vadd.f32 0.0, %v786
  %788 = vmatmul.bf16.gmra.mxu0 %v543
  %v789 = vpop.f32.mrf.mxu0
  %v790 = vadd.f32 0.0, %v789
  %v791 = vpop.f32.mrf.mxu0
  %v792 = vadd.f32 0.0, %v791
  %793 = vmatmul.bf16.gmra.mxu0 %v546
  %v794 = vpop.f32.mrf.mxu0
  %v795 = vadd.f32 0.0, %v794
  %v796 = vpop.f32.mrf.mxu0
  %v797 = vadd.f32 0.0, %v796
  %798 = vmatmul.bf16.gmra.mxu0 %v549
  %v799 = vpop.f32.mrf.mxu0
  %v800 = vadd.f32 0.0, %v799
  %v801 = vpop.f32.mrf.mxu0
  %v802 = vadd.f32 0.0, %v801
  %803 = vmatmul.bf16.gmra.mxu0 %v552
  %v804 = vpop.f32.mrf.mxu0
  %v805 = vadd.f32 0.0, %v804
  %v806 = vpop.f32.mrf.mxu0
  %v807 = vadd.f32 0.0, %v806
  %808 = vmatmul.bf16.gmra.mxu0 %v555
  %v809 = vpop.f32.mrf.mxu0
  %v810 = vadd.f32 0.0, %v809
  %v811 = vpop.f32.mrf.mxu0
  %v812 = vadd.f32 0.0, %v811
  %813 = vmatmul.bf16.gmra.mxu0 %v558
  %v814 = vpop.f32.mrf.mxu0
  %v815 = vadd.f32 0.0, %v814
  %v816 = vpop.f32.mrf.mxu0
  %v817 = vadd.f32 0.0, %v816
  %818 = vmatmul.bf16.gmra.mxu0 %v561
  %v819 = vpop.f32.mrf.mxu0
  %v820 = vadd.f32 0.0, %v819
  %v821 = vpop.f32.mrf.mxu0
  %v822 = vadd.f32 0.0, %v821
  %823 = vmatmul.bf16.gmra.mxu0 %v564
  %v824 = vpop.f32.mrf.mxu0
  %v825 = vadd.f32 0.0, %v824
  %v826 = vpop.f32.mrf.mxu0
  %v827 = vadd.f32 0.0, %v826
  %828 = vmatmul.bf16.gmra.mxu0 %v567
  %v829 = vpop.f32.mrf.mxu0
  %v830 = vadd.f32 0.0, %v829
  %v831 = vpop.f32.mrf.mxu0
  %v832 = vadd.f32 0.0, %v831
  %833 = vmatmul.bf16.gmra.mxu0 %v570
  %v834 = vpop.f32.mrf.mxu0
  %v835 = vadd.f32 0.0, %v834
  %v836 = vpop.f32.mrf.mxu0
  %v837 = vadd.f32 0.0, %v836
  %838 = vmatmul.bf16.gmra.mxu0 %v573
  %v839 = vpop.f32.mrf.mxu0
  %v840 = vadd.f32 0.0, %v839
  %v841 = vpop.f32.mrf.mxu0
  %v842 = vadd.f32 0.0, %v841
  %843 = vmatmul.bf16.gmra.mxu0 %v576
  %v844 = vpop.f32.mrf.mxu0
  %v845 = vadd.f32 0.0, %v844
  %v846 = vpop.f32.mrf.mxu0
  %v847 = vadd.f32 0.0, %v846
  %848 = vmatmul.bf16.gmra.mxu0 %v579
  %v849 = vpop.f32.mrf.mxu0
  %v850 = vadd.f32 0.0, %v849
  %v851 = vpop.f32.mrf.mxu0
  %v852 = vadd.f32 0.0, %v851
  %853 = vmatmul.bf16.gmra.mxu0 %v582
  %v854 = vpop.f32.mrf.mxu0
  %v855 = vadd.f32 0.0, %v854
  %v856 = vpop.f32.mrf.mxu0
  %v857 = vadd.f32 0.0, %v856
  %858 = vmatmul.bf16.gmra.mxu0 %v585
  %v859 = vpop.f32.mrf.mxu0
  %v860 = vadd.f32 0.0, %v859
  %v861 = vpop.f32.mrf.mxu0
  %v862 = vadd.f32 0.0, %v861
  %863 = vmatmul.bf16.gmra.mxu0 %v588
  %v864 = vpop.f32.mrf.mxu0
  %v865 = vadd.f32 0.0, %v864
  %v866 = vpop.f32.mrf.mxu0
  %v867 = vadd.f32 0.0, %v866
  %868 = vmatmul.bf16.gmra.mxu0 %v591
  %v869 = vpop.f32.mrf.mxu0
  %v870 = vadd.f32 0.0, %v869
  %v871 = vpop.f32.mrf.mxu0
  %v872 = vadd.f32 0.0, %v871
  %873 = vmatmul.bf16.gmra.mxu0 %v594
  %v874 = vpop.f32.mrf.mxu0
  %v875 = vadd.f32 0.0, %v874
  %v876 = vpop.f32.mrf.mxu0
  %v877 = vadd.f32 0.0, %v876
  %878 = vmatmul.bf16.gmra.mxu0 %v597
  %v879 = vpop.f32.mrf.mxu0
  %v880 = vadd.f32 0.0, %v879
  %v881 = vpop.f32.mrf.mxu0
  %v882 = vadd.f32 0.0, %v881
  %883 = vmatmul.bf16.gmra.mxu0 %v600
  %v884 = vpop.f32.mrf.mxu0
  %v885 = vadd.f32 0.0, %v884
  %v886 = vpop.f32.mrf.mxu0
  %v887 = vadd.f32 0.0, %v886
  %888 = vmatmul.bf16.gmra.mxu0 %v603
  %v889 = vpop.f32.mrf.mxu0
  %v890 = vadd.f32 0.0, %v889
  %v891 = vpop.f32.mrf.mxu0
  %v892 = vadd.f32 0.0, %v891
  %893 = vmatmul.bf16.gmra.mxu0 %v606
  %v894 = vpop.f32.mrf.mxu0
  %v895 = vadd.f32 0.0, %v894
  %v896 = vpop.f32.mrf.mxu0
  %v897 = vadd.f32 0.0, %v896
  %898 = vmatmul.bf16.gmra.mxu0 %v609
  %v899 = vpop.f32.mrf.mxu0
  %v900 = vadd.f32 0.0, %v899
  %v901 = vpop.f32.mrf.mxu0
  %v902 = vadd.f32 0.0, %v901
  %903 = vmatmul.bf16.gmra.mxu0 %v612
  %v904 = vpop.f32.mrf.mxu0
  %v905 = vadd.f32 0.0, %v904
  %v906 = vpop.f32.mrf.mxu0
  %v907 = vadd.f32 0.0, %v906
  %908 = vmatmul.bf16.gmra.mxu0 %v615
  %v909 = vpop.f32.mrf.mxu0
  %v910 = vadd.f32 0.0, %v909
  %v911 = vpop.f32.mrf.mxu0
  %v912 = vadd.f32 0.0, %v911
  %913 = vmatmul.bf16.gmra.mxu0 %v618
  %v914 = vpop.f32.mrf.mxu0
  %v915 = vadd.f32 0.0, %v914
  %v916 = vpop.f32.mrf.mxu0
  %v917 = vadd.f32 0.0, %v916
  %918 = vmatmul.bf16.gmra.mxu0 %v621
  %v919 = vpop.f32.mrf.mxu0
  %v920 = vadd.f32 0.0, %v919
  %v921 = vpop.f32.mrf.mxu0
  %v922 = vadd.f32 0.0, %v921
  %923 = vmatmul.bf16.gmra.mxu0 %v624
  %v924 = vpop.f32.mrf.mxu0
  %v925 = vadd.f32 0.0, %v924
  %v926 = vpop.f32.mrf.mxu0
  %v927 = vadd.f32 0.0, %v926
  %928 = vmatmul.bf16.gmra.mxu0 %v627
  %v929 = vpop.f32.mrf.mxu0
  %v930 = vadd.f32 0.0, %v929
  %v931 = vpop.f32.mrf.mxu0
  %v932 = vadd.f32 0.0, %v931
  %933 = vmatmul.bf16.gmra.mxu0 %v630
  %v934 = vpop.f32.mrf.mxu0
  %v935 = vadd.f32 0.0, %v934
  %v936 = vpop.f32.mrf.mxu0
  %v937 = vadd.f32 0.0, %v936
  %938 = vmatmul.bf16.gmra.mxu0 %v633
  %v939 = vpop.f32.mrf.mxu0
  %v940 = vadd.f32 0.0, %v939
  %v941 = vpop.f32.mrf.mxu0
  %v942 = vadd.f32 0.0, %v941
  %943 = vmatmul.bf16.gmra.mxu0 %v636
  %v944 = vpop.f32.mrf.mxu0
  %v945 = vadd.f32 0.0, %v944
  %v946 = vpop.f32.mrf.mxu0
  %v947 = vadd.f32 0.0, %v946
  %948 = vmatmul.bf16.gmra.mxu0 %v639
  %v949 = vpop.f32.mrf.mxu0
  %v950 = vadd.f32 0.0, %v949
  %v951 = vpop.f32.mrf.mxu0
  %v952 = vadd.f32 0.0, %v951
  %953 = vmatmul.bf16.gmra.mxu0 %v642
  %v954 = vpop.f32.mrf.mxu0
  %v955 = vadd.f32 0.0, %v954
  %v956 = vpop.f32.mrf.mxu0
  %v957 = vadd.f32 0.0, %v956
  %958 = vmatmul.bf16.gmra.mxu0 %v645
  %v959 = vpop.f32.mrf.mxu0
  %v960 = vadd.f32 0.0, %v959
  %v961 = vpop.f32.mrf.mxu0
  %v962 = vadd.f32 0.0, %v961
  %963 = vmatmul.bf16.gmra.mxu0 %v648
  %v964 = vpop.f32.mrf.mxu0
  %v965 = vadd.f32 0.0, %v964
  %v966 = vpop.f32.mrf.mxu0
  %v967 = vadd.f32 0.0, %v966
  %968 = vmatmul.bf16.gmra.mxu0 %v651
  %v969 = vpop.f32.mrf.mxu0
  %v970 = vadd.f32 0.0, %v969
  %v971 = vpop.f32.mrf.mxu0
  %v972 = vadd.f32 0.0, %v971
  %973 = vmatmul.bf16.gmra.mxu0 %v654
  %v974 = vpop.f32.mrf.mxu0
  %v975 = vadd.f32 0.0, %v974
  %v976 = vpop.f32.mrf.mxu0
  %v977 = vadd.f32 0.0, %v976
  %978 = vmatmul.bf16.gmra.mxu0 %v657
  %v979 = vpop.f32.mrf.mxu0
  %v980 = vadd.f32 0.0, %v979
  %v981 = vpop.f32.mrf.mxu0
  %v982 = vadd.f32 0.0, %v981
  %983 = vmatmul.bf16.gmra.mxu0 %v660
  %v984 = vpop.f32.mrf.mxu0
  %v985 = vadd.f32 0.0, %v984
  %v986 = vpop.f32.mrf.mxu0
  %v987 = vadd.f32 0.0, %v986
  %988 = vmatmul.bf16.gmra.mxu0 %v663
  %v989 = vpop.f32.mrf.mxu0
  %v990 = vadd.f32 0.0, %v989
  %v991 = vpop.f32.mrf.mxu0
  %v992 = vadd.f32 0.0, %v991
  %993 = vdwg.mxu0
  %994 = vmatpush.bf16.msra.mxu0 0
  %995 = vmatpush.bf16.msra.mxu0 0
  %996 = vmatpush.bf16.msra.mxu0 0
  %997 = vmatpush.bf16.msra.mxu0 0
  %998 = vmatpush.bf16.msra.mxu0 0
  %999 = vmatpush.bf16.msra.mxu0 0
  %1000 = vmatpush.bf16.msra.mxu0 0
  %1001 = vmatpush.bf16.msra.mxu0 %v469
  %1002 = vmatmul.bf16.gmra.mxu0 %v474
  %v1003 = vpop.f32.mrf.mxu0
  %v1004 = vadd.f32 0.0, %v1003
  %v1005 = vpop.f32.mrf.mxu0
  %v1006 = vadd.f32 0.0, %v1005
  %1007 = vmatmul.bf16.gmra.mxu0 %v477
  %v1008 = vpop.f32.mrf.mxu0
  %v1009 = vadd.f32 0.0, %v1008
  %v1010 = vpop.f32.mrf.mxu0
  %v1011 = vadd.f32 0.0, %v1010
  %1012 = vmatmul.bf16.gmra.mxu0 %v480
  %v1013 = vpop.f32.mrf.mxu0
  %v1014 = vadd.f32 0.0, %v1013
  %v1015 = vpop.f32.mrf.mxu0
  %v1016 = vadd.f32 0.0, %v1015
  %1017 = vmatmul.bf16.gmra.mxu0 %v483
  %v1018 = vpop.f32.mrf.mxu0
  %v1019 = vadd.f32 0.0, %v1018
  %v1020 = vpop.f32.mrf.mxu0
  %v1021 = vadd.f32 0.0, %v1020
  %1022 = vmatmul.bf16.gmra.mxu0 %v486
  %v1023 = vpop.f32.mrf.mxu0
  %v1024 = vadd.f32 0.0, %v1023
  %v1025 = vpop.f32.mrf.mxu0
  %v1026 = vadd.f32 0.0, %v1025
  %1027 = vmatmul.bf16.gmra.mxu0 %v489
  %v1028 = vpop.f32.mrf.mxu0
  %v1029 = vadd.f32 0.0, %v1028
  %v1030 = vpop.f32.mrf.mxu0
  %v1031 = vadd.f32 0.0, %v1030
  %1032 = vmatmul.bf16.gmra.mxu0 %v492
  %v1033 = vpop.f32.mrf.mxu0
  %v1034 = vadd.f32 0.0, %v1033
  %v1035 = vpop.f32.mrf.mxu0
  %v1036 = vadd.f32 0.0, %v1035
  %1037 = vmatmul.bf16.gmra.mxu0 %v495
  %v1038 = vpop.f32.mrf.mxu0
  %v1039 = vadd.f32 0.0, %v1038
  %v1040 = vpop.f32.mrf.mxu0
  %v1041 = vadd.f32 0.0, %v1040
  %1042 = vmatmul.bf16.gmra.mxu0 %v498
  %v1043 = vpop.f32.mrf.mxu0
  %v1044 = vadd.f32 0.0, %v1043
  %v1045 = vpop.f32.mrf.mxu0
  %v1046 = vadd.f32 0.0, %v1045
  %1047 = vmatmul.bf16.gmra.mxu0 %v501
  %v1048 = vpop.f32.mrf.mxu0
  %v1049 = vadd.f32 0.0, %v1048
  %v1050 = vpop.f32.mrf.mxu0
  %v1051 = vadd.f32 0.0, %v1050
  %1052 = vmatmul.bf16.gmra.mxu0 %v504
  %v1053 = vpop.f32.mrf.mxu0
  %v1054 = vadd.f32 0.0, %v1053
  %v1055 = vpop.f32.mrf.mxu0
  %v1056 = vadd.f32 0.0, %v1055
  %1057 = vmatmul.bf16.gmra.mxu0 %v507
  %v1058 = vpop.f32.mrf.mxu0
  %v1059 = vadd.f32 0.0, %v1058
  %v1060 = vpop.f32.mrf.mxu0
  %v1061 = vadd.f32 0.0, %v1060
  %1062 = vmatmul.bf16.gmra.mxu0 %v510
  %v1063 = vpop.f32.mrf.mxu0
  %v1064 = vadd.f32 0.0, %v1063
  %v1065 = vpop.f32.mrf.mxu0
  %v1066 = vadd.f32 0.0, %v1065
  %1067 = vmatmul.bf16.gmra.mxu0 %v513
  %v1068 = vpop.f32.mrf.mxu0
  %v1069 = vadd.f32 0.0, %v1068
  %v1070 = vpop.f32.mrf.mxu0
  %v1071 = vadd.f32 0.0, %v1070
  %1072 = vmatmul.bf16.gmra.mxu0 %v516
  %v1073 = vpop.f32.mrf.mxu0
  %v1074 = vadd.f32 0.0, %v1073
  %v1075 = vpop.f32.mrf.mxu0
  %v1076 = vadd.f32 0.0, %v1075
  %1077 = vmatmul.bf16.gmra.mxu0 %v519
  %v1078 = vpop.f32.mrf.mxu0
  %v1079 = vadd.f32 0.0, %v1078
  %v1080 = vpop.f32.mrf.mxu0
  %v1081 = vadd.f32 0.0, %v1080
  %1082 = vmatmul.bf16.gmra.mxu0 %v522
  %v1083 = vpop.f32.mrf.mxu0
  %v1084 = vadd.f32 0.0, %v1083
  %v1085 = vpop.f32.mrf.mxu0
  %v1086 = vadd.f32 0.0, %v1085
  %1087 = vmatmul.bf16.gmra.mxu0 %v525
  %v1088 = vpop.f32.mrf.mxu0
  %v1089 = vadd.f32 0.0, %v1088
  %v1090 = vpop.f32.mrf.mxu0
  %v1091 = vadd.f32 0.0, %v1090
  %1092 = vmatmul.bf16.gmra.mxu0 %v528
  %v1093 = vpop.f32.mrf.mxu0
  %v1094 = vadd.f32 0.0, %v1093
  %v1095 = vpop.f32.mrf.mxu0
  %v1096 = vadd.f32 0.0, %v1095
  %1097 = vmatmul.bf16.gmra.mxu0 %v531
  %v1098 = vpop.f32.mrf.mxu0
  %v1099 = vadd.f32 0.0, %v1098
  %v1100 = vpop.f32.mrf.mxu0
  %v1101 = vadd.f32 0.0, %v1100
  %1102 = vmatmul.bf16.gmra.mxu0 %v534
  %v1103 = vpop.f32.mrf.mxu0
  %v1104 = vadd.f32 0.0, %v1103
  %v1105 = vpop.f32.mrf.mxu0
  %v1106 = vadd.f32 0.0, %v1105
  %1107 = vmatmul.bf16.gmra.mxu0 %v537
  %v1108 = vpop.f32.mrf.mxu0
  %v1109 = vadd.f32 0.0, %v1108
  %v1110 = vpop.f32.mrf.mxu0
  %v1111 = vadd.f32 0.0, %v1110
  %1112 = vmatmul.bf16.gmra.mxu0 %v540
  %v1113 = vpop.f32.mrf.mxu0
  %v1114 = vadd.f32 0.0, %v1113
  %v1115 = vpop.f32.mrf.mxu0
  %v1116 = vadd.f32 0.0, %v1115
  %1117 = vmatmul.bf16.gmra.mxu0 %v543
  %v1118 = vpop.f32.mrf.mxu0
  %v1119 = vadd.f32 0.0, %v1118
  %v1120 = vpop.f32.mrf.mxu0
  %v1121 = vadd.f32 0.0, %v1120
  %1122 = vmatmul.bf16.gmra.mxu0 %v546
  %v1123 = vpop.f32.mrf.mxu0
  %v1124 = vadd.f32 0.0, %v1123
  %v1125 = vpop.f32.mrf.mxu0
  %v1126 = vadd.f32 0.0, %v1125
  %1127 = vmatmul.bf16.gmra.mxu0 %v549
  %v1128 = vpop.f32.mrf.mxu0
  %v1129 = vadd.f32 0.0, %v1128
  %v1130 = vpop.f32.mrf.mxu0
  %v1131 = vadd.f32 0.0, %v1130
  %1132 = vmatmul.bf16.gmra.mxu0 %v552
  %v1133 = vpop.f32.mrf.mxu0
  %v1134 = vadd.f32 0.0, %v1133
  %v1135 = vpop.f32.mrf.mxu0
  %v1136 = vadd.f32 0.0, %v1135
  %1137 = vmatmul.bf16.gmra.mxu0 %v555
  %v1138 = vpop.f32.mrf.mxu0
  %v1139 = vadd.f32 0.0, %v1138
  %v1140 = vpop.f32.mrf.mxu0
  %v1141 = vadd.f32 0.0, %v1140
  %1142 = vmatmul.bf16.gmra.mxu0 %v558
  %v1143 = vpop.f32.mrf.mxu0
  %v1144 = vadd.f32 0.0, %v1143
  %v1145 = vpop.f32.mrf.mxu0
  %v1146 = vadd.f32 0.0, %v1145
  %1147 = vmatmul.bf16.gmra.mxu0 %v561
  %v1148 = vpop.f32.mrf.mxu0
  %v1149 = vadd.f32 0.0, %v1148
  %v1150 = vpop.f32.mrf.mxu0
  %v1151 = vadd.f32 0.0, %v1150
  %1152 = vmatmul.bf16.gmra.mxu0 %v564
  %v1153 = vpop.f32.mrf.mxu0
  %v1154 = vadd.f32 0.0, %v1153
  %v1155 = vpop.f32.mrf.mxu0
  %v1156 = vadd.f32 0.0, %v1155
  %1157 = vmatmul.bf16.gmra.mxu0 %v567
  %v1158 = vpop.f32.mrf.mxu0
  %v1159 = vadd.f32 0.0, %v1158
  %v1160 = vpop.f32.mrf.mxu0
  %v1161 = vadd.f32 0.0, %v1160
  %1162 = vmatmul.bf16.gmra.mxu0 %v570
  %v1163 = vpop.f32.mrf.mxu0
  %v1164 = vadd.f32 0.0, %v1163
  %v1165 = vpop.f32.mrf.mxu0
  %v1166 = vadd.f32 0.0, %v1165
  %1167 = vmatmul.bf16.gmra.mxu0 %v573
  %v1168 = vpop.f32.mrf.mxu0
  %v1169 = vadd.f32 0.0, %v1168
  %v1170 = vpop.f32.mrf.mxu0
  %v1171 = vadd.f32 0.0, %v1170
  %1172 = vmatmul.bf16.gmra.mxu0 %v576
  %v1173 = vpop.f32.mrf.mxu0
  %v1174 = vadd.f32 0.0, %v1173
  %v1175 = vpop.f32.mrf.mxu0
  %v1176 = vadd.f32 0.0, %v1175
  %1177 = vmatmul.bf16.gmra.mxu0 %v579
  %v1178 = vpop.f32.mrf.mxu0
  %v1179 = vadd.f32 0.0, %v1178
  %v1180 = vpop.f32.mrf.mxu0
  %v1181 = vadd.f32 0.0, %v1180
  %1182 = vmatmul.bf16.gmra.mxu0 %v582
  %v1183 = vpop.f32.mrf.mxu0
  %v1184 = vadd.f32 0.0, %v1183
  %v1185 = vpop.f32.mrf.mxu0
  %v1186 = vadd.f32 0.0, %v1185
  %1187 = vmatmul.bf16.gmra.mxu0 %v585
  %v1188 = vpop.f32.mrf.mxu0
  %v1189 = vadd.f32 0.0, %v1188
  %v1190 = vpop.f32.mrf.mxu0
  %v1191 = vadd.f32 0.0, %v1190
  %1192 = vmatmul.bf16.gmra.mxu0 %v588
  %v1193 = vpop.f32.mrf.mxu0
  %v1194 = vadd.f32 0.0, %v1193
  %v1195 = vpop.f32.mrf.mxu0
  %v1196 = vadd.f32 0.0, %v1195
  %1197 = vmatmul.bf16.gmra.mxu0 %v591
  %v1198 = vpop.f32.mrf.mxu0
  %v1199 = vadd.f32 0.0, %v1198
  %v1200 = vpop.f32.mrf.mxu0
  %v1201 = vadd.f32 0.0, %v1200
  %1202 = vmatmul.bf16.gmra.mxu0 %v594
  %v1203 = vpop.f32.mrf.mxu0
  %v1204 = vadd.f32 0.0, %v1203
  %v1205 = vpop.f32.mrf.mxu0
  %v1206 = vadd.f32 0.0, %v1205
  %1207 = vmatmul.bf16.gmra.mxu0 %v597
  %v1208 = vpop.f32.mrf.mxu0
  %v1209 = vadd.f32 0.0, %v1208
  %v1210 = vpop.f32.mrf.mxu0
  %v1211 = vadd.f32 0.0, %v1210
  %1212 = vmatmul.bf16.gmra.mxu0 %v600
  %v1213 = vpop.f32.mrf.mxu0
  %v1214 = vadd.f32 0.0, %v1213
  %v1215 = vpop.f32.mrf.mxu0
  %v1216 = vadd.f32 0.0, %v1215
  %1217 = vmatmul.bf16.gmra.mxu0 %v603
  %v1218 = vpop.f32.mrf.mxu0
  %v1219 = vadd.f32 0.0, %v1218
  %v1220 = vpop.f32.mrf.mxu0
  %v1221 = vadd.f32 0.0, %v1220
  %1222 = vmatmul.bf16.gmra.mxu0 %v606
  %v1223 = vpop.f32.mrf.mxu0
  %v1224 = vadd.f32 0.0, %v1223
  %v1225 = vpop.f32.mrf.mxu0
  %v1226 = vadd.f32 0.0, %v1225
  %1227 = vmatmul.bf16.gmra.mxu0 %v609
  %v1228 = vpop.f32.mrf.mxu0
  %v1229 = vadd.f32 0.0, %v1228
  %v1230 = vpop.f32.mrf.mxu0
  %v1231 = vadd.f32 0.0, %v1230
  %1232 = vmatmul.bf16.gmra.mxu0 %v612
  %v1233 = vpop.f32.mrf.mxu0
  %v1234 = vadd.f32 0.0, %v1233
  %v1235 = vpop.f32.mrf.mxu0
  %v1236 = vadd.f32 0.0, %v1235
  %1237 = vmatmul.bf16.gmra.mxu0 %v615
  %v1238 = vpop.f32.mrf.mxu0
  %v1239 = vadd.f32 0.0, %v1238
  %v1240 = vpop.f32.mrf.mxu0
  %v1241 = vadd.f32 0.0, %v1240
  %1242 = vmatmul.bf16.gmra.mxu0 %v618
  %v1243 = vpop.f32.mrf.mxu0
  %v1244 = vadd.f32 0.0, %v1243
  %v1245 = vpop.f32.mrf.mxu0
  %v1246 = vadd.f32 0.0, %v1245
  %1247 = vmatmul.bf16.gmra.mxu0 %v621
  %v1248 = vpop.f32.mrf.mxu0
  %v1249 = vadd.f32 0.0, %v1248
  %v1250 = vpop.f32.mrf.mxu0
  %v1251 = vadd.f32 0.0, %v1250
  %1252 = vmatmul.bf16.gmra.mxu0 %v624
  %v1253 = vpop.f32.mrf.mxu0
  %v1254 = vadd.f32 0.0, %v1253
  %v1255 = vpop.f32.mrf.mxu0
  %v1256 = vadd.f32 0.0, %v1255
  %1257 = vmatmul.bf16.gmra.mxu0 %v627
  %v1258 = vpop.f32.mrf.mxu0
  %v1259 = vadd.f32 0.0, %v1258
  %v1260 = vpop.f32.mrf.mxu0
  %v1261 = vadd.f32 0.0, %v1260
  %1262 = vmatmul.bf16.gmra.mxu0 %v630
  %v1263 = vpop.f32.mrf.mxu0
  %v1264 = vadd.f32 0.0, %v1263
  %v1265 = vpop.f32.mrf.mxu0
  %v1266 = vadd.f32 0.0, %v1265
  %1267 = vmatmul.bf16.gmra.mxu0 %v633
  %v1268 = vpop.f32.mrf.mxu0
  %v1269 = vadd.f32 0.0, %v1268
  %v1270 = vpop.f32.mrf.mxu0
  %v1271 = vadd.f32 0.0, %v1270
  %1272 = vmatmul.bf16.gmra.mxu0 %v636
  %v1273 = vpop.f32.mrf.mxu0
  %v1274 = vadd.f32 0.0, %v1273
  %v1275 = vpop.f32.mrf.mxu0
  %v1276 = vadd.f32 0.0, %v1275
  %1277 = vmatmul.bf16.gmra.mxu0 %v639
  %v1278 = vpop.f32.mrf.mxu0
  %v1279 = vadd.f32 0.0, %v1278
  %v1280 = vpop.f32.mrf.mxu0
  %v1281 = vadd.f32 0.0, %v1280
  %1282 = vmatmul.bf16.gmra.mxu0 %v642
  %v1283 = vpop.f32.mrf.mxu0
  %v1284 = vadd.f32 0.0, %v1283
  %v1285 = vpop.f32.mrf.mxu0
  %v1286 = vadd.f32 0.0, %v1285
  %1287 = vmatmul.bf16.gmra.mxu0 %v645
  %v1288 = vpop.f32.mrf.mxu0
  %v1289 = vadd.f32 0.0, %v1288
  %v1290 = vpop.f32.mrf.mxu0
  %v1291 = vadd.f32 0.0, %v1290
  %1292 = vmatmul.bf16.gmra.mxu0 %v648
  %v1293 = vpop.f32.mrf.mxu0
  %v1294 = vadd.f32 0.0, %v1293
  %v1295 = vpop.f32.mrf.mxu0
  %v1296 = vadd.f32 0.0, %v1295
  %1297 = vmatmul.bf16.gmra.mxu0 %v651
  %v1298 = vpop.f32.mrf.mxu0
  %v1299 = vadd.f32 0.0, %v1298
  %v1300 = vpop.f32.mrf.mxu0
  %v1301 = vadd.f32 0.0, %v1300
  %1302 = vmatmul.bf16.gmra.mxu0 %v654
  %v1303 = vpop.f32.mrf.mxu0
  %v1304 = vadd.f32 0.0, %v1303
  %v1305 = vpop.f32.mrf.mxu0
  %v1306 = vadd.f32 0.0, %v1305
  %1307 = vmatmul.bf16.gmra.mxu0 %v657
  %v1308 = vpop.f32.mrf.mxu0
  %v1309 = vadd.f32 0.0, %v1308
  %v1310 = vpop.f32.mrf.mxu0
  %v1311 = vadd.f32 0.0, %v1310
  %1312 = vmatmul.bf16.gmra.mxu0 %v660
  %v1313 = vpop.f32.mrf.mxu0
  %v1314 = vadd.f32 0.0, %v1313
  %v1315 = vpop.f32.mrf.mxu0
  %v1316 = vadd.f32 0.0, %v1315
  %1317 = vmatmul.bf16.gmra.mxu0 %v663
  %v1318 = vpop.f32.mrf.mxu0
  %v1319 = vadd.f32 0.0, %v1318
  %v1320 = vpop.f32.mrf.mxu0
  %v1321 = vadd.f32 0.0, %v1320
  %1322 = vdwg.mxu0
  %1323 = vst [vmem:[%s2] sm:$0xff] %v675
  %1324 = vst [vmem:[%s2 + $0x8] sm:$0xff] %v1004
  %1325 = vst [vmem:[%s2 + $0x10] sm:$0xff] %v677
  %1326 = vst [vmem:[%s2 + $0x18] sm:$0xff] %v1006
  %1327 = vst [vmem:[%s2 + $0x20] sm:$0xff] %v680
  %1328 = vst [vmem:[%s2 + $0x28] sm:$0xff] %v1009
  %1329 = vst [vmem:[%s2 + $0x30] sm:$0xff] %v682
  %1330 = vst [vmem:[%s2 + $0x38] sm:$0xff] %v1011
  %1331 = vst [vmem:[%s2 + $0x40] sm:$0xff] %v685
  %1332 = vst [vmem:[%s2 + $0x48] sm:$0xff] %v1014
  %1333 = vst [vmem:[%s2 + $0x50] sm:$0xff] %v687
  %1334 = vst [vmem:[%s2 + $0x58] sm:$0xff] %v1016
  %1335 = vst [vmem:[%s2 + $0x60] sm:$0xff] %v690
  %1336 = vst [vmem:[%s2 + $0x68] sm:$0xff] %v1019
  %1337 = vst [vmem:[%s2 + $0x70] sm:$0xff] %v692
  %1338 = vst [vmem:[%s2 + $0x78] sm:$0xff] %v1021
  %1339 = vst [vmem:[%s2 + $0x80] sm:$0xff] %v695
  %1340 = vst [vmem:[%s2 + $0x88] sm:$0xff] %v1024
  %1341 = vst [vmem:[%s2 + $0x90] sm:$0xff] %v697
  %1342 = vst [vmem:[%s2 + $0x98] sm:$0xff] %v1026
  %1343 = vst [vmem:[%s2 + $0xa0] sm:$0xff] %v700
  %1344 = vst [vmem:[%s2 + $0xa8] sm:$0xff] %v1029
  %1345 = vst [vmem:[%s2 + $0xb0] sm:$0xff] %v702
  %1346 = vst [vmem:[%s2 + $0xb8] sm:$0xff] %v1031
  %1347 = vst [vmem:[%s2 + $0xc0] sm:$0xff] %v705
  %1348 = vst [vmem:[%s2 + $0xc8] sm:$0xff] %v1034
  %1349 = vst [vmem:[%s2 + $0xd0] sm:$0xff] %v707
  %1350 = vst [vmem:[%s2 + $0xd8] sm:$0xff] %v1036
  %1351 = vst [vmem:[%s2 + $0xe0] sm:$0xff] %v710
  %1352 = vst [vmem:[%s2 + $0xe8] sm:$0xff] %v1039
  %1353 = vst [vmem:[%s2 + $0xf0] sm:$0xff] %v712
  %1354 = vst [vmem:[%s2 + $0xf8] sm:$0xff] %v1041
  %1355 = vst [vmem:[%s2 + $0x100] sm:$0xff] %v715
  %1356 = vst [vmem:[%s2 + $0x108] sm:$0xff] %v1044
  %1357 = vst [vmem:[%s2 + $0x110] sm:$0xff] %v717
  %1358 = vst [vmem:[%s2 + $0x118] sm:$0xff] %v1046
  %1359 = vst [vmem:[%s2 + $0x120] sm:$0xff] %v720
  %1360 = vst [vmem:[%s2 + $0x128] sm:$0xff] %v1049
  %1361 = vst [vmem:[%s2 + $0x130] sm:$0xff] %v722
  %1362 = vst [vmem:[%s2 + $0x138] sm:$0xff] %v1051
  %1363 = vst [vmem:[%s2 + $0x140] sm:$0xff] %v725
  %1364 = vst [vmem:[%s2 + $0x148] sm:$0xff] %v1054
  %1365 = vst [vmem:[%s2 + $0x150] sm:$0xff] %v727
  %1366 = vst [vmem:[%s2 + $0x158] sm:$0xff] %v1056
  %1367 = vst [vmem:[%s2 + $0x160] sm:$0xff] %v730
  %1368 = vst [vmem:[%s2 + $0x168] sm:$0xff] %v1059
  %1369 = vst [vmem:[%s2 + $0x170] sm:$0xff] %v732
  %1370 = vst [vmem:[%s2 + $0x178] sm:$0xff] %v1061
  %1371 = vst [vmem:[%s2 + $0x180] sm:$0xff] %v735
  %1372 = vst [vmem:[%s2 + $0x188] sm:$0xff] %v1064
  %1373 = vst [vmem:[%s2 + $0x190] sm:$0xff] %v737
  %1374 = vst [vmem:[%s2 + $0x198] sm:$0xff] %v1066
  %1375 = vst [vmem:[%s2 + $0x1a0] sm:$0xff] %v740
  %1376 = vst [vmem:[%s2 + $0x1a8] sm:$0xff] %v1069
  %1377 = vst [vmem:[%s2 + $0x1b0] sm:$0xff] %v742
  %1378 = vst [vmem:[%s2 + $0x1b8] sm:$0xff] %v1071
  %1379 = vst [vmem:[%s2 + $0x1c0] sm:$0xff] %v745
  %1380 = vst [vmem:[%s2 + $0x1c8] sm:$0xff] %v1074
  %1381 = vst [vmem:[%s2 + $0x1d0] sm:$0xff] %v747
  %1382 = vst [vmem:[%s2 + $0x1d8] sm:$0xff] %v1076
  %1383 = vst [vmem:[%s2 + $0x1e0] sm:$0xff] %v750
  %1384 = vst [vmem:[%s2 + $0x1e8] sm:$0xff] %v1079
  %1385 = vst [vmem:[%s2 + $0x1f0] sm:$0xff] %v752
  %1386 = vst [vmem:[%s2 + $0x1f8] sm:$0xff] %v1081
  %1387 = vst [vmem:[%s2 + $0x200] sm:$0xff] %v755
  %1388 = vst [vmem:[%s2 + $0x208] sm:$0xff] %v1084
  %1389 = vst [vmem:[%s2 + $0x210] sm:$0xff] %v757
  %1390 = vst [vmem:[%s2 + $0x218] sm:$0xff] %v1086
  %1391 = vst [vmem:[%s2 + $0x220] sm:$0xff] %v760
  %1392 = vst [vmem:[%s2 + $0x228] sm:$0xff] %v1089
  %1393 = vst [vmem:[%s2 + $0x230] sm:$0xff] %v762
  %1394 = vst [vmem:[%s2 + $0x238] sm:$0xff] %v1091
  %1395 = vst [vmem:[%s2 + $0x240] sm:$0xff] %v765
  %1396 = vst [vmem:[%s2 + $0x248] sm:$0xff] %v1094
  %1397 = vst [vmem:[%s2 + $0x250] sm:$0xff] %v767
  %1398 = vst [vmem:[%s2 + $0x258] sm:$0xff] %v1096
  %1399 = vst [vmem:[%s2 + $0x260] sm:$0xff] %v770
  %1400 = vst [vmem:[%s2 + $0x268] sm:$0xff] %v1099
  %1401 = vst [vmem:[%s2 + $0x270] sm:$0xff] %v772
  %1402 = vst [vmem:[%s2 + $0x278] sm:$0xff] %v1101
  %1403 = vst [vmem:[%s2 + $0x280] sm:$0xff] %v775
  %1404 = vst [vmem:[%s2 + $0x288] sm:$0xff] %v1104
  %1405 = vst [vmem:[%s2 + $0x290] sm:$0xff] %v777
  %1406 = vst [vmem:[%s2 + $0x298] sm:$0xff] %v1106
  %1407 = vst [vmem:[%s2 + $0x2a0] sm:$0xff] %v780
  %1408 = vst [vmem:[%s2 + $0x2a8] sm:$0xff] %v1109
  %1409 = vst [vmem:[%s2 + $0x2b0] sm:$0xff] %v782
  %1410 = vst [vmem:[%s2 + $0x2b8] sm:$0xff] %v1111
  %1411 = vst [vmem:[%s2 + $0x2c0] sm:$0xff] %v785
  %1412 = vst [vmem:[%s2 + $0x2c8] sm:$0xff] %v1114
  %1413 = vst [vmem:[%s2 + $0x2d0] sm:$0xff] %v787
  %1414 = vst [vmem:[%s2 + $0x2d8] sm:$0xff] %v1116
  %1415 = vst [vmem:[%s2 + $0x2e0] sm:$0xff] %v790
  %1416 = vst [vmem:[%s2 + $0x2e8] sm:$0xff] %v1119
  %1417 = vst [vmem:[%s2 + $0x2f0] sm:$0xff] %v792
  %1418 = vst [vmem:[%s2 + $0x2f8] sm:$0xff] %v1121
  %1419 = vst [vmem:[%s2 + $0x300] sm:$0xff] %v795
  %1420 = vst [vmem:[%s2 + $0x308] sm:$0xff] %v1124
  %1421 = vst [vmem:[%s2 + $0x310] sm:$0xff] %v797
  %1422 = vst [vmem:[%s2 + $0x318] sm:$0xff] %v1126
  %1423 = vst [vmem:[%s2 + $0x320] sm:$0xff] %v800
  %1424 = vst [vmem:[%s2 + $0x328] sm:$0xff] %v1129
  %1425 = vst [vmem:[%s2 + $0x330] sm:$0xff] %v802
  %1426 = vst [vmem:[%s2 + $0x338] sm:$0xff] %v1131
  %1427 = vst [vmem:[%s2 + $0x340] sm:$0xff] %v805
  %1428 = vst [vmem:[%s2 + $0x348] sm:$0xff] %v1134
  %1429 = vst [vmem:[%s2 + $0x350] sm:$0xff] %v807
  %1430 = vst [vmem:[%s2 + $0x358] sm:$0xff] %v1136
  %1431 = vst [vmem:[%s2 + $0x360] sm:$0xff] %v810
  %1432 = vst [vmem:[%s2 + $0x368] sm:$0xff] %v1139
  %1433 = vst [vmem:[%s2 + $0x370] sm:$0xff] %v812
  %1434 = vst [vmem:[%s2 + $0x378] sm:$0xff] %v1141
  %1435 = vst [vmem:[%s2 + $0x380] sm:$0xff] %v815
  %1436 = vst [vmem:[%s2 + $0x388] sm:$0xff] %v1144
  %1437 = vst [vmem:[%s2 + $0x390] sm:$0xff] %v817
  %1438 = vst [vmem:[%s2 + $0x398] sm:$0xff] %v1146
  %1439 = vst [vmem:[%s2 + $0x3a0] sm:$0xff] %v820
  %1440 = vst [vmem:[%s2 + $0x3a8] sm:$0xff] %v1149
  %1441 = vst [vmem:[%s2 + $0x3b0] sm:$0xff] %v822
  %1442 = vst [vmem:[%s2 + $0x3b8] sm:$0xff] %v1151
  %1443 = vst [vmem:[%s2 + $0x3c0] sm:$0xff] %v825
  %1444 = vst [vmem:[%s2 + $0x3c8] sm:$0xff] %v1154
  %1445 = vst [vmem:[%s2 + $0x3d0] sm:$0xff] %v827
  %1446 = vst [vmem:[%s2 + $0x3d8] sm:$0xff] %v1156
  %1447 = vst [vmem:[%s2 + $0x3e0] sm:$0xff] %v830
  %1448 = vst [vmem:[%s2 + $0x3e8] sm:$0xff] %v1159
  %1449 = vst [vmem:[%s2 + $0x3f0] sm:$0xff] %v832
  %1450 = vst [vmem:[%s2 + $0x3f8] sm:$0xff] %v1161
  %1451 = vst [vmem:[%s2 + $0x400] sm:$0xff] %v835
  %1452 = vst [vmem:[%s2 + $0x408] sm:$0xff] %v1164
  %1453 = vst [vmem:[%s2 + $0x410] sm:$0xff] %v837
  %1454 = vst [vmem:[%s2 + $0x418] sm:$0xff] %v1166
  %1455 = vst [vmem:[%s2 + $0x420] sm:$0xff] %v840
  %1456 = vst [vmem:[%s2 + $0x428] sm:$0xff] %v1169
  %1457 = vst [vmem:[%s2 + $0x430] sm:$0xff] %v842
  %1458 = vst [vmem:[%s2 + $0x438] sm:$0xff] %v1171
  %1459 = vst [vmem:[%s2 + $0x440] sm:$0xff] %v845
  %1460 = vst [vmem:[%s2 + $0x448] sm:$0xff] %v1174
  %1461 = vst [vmem:[%s2 + $0x450] sm:$0xff] %v847
  %1462 = vst [vmem:[%s2 + $0x458] sm:$0xff] %v1176
  %1463 = vst [vmem:[%s2 + $0x460] sm:$0xff] %v850
  %1464 = vst [vmem:[%s2 + $0x468] sm:$0xff] %v1179
  %1465 = vst [vmem:[%s2 + $0x470] sm:$0xff] %v852
  %1466 = vst [vmem:[%s2 + $0x478] sm:$0xff] %v1181
  %1467 = vst [vmem:[%s2 + $0x480] sm:$0xff] %v855
  %1468 = vst [vmem:[%s2 + $0x488] sm:$0xff] %v1184
  %1469 = vst [vmem:[%s2 + $0x490] sm:$0xff] %v857
  %1470 = vst [vmem:[%s2 + $0x498] sm:$0xff] %v1186
  %1471 = vst [vmem:[%s2 + $0x4a0] sm:$0xff] %v860
  %1472 = vst [vmem:[%s2 + $0x4a8] sm:$0xff] %v1189
  %1473 = vst [vmem:[%s2 + $0x4b0] sm:$0xff] %v862
  %1474 = vst [vmem:[%s2 + $0x4b8] sm:$0xff] %v1191
  %1475 = vst [vmem:[%s2 + $0x4c0] sm:$0xff] %v865
  %1476 = vst [vmem:[%s2 + $0x4c8] sm:$0xff] %v1194
  %1477 = vst [vmem:[%s2 + $0x4d0] sm:$0xff] %v867
  %1478 = vst [vmem:[%s2 + $0x4d8] sm:$0xff] %v1196
  %1479 = vst [vmem:[%s2 + $0x4e0] sm:$0xff] %v870
  %1480 = vst [vmem:[%s2 + $0x4e8] sm:$0xff] %v1199
  %1481 = vst [vmem:[%s2 + $0x4f0] sm:$0xff] %v872
  %1482 = vst [vmem:[%s2 + $0x4f8] sm:$0xff] %v1201
  %1483 = vst [vmem:[%s2 + $0x500] sm:$0xff] %v875
  %1484 = vst [vmem:[%s2 + $0x508] sm:$0xff] %v1204
  %1485 = vst [vmem:[%s2 + $0x510] sm:$0xff] %v877
  %1486 = vst [vmem:[%s2 + $0x518] sm:$0xff] %v1206
  %1487 = vst [vmem:[%s2 + $0x520] sm:$0xff] %v880
  %1488 = vst [vmem:[%s2 + $0x528] sm:$0xff] %v1209
  %1489 = vst [vmem:[%s2 + $0x530] sm:$0xff] %v882
  %1490 = vst [vmem:[%s2 + $0x538] sm:$0xff] %v1211
  %1491 = vst [vmem:[%s2 + $0x540] sm:$0xff] %v885
  %1492 = vst [vmem:[%s2 + $0x548] sm:$0xff] %v1214
  %1493 = vst [vmem:[%s2 + $0x550] sm:$0xff] %v887
  %1494 = vst [vmem:[%s2 + $0x558] sm:$0xff] %v1216
  %1495 = vst [vmem:[%s2 + $0x560] sm:$0xff] %v890
  %1496 = vst [vmem:[%s2 + $0x568] sm:$0xff] %v1219
  %1497 = vst [vmem:[%s2 + $0x570] sm:$0xff] %v892
  %1498 = vst [vmem:[%s2 + $0x578] sm:$0xff] %v1221
  %1499 = vst [vmem:[%s2 + $0x580] sm:$0xff] %v895
  %1500 = vst [vmem:[%s2 + $0x588] sm:$0xff] %v1224
  %1501 = vst [vmem:[%s2 + $0x590] sm:$0xff] %v897
  %1502 = vst [vmem:[%s2 + $0x598] sm:$0xff] %v1226
  %1503 = vst [vmem:[%s2 + $0x5a0] sm:$0xff] %v900
  %1504 = vst [vmem:[%s2 + $0x5a8] sm:$0xff] %v1229
  %1505 = vst [vmem:[%s2 + $0x5b0] sm:$0xff] %v902
  %1506 = vst [vmem:[%s2 + $0x5b8] sm:$0xff] %v1231
  %1507 = vst [vmem:[%s2 + $0x5c0] sm:$0xff] %v905
  %1508 = vst [vmem:[%s2 + $0x5c8] sm:$0xff] %v1234
  %1509 = vst [vmem:[%s2 + $0x5d0] sm:$0xff] %v907
  %1510 = vst [vmem:[%s2 + $0x5d8] sm:$0xff] %v1236
  %1511 = vst [vmem:[%s2 + $0x5e0] sm:$0xff] %v910
  %1512 = vst [vmem:[%s2 + $0x5e8] sm:$0xff] %v1239
  %1513 = vst [vmem:[%s2 + $0x5f0] sm:$0xff] %v912
  %1514 = vst [vmem:[%s2 + $0x5f8] sm:$0xff] %v1241
  %1515 = vst [vmem:[%s2 + $0x600] sm:$0xff] %v915
  %1516 = vst [vmem:[%s2 + $0x608] sm:$0xff] %v1244
  %1517 = vst [vmem:[%s2 + $0x610] sm:$0xff] %v917
  %1518 = vst [vmem:[%s2 + $0x618] sm:$0xff] %v1246
  %1519 = vst [vmem:[%s2 + $0x620] sm:$0xff] %v920
  %1520 = vst [vmem:[%s2 + $0x628] sm:$0xff] %v1249
  %1521 = vst [vmem:[%s2 + $0x630] sm:$0xff] %v922
  %1522 = vst [vmem:[%s2 + $0x638] sm:$0xff] %v1251
  %1523 = vst [vmem:[%s2 + $0x640] sm:$0xff] %v925
  %1524 = vst [vmem:[%s2 + $0x648] sm:$0xff] %v1254
  %1525 = vst [vmem:[%s2 + $0x650] sm:$0xff] %v927
  %1526 = vst [vmem:[%s2 + $0x658] sm:$0xff] %v1256
  %1527 = vst [vmem:[%s2 + $0x660] sm:$0xff] %v930
  %1528 = vst [vmem:[%s2 + $0x668] sm:$0xff] %v1259
  %1529 = vst [vmem:[%s2 + $0x670] sm:$0xff] %v932
  %1530 = vst [vmem:[%s2 + $0x678] sm:$0xff] %v1261
  %1531 = vst [vmem:[%s2 + $0x680] sm:$0xff] %v935
  %1532 = vst [vmem:[%s2 + $0x688] sm:$0xff] %v1264
  %1533 = vst [vmem:[%s2 + $0x690] sm:$0xff] %v937
  %1534 = vst [vmem:[%s2 + $0x698] sm:$0xff] %v1266
  %1535 = vst [vmem:[%s2 + $0x6a0] sm:$0xff] %v940
  %1536 = vst [vmem:[%s2 + $0x6a8] sm:$0xff] %v1269
  %1537 = vst [vmem:[%s2 + $0x6b0] sm:$0xff] %v942
  %1538 = vst [vmem:[%s2 + $0x6b8] sm:$0xff] %v1271
  %1539 = vst [vmem:[%s2 + $0x6c0] sm:$0xff] %v945
  %1540 = vst [vmem:[%s2 + $0x6c8] sm:$0xff] %v1274
  %1541 = vst [vmem:[%s2 + $0x6d0] sm:$0xff] %v947
  %1542 = vst [vmem:[%s2 + $0x6d8] sm:$0xff] %v1276
  %1543 = vst [vmem:[%s2 + $0x6e0] sm:$0xff] %v950
  %1544 = vst [vmem:[%s2 + $0x6e8] sm:$0xff] %v1279
  %1545 = vst [vmem:[%s2 + $0x6f0] sm:$0xff] %v952
  %1546 = vst [vmem:[%s2 + $0x6f8] sm:$0xff] %v1281
  %1547 = vst [vmem:[%s2 + $0x700] sm:$0xff] %v955
  %1548 = vst [vmem:[%s2 + $0x708] sm:$0xff] %v1284
  %1549 = vst [vmem:[%s2 + $0x710] sm:$0xff] %v957
  %1550 = vst [vmem:[%s2 + $0x718] sm:$0xff] %v1286
  %1551 = vst [vmem:[%s2 + $0x720] sm:$0xff] %v960
  %1552 = vst [vmem:[%s2 + $0x728] sm:$0xff] %v1289
  %1553 = vst [vmem:[%s2 + $0x730] sm:$0xff] %v962
  %1554 = vst [vmem:[%s2 + $0x738] sm:$0xff] %v1291
  %1555 = vst [vmem:[%s2 + $0x740] sm:$0xff] %v965
  %1556 = vst [vmem:[%s2 + $0x748] sm:$0xff] %v1294
  %1557 = vst [vmem:[%s2 + $0x750] sm:$0xff] %v967
  %1558 = vst [vmem:[%s2 + $0x758] sm:$0xff] %v1296
  %1559 = vst [vmem:[%s2 + $0x760] sm:$0xff] %v970
  %1560 = vst [vmem:[%s2 + $0x768] sm:$0xff] %v1299
  %1561 = vst [vmem:[%s2 + $0x770] sm:$0xff] %v972
  %1562 = vst [vmem:[%s2 + $0x778] sm:$0xff] %v1301
  %1563 = vst [vmem:[%s2 + $0x780] sm:$0xff] %v975
  %1564 = vst [vmem:[%s2 + $0x788] sm:$0xff] %v1304
  %1565 = vst [vmem:[%s2 + $0x790] sm:$0xff] %v977
  %1566 = vst [vmem:[%s2 + $0x798] sm:$0xff] %v1306
  %1567 = vst [vmem:[%s2 + $0x7a0] sm:$0xff] %v980
  %1568 = vst [vmem:[%s2 + $0x7a8] sm:$0xff] %v1309
  %1569 = vst [vmem:[%s2 + $0x7b0] sm:$0xff] %v982
  %1570 = vst [vmem:[%s2 + $0x7b8] sm:$0xff] %v1311
  %1571 = vst [vmem:[%s2 + $0x7c0] sm:$0xff] %v985
  %1572 = vst [vmem:[%s2 + $0x7c8] sm:$0xff] %v1314
  %1573 = vst [vmem:[%s2 + $0x7d0] sm:$0xff] %v987
  %1574 = vst [vmem:[%s2 + $0x7d8] sm:$0xff] %v1316
  %1575 = vst [vmem:[%s2 + $0x7e0] sm:$0xff] %v990
  %1576 = vst [vmem:[%s2 + $0x7e8] sm:$0xff] %v1319
  %1577 = vst [vmem:[%s2 + $0x7f0] sm:$0xff] %v992
  %1578 = vst [vmem:[%s2 + $0x7f8] sm:$0xff] %v1321
  // Predicated region
  $region10: #{conv_template_forward.9} parent=0 // pred_check
    _
  $region11: #{conv_template_forward.9} parent=0 // pred_check_branch
    %1580 = sbr.rel (0) target = $region13
  $region12: #{conv_template_forward.9} parent=0 // pred_region
    _
  $region13: #{conv_template_forward.9} parent=0 // pred_fallthru
    _
  // Predicated region
  $region14: #{conv_template_forward.9} parent=0 // pred_check
    _
  $region15: #{conv_template_forward.9} parent=0 // pred_check_branch
    %1582 = sbr.rel (0) target = $region17
  $region16: #{conv_template_forward.9} parent=0 // pred_region
    _
  $region17: #{conv_template_forward.9} parent=0 // pred_fallthru
    _

</llo_original>
